<compile_context>
chip_gen: v7x
topology: tpu7x:2x2x1
jax: 0.10.0
libtpu: 0.0.40
codegen_flags: <defaults>
</compile_context>

<pallas_src>
import functools

import jax
import jax.numpy as jnp
import numpy as np
from jax.experimental import pallas as pl
from jax.experimental.pallas import tpu as pltpu  # noqa: F401  (TPU backend module)

OUT_PAD = 128  # lane-dense logits slab; sliced to out_nf in the wrapper


# ----------------------------------------------------------------------------
# Fused kernel (single invocation, no grid; layer loop unrolled in the body)
# ----------------------------------------------------------------------------
def _silu(v):
    return v * jax.nn.sigmoid(v)


def _mm(a, b):
    return jnp.dot(a, b, preferred_element_type=jnp.float32)


def fused_egnn_kernel(
    h0_ref, x0_ref, g_ref, grt_ref, invcnt_ref,
    ein_w_ref, ein_b_ref,
    head_w1_ref, head_b1_ref, head_w2_ref, head_b2_ref,
    bigw_ref, attco_w_ref, wc_w2_ref, bias_ref,
    out_ref,
    *, n_layers: int, hidden: int, attention: bool, mm_dtype):
    H = hidden
    mm = mm_dtype

    g_row = g_ref[0]            # [E, N] one-hot gather operator (exact 0/1)
    g_col = g_ref[1]            # [E, N]
    g_rowt = grt_ref[...]       # [N, E] pre-transposed scatter operator
    inv_cnt = invcnt_ref[...]   # [N, 1] f32 (count clamped >= 1)

    # embedding_in
    h = _mm(h0_ref[...].astype(mm), ein_w_ref[...]) + ein_b_ref[...]   # [N, H] f32
    x = x0_ref[...]                                                    # [N, 3] f32

    for l in range(n_layers):   # static unroll (L is small)
        W = bigw_ref[l]                       # [6H, H]
        we_srcdst = W[0:2 * H]                # [2H, H]  (we_src ; we_dst)
        we_w2 = W[2 * H:3 * H]                # [H, H]
        wn_hagg = W[3 * H:5 * H]              # [2H, H]  (wn_h ; wn_agg)
        wn_w2 = W[5 * H:6 * H]                # [H, H]
        b = bias_ref[l]                       # [8, H] f32
        we_b1 = b[0:1]                        # edge_attr(=1) weight pre-folded in
        we_b2 = b[1:2]
        wc_b1 = b[2:3]
        wn_b1 = b[3:4]
        wn_b2 = b[4:5]
        att_b = b[5:6, 0:1]                   # [1, 1]
        we_rad = b[6:7]                       # [1, H]
        attco_w = attco_w_ref[l]              # [H, H+1] = [wc_w1 | att_w]
        wc_w2 = wc_w2_ref[l]                  # [H, 1]

        # --- fused edge gathers: one matmul per endpoint on [h | x] ------------
        hx = jnp.concatenate([h, x], axis=1).astype(mm)    # [N, H+3]
        src = _mm(g_row, hx)                                # [E, H+3] f32
        dst = _mm(g_col, hx)                                # [E, H+3] f32
        h_src, x_src = src[:, :H], src[:, H:]
        h_dst, x_dst = dst[:, :H], dst[:, H:]
        coord_diff = x_src - x_dst                          # [E, 3] f32
        radial = jnp.sum(coord_diff * coord_diff, axis=1, keepdims=True)

        # --- edge MLP (we_src/we_dst merged into one K=2H matmul) --------------
        hh = jnp.concatenate([h_src, h_dst], axis=1)        # [E, 2H]
        pre1 = _mm(hh.astype(mm), we_srcdst) + radial * we_rad + we_b1
        t = _silu(pre1)
        m = _silu(_mm(t.astype(mm), we_w2) + we_b2)         # [E, H] f32

        # --- attention + coord-MLP first projection merged ---------------------
        # (m*att) @ wc_w1 == att * (m @ wc_w1) since att is a per-edge scalar.
        P = _mm(m.astype(mm), attco_w)                      # [E, H+1] f32
        coord_pre = P[:, :H]
        if attention:
            att = jax.nn.sigmoid(P[:, H:H + 1] + att_b)     # [E, 1]
            m_att = m * att
            coord_pre = att * coord_pre
        else:
            m_att = m
        c1 = _silu(coord_pre + wc_b1)                       # [E, H]
        scale = _mm(c1.astype(mm), wc_w2)                   # [E, 1] (no bias)
        trans = coord_diff * scale                          # [E, 3] f32

        # --- fused scatter (segment sums) as one MXU matmul --------------------
        mt = jnp.concatenate([m_att, trans], axis=1).astype(mm)   # [E, H+3]
        agg = _mm(g_rowt, mt)                                     # [N, H+3] f32
        h_agg = agg[:, :H]
        x_agg = agg[:, H:]

        # --- residual updates in f32 -------------------------------------------
        x = x + x_agg * inv_cnt                             # segment_mean
        hh2 = jnp.concatenate([h, h_agg], axis=1)           # [N, 2H]
        n1 = _silu(_mm(hh2.astype(mm), wn_hagg) + wn_b1)
        h = h + _mm(n1.astype(mm), wn_w2) + wn_b2

    # epilogue: embedding_out is folded into head_w1 host-side -> two matmuls
    z = jnp.maximum(_mm(h.astype(mm), head_w1_ref[...]) + head_b1_ref[...], 0.0)
    out_ref[...] = _mm(z.astype(mm), head_w2_ref[...]) + head_b2_ref[...]


# ----------------------------------------------------------------------------
# Wrapper: build graph operators, pack weights into a few slabs, one pallas_call
# ----------------------------------------------------------------------------
def egnn_residue_classifier_forward(params, h, x, edge_index, attention=True,
                                    mm_dtype=jnp.bfloat16):
    """h: [N, in_node_nf] f32, x: [N, 3] f32, edge_index: [E, 2] int32."""
    f32 = jnp.float32
    mm = mm_dtype
    h = h.astype(f32)
    x = x.astype(f32)
    edges = edge_index.T                     # matches edge_index.t() in torch
    row, col = edges[0], edges[1]
    N = int(h.shape[0])
    layers = params["layers"]
    L = len(layers)
    H = int(params["emb_in_w"].shape[1])
    out_nf = int(params["mlp_w2"].shape[1])

    # Graph structure (layer invariant).
    g_row = jax.nn.one_hot(row, N, dtype=f32)            # [E, N]
    g_col = jax.nn.one_hot(col, N, dtype=f32)            # [E, N]
    cnt = jnp.sum(g_row, axis=0)[:, None]                # edges per target node
    inv_cnt = (1.0 / jnp.maximum(cnt, 1.0)).astype(f32)  # [N, 1]
    g = jnp.stack([g_row, g_col]).astype(mm)             # [2, E, N]
    g_row_t = g_row.T.astype(mm)                         # [N, E]

    # Per-layer packed weight slabs.
    bigw = jnp.stack([jnp.concatenate(
        [jnp.concatenate([lp["we_src"], lp["we_dst"]], axis=0),   # [2H, H]
         lp["we_w2"],                                             # [H, H]
         jnp.concatenate([lp["wn_h"], lp["wn_agg"]], axis=0),     # [2H, H]
         lp["wn_w2"]], axis=0)                                    # [H, H]
        for lp in layers]).astype(mm)                             # [L, 6H, H]
    attco = jnp.stack([jnp.concatenate([lp["wc_w1"], lp["att_w"]], axis=1)
                       for lp in layers]).astype(mm)              # [L, H, H+1]
    wc_w2 = jnp.stack([lp["wc_w2"] for lp in layers]).astype(mm)  # [L, H, 1]
    bias = jnp.stack([jnp.concatenate(
        [lp["we_b1"] + lp["we_ea"],            # fold all-ones edge_attr column
         lp["we_b2"], lp["wc_b1"], lp["wn_b1"], lp["wn_b2"],
         jnp.broadcast_to(lp["att_b"], (1, H)),
         lp["we_rad"],
         jnp.zeros((1, H), f32)], axis=0)
        for lp in layers]).astype(f32)                            # [L, 8, H]

    # Fold embedding_out into the classifier's first linear (no nonlinearity between).
    head_w1 = (params["emb_out_w"] @ params["mlp_w1"]).astype(mm)
    head_b1 = (params["emb_out_b"] @ params["mlp_w1"] + params["mlp_b1"]).astype(f32)
    head_w2 = jnp.zeros((H, OUT_PAD), f32).at[:, :out_nf].set(params["mlp_w2"]).astype(mm)
    head_b2 = jnp.zeros((1, OUT_PAD), f32).at[:, :out_nf].set(params["mlp_b2"])

    inputs = [h, x, g, g_row_t, inv_cnt,
              params["emb_in_w"].astype(mm), params["emb_in_b"].astype(f32),
              head_w1, head_b1, head_w2, head_b2,
              bigw, attco, wc_w2, bias]

    kern = functools.partial(fused_egnn_kernel, n_layers=L, hidden=H,
                             attention=attention, mm_dtype=mm)

    out = pl.pallas_call(
        kern,
        out_shape=jax.ShapeDtypeStruct((N, OUT_PAD), f32),
    )(*inputs)
    return out[:, :out_nf]


# ----------------------------------------------------------------------------
# Pure-JAX reference (f32) for correctness checking
# ----------------------------------------------------------------------------
def _segment_sum(vals, idx, n):
    return jnp.zeros((n, vals.shape[1]), vals.dtype).at[idx].add(vals)


def egnn_residue_classifier_reference(params, h, x, edge_index, attention=True):
    h = h.astype(jnp.float32)
    x = x.astype(jnp.float32)
    edges = edge_index.T
    row, col = edges[0], edges[1]
    N = h.shape[0]
    E = row.shape[0]
    edge_attr = jnp.ones((E, 1), jnp.float32)
    cnt = _segment_sum(jnp.ones((E, 1), jnp.float32), row, N)
    inv_cnt = 1.0 / jnp.maximum(cnt, 1.0)

    h = h @ params["emb_in_w"] + params["emb_in_b"]
    for lp in params["layers"]:
        coord_diff = x[row] - x[col]
        radial = jnp.sum(coord_diff ** 2, axis=1, keepdims=True)
        pre1 = (h[row] @ lp["we_src"] + h[col] @ lp["we_dst"]
                + radial * lp["we_rad"] + edge_attr * lp["we_ea"] + lp["we_b1"])
        m = jax.nn.silu(pre1)
        m = jax.nn.silu(m @ lp["we_w2"] + lp["we_b2"])
        if attention:
            m = m * jax.nn.sigmoid(m @ lp["att_w"] + lp["att_b"])
        c1 = jax.nn.silu(m @ lp["wc_w1"] + lp["wc_b1"])
        trans = coord_diff * (c1 @ lp["wc_w2"])
        x = x + _segment_sum(trans, row, N) * inv_cnt
        h_agg = _segment_sum(m, row, N)
        n1 = jax.nn.silu(h @ lp["wn_h"] + h_agg @ lp["wn_agg"] + lp["wn_b1"])
        h = h + n1 @ lp["wn_w2"] + lp["wn_b2"]
    h = h @ params["emb_out_w"] + params["emb_out_b"]
    return jnp.maximum(h @ params["mlp_w1"] + params["mlp_b1"], 0.0) \
        @ params["mlp_w2"] + params["mlp_b2"]


# ----------------------------------------------------------------------------
# Parameter init (deterministic, synthetic)
# ----------------------------------------------------------------------------
def _w(key, fan_in, fan_out, scale=None):
    if scale is None:
        scale = 1.0 / float(fan_in) ** 0.5
    return scale * jax.random.normal(key, (fan_in, fan_out), jnp.float32)


def init_params(key, in_node_nf, hidden_nf, out_node_nf, n_layers):
    keys = jax.random.split(key, 8 + 16 * n_layers)
    ki = iter(range(len(keys)))
    p = {
        "emb_in_w": _w(keys[next(ki)], in_node_nf, hidden_nf),
        "emb_in_b": jnp.zeros((1, hidden_nf), jnp.float32),
        "emb_out_w": _w(keys[next(ki)], hidden_nf, hidden_nf),
        "emb_out_b": jnp.zeros((1, hidden_nf), jnp.float32),
        "mlp_w1": _w(keys[next(ki)], hidden_nf, hidden_nf),
        "mlp_b1": jnp.zeros((1, hidden_nf), jnp.float32),
        "mlp_w2": _w(keys[next(ki)], hidden_nf, out_node_nf),
        "mlp_b2": jnp.zeros((1, out_node_nf), jnp.float32),
        "layers": [],
    }
    H = hidden_nf
    fan_e1 = 2 * H + 2  # edge_mlp first linear sees [h_src, h_dst, radial, edge_attr]
    for _ in range(n_layers):
        lp = {
            "we_src": _w(keys[next(ki)], H, H, 1.0 / float(fan_e1) ** 0.5),
            "we_dst": _w(keys[next(ki)], H, H, 1.0 / float(fan_e1) ** 0.5),
            "we_rad": _w(keys[next(ki)], 1, H, 1.0 / float(fan_e1) ** 0.5),
            "we_ea": _w(keys[next(ki)], 1, H, 1.0 / float(fan_e1) ** 0.5),
            "we_b1": jnp.zeros((1, H), jnp.float32),
            "we_w2": _w(keys[next(ki)], H, H),
            "we_b2": jnp.zeros((1, H), jnp.float32),
            "att_w": _w(keys[next(ki)], H, 1),
            "att_b": jnp.zeros((1, 1), jnp.float32),
            "wc_w1": _w(keys[next(ki)], H, H),
            "wc_b1": jnp.zeros((1, H), jnp.float32),
            "wc_w2": _w(keys[next(ki)], H, 1, 0.001),   # xavier gain=0.001 analogue
            "wn_h": _w(keys[next(ki)], H, H, 1.0 / float(2 * H) ** 0.5),
            "wn_agg": _w(keys[next(ki)], H, H, 1.0 / float(2 * H) ** 0.5),
            "wn_b1": jnp.zeros((1, H), jnp.float32),
            "wn_w2": _w(keys[next(ki)], H, H),
            "wn_b2": jnp.zeros((1, H), jnp.float32),
        }
        p["layers"].append(lp)
    return p


# ----------------------------------------------------------------------------
# Example
# ----------------------------------------------------------------------------
if __name__ == "__main__":
    in_node_nf, hidden_nf, out_node_nf, n_layers, attention = 16, 32, 4, 2, True
    N = 8  # residues / nodes

    key = jax.random.PRNGKey(0)
    k_h, k_x, k_p = jax.random.split(key, 3)
    h0 = jax.random.normal(k_h, (N, in_node_nf), jnp.float32)
    x0 = jax.random.normal(k_x, (N, 3), jnp.float32)

    # Fully connected graph without self loops, edge_index shaped [E, 2].
    rr, cc = np.nonzero(~np.eye(N, dtype=bool))
    edge_index = jnp.asarray(np.stack([rr, cc], axis=1), dtype=jnp.int32)  # [56, 2]

    params = init_params(k_p, in_node_nf, hidden_nf, out_node_nf, n_layers)

    ref = jax.block_until_ready(
        egnn_residue_classifier_reference(params, h0, x0, edge_index, attention))
    scale = jnp.maximum(jnp.max(jnp.abs(ref)), 1.0)

    # f32 MXU operands: tight check against the pure-JAX reference.
    out_f32 = jax.block_until_ready(
        egnn_residue_classifier_forward(params, h0, x0, edge_index, attention,
                                        mm_dtype=jnp.float32))
    err_f32 = float(jnp.max(jnp.abs(out_f32 - ref)) / scale)

    # bf16 MXU operands (v6e/v7x fast path), f32 accumulation: looser check.
    out_bf16 = jax.block_until_ready(
        egnn_residue_classifier_forward(params, h0, x0, edge_index, attention,
                                        mm_dtype=jnp.bfloat16))
    err_bf16 = float(jnp.max(jnp.abs(out_bf16 - ref)) / scale)

    assert out_f32.shape == (N, out_node_nf)
    assert out_bf16.shape == (N, out_node_nf)
    assert bool(jnp.all(jnp.isfinite(out_f32)))
    assert bool(jnp.all(jnp.isfinite(out_bf16)))
    assert err_f32 < 2e-3, f"f32 kernel mismatch: rel err {err_f32}"
    assert err_bf16 < 2e-1, f"bf16 kernel mismatch: rel err {err_bf16}"
    print("KERNEL_OK")
</pallas_src>

<mosaic_0001>
module attributes {stable_mosaic.version = 11 : i64} {
  func.func @fused_egnn_kernel(%arg0: memref<8x16xf32, #tpu.memory_space<vmem>>, %arg1: memref<8x3xf32, #tpu.memory_space<vmem>>, %arg2: memref<2x56x8xf32, #tpu.memory_space<vmem>>, %arg3: memref<8x56xf32, #tpu.memory_space<vmem>>, %arg4: memref<8x1xf32, #tpu.memory_space<vmem>>, %arg5: memref<16x32xf32, #tpu.memory_space<vmem>>, %arg6: memref<1x32xf32, #tpu.memory_space<vmem>>, %arg7: memref<32x32xf32, #tpu.memory_space<vmem>>, %arg8: memref<1x32xf32, #tpu.memory_space<vmem>>, %arg9: memref<32x128xf32, #tpu.memory_space<vmem>>, %arg10: memref<1x128xf32, #tpu.memory_space<vmem>>, %arg11: memref<2x192x32xf32, #tpu.memory_space<vmem>>, %arg12: memref<2x32x33xf32, #tpu.memory_space<vmem>>, %arg13: memref<2x32x1xf32, #tpu.memory_space<vmem>>, %arg14: memref<2x8x32xf32, #tpu.memory_space<vmem>>, %arg15: memref<8x128xf32, #tpu.memory_space<vmem>>) attributes {dimension_semantics = [], scalar_prefetch = 0 : i64, scratch_operands = 0 : i64, tpu.core_type = #tpu.core_type<tc>} {
    %c0 = arith.constant 0 : index
    %c0_0 = arith.constant 0 : index
    %c0_1 = arith.constant 0 : index
    %0 = vector.load %arg2[%c0, %c0_0, %c0_1] : memref<2x56x8xf32, #tpu.memory_space<vmem>>, vector<1x56x8xf32>
    %1 = vector.shape_cast %0 : vector<1x56x8xf32> to vector<56x8xf32>
    %c1 = arith.constant 1 : index
    %c0_2 = arith.constant 0 : index
    %c0_3 = arith.constant 0 : index
    %2 = vector.load %arg2[%c1, %c0_2, %c0_3] : memref<2x56x8xf32, #tpu.memory_space<vmem>>, vector<1x56x8xf32>
    %3 = vector.shape_cast %2 : vector<1x56x8xf32> to vector<56x8xf32>
    %c0_4 = arith.constant 0 : index
    %c0_5 = arith.constant 0 : index
    %4 = vector.load %arg3[%c0_4, %c0_5] : memref<8x56xf32, #tpu.memory_space<vmem>>, vector<8x56xf32>
    %c0_6 = arith.constant 0 : index
    %c0_7 = arith.constant 0 : index
    %5 = vector.load %arg4[%c0_6, %c0_7] : memref<8x1xf32, #tpu.memory_space<vmem>>, vector<8x1xf32>
    %c0_8 = arith.constant 0 : index
    %c0_9 = arith.constant 0 : index
    %6 = vector.load %arg0[%c0_8, %c0_9] : memref<8x16xf32, #tpu.memory_space<vmem>>, vector<8x16xf32>
    %c0_10 = arith.constant 0 : index
    %c0_11 = arith.constant 0 : index
    %7 = vector.load %arg5[%c0_10, %c0_11] : memref<16x32xf32, #tpu.memory_space<vmem>>, vector<16x32xf32>
    %cst = arith.constant dense<0.000000e+00> : vector<8x32xf32>
    %8 = tpu.matmul %6, %7, %cst {dimension_numbers = #tpu.dot_dimension_numbers<[1], [0], [0], [1], [0, 0, 1, 1], [], []>} : vector<8x16xf32>, vector<16x32xf32>, vector<8x32xf32> -> vector<8x32xf32>
    %c0_12 = arith.constant 0 : index
    %c0_13 = arith.constant 0 : index
    %9 = vector.load %arg6[%c0_12, %c0_13] : memref<1x32xf32, #tpu.memory_space<vmem>>, vector<1x32xf32>
    %10 = vector.broadcast %9 : vector<1x32xf32> to vector<8x32xf32>
    %11 = arith.addf %8, %10 : vector<8x32xf32>
    %c0_14 = arith.constant 0 : index
    %c0_15 = arith.constant 0 : index
    %12 = vector.load %arg1[%c0_14, %c0_15] : memref<8x3xf32, #tpu.memory_space<vmem>>, vector<8x3xf32>
    %c0_16 = arith.constant 0 : index
    %c0_17 = arith.constant 0 : index
    %c0_18 = arith.constant 0 : index
    %13 = vector.load %arg11[%c0_16, %c0_17, %c0_18] : memref<2x192x32xf32, #tpu.memory_space<vmem>>, vector<1x192x32xf32>
    %14 = vector.shape_cast %13 : vector<1x192x32xf32> to vector<192x32xf32>
    %15 = vector.extract_strided_slice %14 {offsets = [0, 0], sizes = [64, 32], strides = [1, 1]} : vector<192x32xf32> to vector<64x32xf32>
    %16 = vector.extract_strided_slice %14 {offsets = [64, 0], sizes = [32, 32], strides = [1, 1]} : vector<192x32xf32> to vector<32x32xf32>
    %17 = vector.extract_strided_slice %14 {offsets = [96, 0], sizes = [64, 32], strides = [1, 1]} : vector<192x32xf32> to vector<64x32xf32>
    %18 = vector.extract_strided_slice %14 {offsets = [160, 0], sizes = [32, 32], strides = [1, 1]} : vector<192x32xf32> to vector<32x32xf32>
    %c0_19 = arith.constant 0 : index
    %c0_20 = arith.constant 0 : index
    %c0_21 = arith.constant 0 : index
    %19 = vector.load %arg14[%c0_19, %c0_20, %c0_21] : memref<2x8x32xf32, #tpu.memory_space<vmem>>, vector<1x8x32xf32>
    %20 = vector.shape_cast %19 : vector<1x8x32xf32> to vector<8x32xf32>
    %21 = vector.extract_strided_slice %20 {offsets = [0, 0], sizes = [1, 32], strides = [1, 1]} : vector<8x32xf32> to vector<1x32xf32>
    %22 = vector.extract_strided_slice %20 {offsets = [1, 0], sizes = [1, 32], strides = [1, 1]} : vector<8x32xf32> to vector<1x32xf32>
    %23 = vector.extract_strided_slice %20 {offsets = [2, 0], sizes = [1, 32], strides = [1, 1]} : vector<8x32xf32> to vector<1x32xf32>
    %24 = vector.extract_strided_slice %20 {offsets = [3, 0], sizes = [1, 32], strides = [1, 1]} : vector<8x32xf32> to vector<1x32xf32>
    %25 = vector.extract_strided_slice %20 {offsets = [4, 0], sizes = [1, 32], strides = [1, 1]} : vector<8x32xf32> to vector<1x32xf32>
    %26 = vector.extract_strided_slice %20 {offsets = [5, 0], sizes = [1, 1], strides = [1, 1]} : vector<8x32xf32> to vector<1x1xf32>
    %27 = vector.extract_strided_slice %20 {offsets = [6, 0], sizes = [1, 32], strides = [1, 1]} : vector<8x32xf32> to vector<1x32xf32>
    %c0_22 = arith.constant 0 : index
    %c0_23 = arith.constant 0 : index
    %c0_24 = arith.constant 0 : index
    %28 = vector.load %arg12[%c0_22, %c0_23, %c0_24] : memref<2x32x33xf32, #tpu.memory_space<vmem>>, vector<1x32x33xf32>
    %29 = vector.shape_cast %28 : vector<1x32x33xf32> to vector<32x33xf32>
    %c0_25 = arith.constant 0 : index
    %c0_26 = arith.constant 0 : index
    %c0_27 = arith.constant 0 : index
    %30 = vector.load %arg13[%c0_25, %c0_26, %c0_27] : memref<2x32x1xf32, #tpu.memory_space<vmem>>, vector<1x32x1xf32>
    %31 = vector.shape_cast %30 : vector<1x32x1xf32> to vector<32x1xf32>
    %32 = tpu.concatenate %11, %12 in 1 : vector<8x32xf32>, vector<8x3xf32> -> vector<8x35xf32>
    %cst_28 = arith.constant dense<0.000000e+00> : vector<56x35xf32>
    %33 = tpu.matmul %1, %32, %cst_28 {dimension_numbers = #tpu.dot_dimension_numbers<[1], [0], [0], [1], [0, 0, 1, 1], [], []>} : vector<56x8xf32>, vector<8x35xf32>, vector<56x35xf32> -> vector<56x35xf32>
    %cst_29 = arith.constant dense<0.000000e+00> : vector<56x35xf32>
    %34 = tpu.matmul %3, %32, %cst_29 {dimension_numbers = #tpu.dot_dimension_numbers<[1], [0], [0], [1], [0, 0, 1, 1], [], []>} : vector<56x8xf32>, vector<8x35xf32>, vector<56x35xf32> -> vector<56x35xf32>
    %35 = vector.extract_strided_slice %33 {offsets = [0, 0], sizes = [56, 32], strides = [1, 1]} : vector<56x35xf32> to vector<56x32xf32>
    %36 = vector.extract_strided_slice %33 {offsets = [0, 32], sizes = [56, 3], strides = [1, 1]} : vector<56x35xf32> to vector<56x3xf32>
    %37 = vector.extract_strided_slice %34 {offsets = [0, 0], sizes = [56, 32], strides = [1, 1]} : vector<56x35xf32> to vector<56x32xf32>
    %38 = vector.extract_strided_slice %34 {offsets = [0, 32], sizes = [56, 3], strides = [1, 1]} : vector<56x35xf32> to vector<56x3xf32>
    %39 = arith.subf %36, %38 : vector<56x3xf32>
    %40 = arith.mulf %39, %39 : vector<56x3xf32>
    %cst_30 = arith.constant dense<0.000000e+00> : vector<56xf32>
    %41 = vector.multi_reduction <add>, %40, %cst_30 [1] : vector<56x3xf32> to vector<56xf32>
    %42 = vector.shape_cast %41 : vector<56xf32> to vector<56x1xf32>
    %43 = tpu.concatenate %35, %37 in 1 : vector<56x32xf32>, vector<56x32xf32> -> vector<56x64xf32>
    %cst_31 = arith.constant dense<0.000000e+00> : vector<56x32xf32>
    %44 = tpu.matmul %43, %15, %cst_31 {dimension_numbers = #tpu.dot_dimension_numbers<[1], [0], [0], [1], [0, 0, 1, 1], [], []>} : vector<56x64xf32>, vector<64x32xf32>, vector<56x32xf32> -> vector<56x32xf32>
    %45 = vector.broadcast %42 : vector<56x1xf32> to vector<56x32xf32>
    %46 = vector.broadcast %27 : vector<1x32xf32> to vector<56x32xf32>
    %47 = arith.mulf %45, %46 : vector<56x32xf32>
    %48 = arith.addf %44, %47 : vector<56x32xf32>
    %49 = vector.broadcast %21 : vector<1x32xf32> to vector<56x32xf32>
    %50 = arith.addf %48, %49 : vector<56x32xf32>
    %51 = arith.negf %50 : vector<56x32xf32>
    %52 = math.exp %51 : vector<56x32xf32>
    %cst_32 = arith.constant 1.000000e+00 : f32
    %53 = vector.broadcast %cst_32 : f32 to vector<56x32xf32>
    %54 = arith.addf %53, %52 : vector<56x32xf32>
    %55 = arith.divf %53, %54 : vector<56x32xf32>
    %56 = arith.mulf %50, %55 : vector<56x32xf32>
    %cst_33 = arith.constant dense<0.000000e+00> : vector<56x32xf32>
    %57 = tpu.matmul %56, %16, %cst_33 {dimension_numbers = #tpu.dot_dimension_numbers<[1], [0], [0], [1], [0, 0, 1, 1], [], []>} : vector<56x32xf32>, vector<32x32xf32>, vector<56x32xf32> -> vector<56x32xf32>
    %58 = vector.broadcast %22 : vector<1x32xf32> to vector<56x32xf32>
    %59 = arith.addf %57, %58 : vector<56x32xf32>
    %60 = arith.negf %59 : vector<56x32xf32>
    %61 = math.exp %60 : vector<56x32xf32>
    %cst_34 = arith.constant 1.000000e+00 : f32
    %62 = vector.broadcast %cst_34 : f32 to vector<56x32xf32>
    %63 = arith.addf %62, %61 : vector<56x32xf32>
    %64 = arith.divf %62, %63 : vector<56x32xf32>
    %65 = arith.mulf %59, %64 : vector<56x32xf32>
    %cst_35 = arith.constant dense<0.000000e+00> : vector<56x33xf32>
    %66 = tpu.matmul %65, %29, %cst_35 {dimension_numbers = #tpu.dot_dimension_numbers<[1], [0], [0], [1], [0, 0, 1, 1], [], []>} : vector<56x32xf32>, vector<32x33xf32>, vector<56x33xf32> -> vector<56x33xf32>
    %67 = vector.extract_strided_slice %66 {offsets = [0, 0], sizes = [56, 32], strides = [1, 1]} : vector<56x33xf32> to vector<56x32xf32>
    %68 = vector.extract_strided_slice %66 {offsets = [0, 32], sizes = [56, 1], strides = [1, 1]} : vector<56x33xf32> to vector<56x1xf32>
    %69 = vector.broadcast %26 : vector<1x1xf32> to vector<56x1xf32>
    %70 = arith.addf %68, %69 : vector<56x1xf32>
    %71 = arith.negf %70 : vector<56x1xf32>
    %72 = math.exp %71 : vector<56x1xf32>
    %cst_36 = arith.constant 1.000000e+00 : f32
    %73 = vector.broadcast %cst_36 : f32 to vector<56x1xf32>
    %74 = arith.addf %73, %72 : vector<56x1xf32>
    %75 = arith.divf %73, %74 : vector<56x1xf32>
    %76 = vector.broadcast %75 : vector<56x1xf32> to vector<56x32xf32>
    %77 = arith.mulf %65, %76 : vector<56x32xf32>
    %78 = vector.broadcast %75 : vector<56x1xf32> to vector<56x32xf32>
    %79 = arith.mulf %78, %67 : vector<56x32xf32>
    %80 = vector.broadcast %23 : vector<1x32xf32> to vector<56x32xf32>
    %81 = arith.addf %79, %80 : vector<56x32xf32>
    %82 = arith.negf %81 : vector<56x32xf32>
    %83 = math.exp %82 : vector<56x32xf32>
    %cst_37 = arith.constant 1.000000e+00 : f32
    %84 = vector.broadcast %cst_37 : f32 to vector<56x32xf32>
    %85 = arith.addf %84, %83 : vector<56x32xf32>
    %86 = arith.divf %84, %85 : vector<56x32xf32>
    %87 = arith.mulf %81, %86 : vector<56x32xf32>
    %cst_38 = arith.constant dense<0.000000e+00> : vector<56x1xf32>
    %88 = tpu.matmul %87, %31, %cst_38 {dimension_numbers = #tpu.dot_dimension_numbers<[1], [0], [0], [1], [0, 0, 1, 1], [], []>} : vector<56x32xf32>, vector<32x1xf32>, vector<56x1xf32> -> vector<56x1xf32>
    %89 = vector.broadcast %88 : vector<56x1xf32> to vector<56x3xf32>
    %90 = arith.mulf %39, %89 : vector<56x3xf32>
    %91 = tpu.concatenate %77, %90 in 1 : vector<56x32xf32>, vector<56x3xf32> -> vector<56x35xf32>
    %cst_39 = arith.constant dense<0.000000e+00> : vector<8x35xf32>
    %92 = tpu.matmul %4, %91, %cst_39 {dimension_numbers = #tpu.dot_dimension_numbers<[1], [0], [0], [1], [0, 0, 1, 1], [], []>} : vector<8x56xf32>, vector<56x35xf32>, vector<8x35xf32> -> vector<8x35xf32>
    %93 = vector.extract_strided_slice %92 {offsets = [0, 0], sizes = [8, 32], strides = [1, 1]} : vector<8x35xf32> to vector<8x32xf32>
    %94 = vector.extract_strided_slice %92 {offsets = [0, 32], sizes = [8, 3], strides = [1, 1]} : vector<8x35xf32> to vector<8x3xf32>
    %95 = vector.broadcast %5 : vector<8x1xf32> to vector<8x3xf32>
    %96 = arith.mulf %94, %95 : vector<8x3xf32>
    %97 = arith.addf %12, %96 : vector<8x3xf32>
    %98 = tpu.concatenate %11, %93 in 1 : vector<8x32xf32>, vector<8x32xf32> -> vector<8x64xf32>
    %cst_40 = arith.constant dense<0.000000e+00> : vector<8x32xf32>
    %99 = tpu.matmul %98, %17, %cst_40 {dimension_numbers = #tpu.dot_dimension_numbers<[1], [0], [0], [1], [0, 0, 1, 1], [], []>} : vector<8x64xf32>, vector<64x32xf32>, vector<8x32xf32> -> vector<8x32xf32>
    %100 = vector.broadcast %24 : vector<1x32xf32> to vector<8x32xf32>
    %101 = arith.addf %99, %100 : vector<8x32xf32>
    %102 = arith.negf %101 : vector<8x32xf32>
    %103 = math.exp %102 : vector<8x32xf32>
    %cst_41 = arith.constant 1.000000e+00 : f32
    %104 = vector.broadcast %cst_41 : f32 to vector<8x32xf32>
    %105 = arith.addf %104, %103 : vector<8x32xf32>
    %106 = arith.divf %104, %105 : vector<8x32xf32>
    %107 = arith.mulf %101, %106 : vector<8x32xf32>
    %cst_42 = arith.constant dense<0.000000e+00> : vector<8x32xf32>
    %108 = tpu.matmul %107, %18, %cst_42 {dimension_numbers = #tpu.dot_dimension_numbers<[1], [0], [0], [1], [0, 0, 1, 1], [], []>} : vector<8x32xf32>, vector<32x32xf32>, vector<8x32xf32> -> vector<8x32xf32>
    %109 = arith.addf %11, %108 : vector<8x32xf32>
    %110 = vector.broadcast %25 : vector<1x32xf32> to vector<8x32xf32>
    %111 = arith.addf %109, %110 : vector<8x32xf32>
    %c1_43 = arith.constant 1 : index
    %c0_44 = arith.constant 0 : index
    %c0_45 = arith.constant 0 : index
    %112 = vector.load %arg11[%c1_43, %c0_44, %c0_45] : memref<2x192x32xf32, #tpu.memory_space<vmem>>, vector<1x192x32xf32>
    %113 = vector.shape_cast %112 : vector<1x192x32xf32> to vector<192x32xf32>
    %114 = vector.extract_strided_slice %113 {offsets = [0, 0], sizes = [64, 32], strides = [1, 1]} : vector<192x32xf32> to vector<64x32xf32>
    %115 = vector.extract_strided_slice %113 {offsets = [64, 0], sizes = [32, 32], strides = [1, 1]} : vector<192x32xf32> to vector<32x32xf32>
    %116 = vector.extract_strided_slice %113 {offsets = [96, 0], sizes = [64, 32], strides = [1, 1]} : vector<192x32xf32> to vector<64x32xf32>
    %117 = vector.extract_strided_slice %113 {offsets = [160, 0], sizes = [32, 32], strides = [1, 1]} : vector<192x32xf32> to vector<32x32xf32>
    %c1_46 = arith.constant 1 : index
    %c0_47 = arith.constant 0 : index
    %c0_48 = arith.constant 0 : index
    %118 = vector.load %arg14[%c1_46, %c0_47, %c0_48] : memref<2x8x32xf32, #tpu.memory_space<vmem>>, vector<1x8x32xf32>
    %119 = vector.shape_cast %118 : vector<1x8x32xf32> to vector<8x32xf32>
    %120 = vector.extract_strided_slice %119 {offsets = [0, 0], sizes = [1, 32], strides = [1, 1]} : vector<8x32xf32> to vector<1x32xf32>
    %121 = vector.extract_strided_slice %119 {offsets = [1, 0], sizes = [1, 32], strides = [1, 1]} : vector<8x32xf32> to vector<1x32xf32>
    %122 = vector.extract_strided_slice %119 {offsets = [2, 0], sizes = [1, 32], strides = [1, 1]} : vector<8x32xf32> to vector<1x32xf32>
    %123 = vector.extract_strided_slice %119 {offsets = [3, 0], sizes = [1, 32], strides = [1, 1]} : vector<8x32xf32> to vector<1x32xf32>
    %124 = vector.extract_strided_slice %119 {offsets = [4, 0], sizes = [1, 32], strides = [1, 1]} : vector<8x32xf32> to vector<1x32xf32>
    %125 = vector.extract_strided_slice %119 {offsets = [5, 0], sizes = [1, 1], strides = [1, 1]} : vector<8x32xf32> to vector<1x1xf32>
    %126 = vector.extract_strided_slice %119 {offsets = [6, 0], sizes = [1, 32], strides = [1, 1]} : vector<8x32xf32> to vector<1x32xf32>
    %c1_49 = arith.constant 1 : index
    %c0_50 = arith.constant 0 : index
    %c0_51 = arith.constant 0 : index
    %127 = vector.load %arg12[%c1_49, %c0_50, %c0_51] : memref<2x32x33xf32, #tpu.memory_space<vmem>>, vector<1x32x33xf32>
    %128 = vector.shape_cast %127 : vector<1x32x33xf32> to vector<32x33xf32>
    %c1_52 = arith.constant 1 : index
    %c0_53 = arith.constant 0 : index
    %c0_54 = arith.constant 0 : index
    %129 = vector.load %arg13[%c1_52, %c0_53, %c0_54] : memref<2x32x1xf32, #tpu.memory_space<vmem>>, vector<1x32x1xf32>
    %130 = vector.shape_cast %129 : vector<1x32x1xf32> to vector<32x1xf32>
    %131 = tpu.concatenate %111, %97 in 1 : vector<8x32xf32>, vector<8x3xf32> -> vector<8x35xf32>
    %cst_55 = arith.constant dense<0.000000e+00> : vector<56x35xf32>
    %132 = tpu.matmul %1, %131, %cst_55 {dimension_numbers = #tpu.dot_dimension_numbers<[1], [0], [0], [1], [0, 0, 1, 1], [], []>} : vector<56x8xf32>, vector<8x35xf32>, vector<56x35xf32> -> vector<56x35xf32>
    %cst_56 = arith.constant dense<0.000000e+00> : vector<56x35xf32>
    %133 = tpu.matmul %3, %131, %cst_56 {dimension_numbers = #tpu.dot_dimension_numbers<[1], [0], [0], [1], [0, 0, 1, 1], [], []>} : vector<56x8xf32>, vector<8x35xf32>, vector<56x35xf32> -> vector<56x35xf32>
    %134 = vector.extract_strided_slice %132 {offsets = [0, 0], sizes = [56, 32], strides = [1, 1]} : vector<56x35xf32> to vector<56x32xf32>
    %135 = vector.extract_strided_slice %132 {offsets = [0, 32], sizes = [56, 3], strides = [1, 1]} : vector<56x35xf32> to vector<56x3xf32>
    %136 = vector.extract_strided_slice %133 {offsets = [0, 0], sizes = [56, 32], strides = [1, 1]} : vector<56x35xf32> to vector<56x32xf32>
    %137 = vector.extract_strided_slice %133 {offsets = [0, 32], sizes = [56, 3], strides = [1, 1]} : vector<56x35xf32> to vector<56x3xf32>
    %138 = arith.subf %135, %137 : vector<56x3xf32>
    %139 = arith.mulf %138, %138 : vector<56x3xf32>
    %cst_57 = arith.constant dense<0.000000e+00> : vector<56xf32>
    %140 = vector.multi_reduction <add>, %139, %cst_57 [1] : vector<56x3xf32> to vector<56xf32>
    %141 = vector.shape_cast %140 : vector<56xf32> to vector<56x1xf32>
    %142 = tpu.concatenate %134, %136 in 1 : vector<56x32xf32>, vector<56x32xf32> -> vector<56x64xf32>
    %cst_58 = arith.constant dense<0.000000e+00> : vector<56x32xf32>
    %143 = tpu.matmul %142, %114, %cst_58 {dimension_numbers = #tpu.dot_dimension_numbers<[1], [0], [0], [1], [0, 0, 1, 1], [], []>} : vector<56x64xf32>, vector<64x32xf32>, vector<56x32xf32> -> vector<56x32xf32>
    %144 = vector.broadcast %141 : vector<56x1xf32> to vector<56x32xf32>
    %145 = vector.broadcast %126 : vector<1x32xf32> to vector<56x32xf32>
    %146 = arith.mulf %144, %145 : vector<56x32xf32>
    %147 = arith.addf %143, %146 : vector<56x32xf32>
    %148 = vector.broadcast %120 : vector<1x32xf32> to vector<56x32xf32>
    %149 = arith.addf %147, %148 : vector<56x32xf32>
    %150 = arith.negf %149 : vector<56x32xf32>
    %151 = math.exp %150 : vector<56x32xf32>
    %cst_59 = arith.constant 1.000000e+00 : f32
    %152 = vector.broadcast %cst_59 : f32 to vector<56x32xf32>
    %153 = arith.addf %152, %151 : vector<56x32xf32>
    %154 = arith.divf %152, %153 : vector<56x32xf32>
    %155 = arith.mulf %149, %154 : vector<56x32xf32>
    %cst_60 = arith.constant dense<0.000000e+00> : vector<56x32xf32>
    %156 = tpu.matmul %155, %115, %cst_60 {dimension_numbers = #tpu.dot_dimension_numbers<[1], [0], [0], [1], [0, 0, 1, 1], [], []>} : vector<56x32xf32>, vector<32x32xf32>, vector<56x32xf32> -> vector<56x32xf32>
    %157 = vector.broadcast %121 : vector<1x32xf32> to vector<56x32xf32>
    %158 = arith.addf %156, %157 : vector<56x32xf32>
    %159 = arith.negf %158 : vector<56x32xf32>
    %160 = math.exp %159 : vector<56x32xf32>
    %cst_61 = arith.constant 1.000000e+00 : f32
    %161 = vector.broadcast %cst_61 : f32 to vector<56x32xf32>
    %162 = arith.addf %161, %160 : vector<56x32xf32>
    %163 = arith.divf %161, %162 : vector<56x32xf32>
    %164 = arith.mulf %158, %163 : vector<56x32xf32>
    %cst_62 = arith.constant dense<0.000000e+00> : vector<56x33xf32>
    %165 = tpu.matmul %164, %128, %cst_62 {dimension_numbers = #tpu.dot_dimension_numbers<[1], [0], [0], [1], [0, 0, 1, 1], [], []>} : vector<56x32xf32>, vector<32x33xf32>, vector<56x33xf32> -> vector<56x33xf32>
    %166 = vector.extract_strided_slice %165 {offsets = [0, 0], sizes = [56, 32], strides = [1, 1]} : vector<56x33xf32> to vector<56x32xf32>
    %167 = vector.extract_strided_slice %165 {offsets = [0, 32], sizes = [56, 1], strides = [1, 1]} : vector<56x33xf32> to vector<56x1xf32>
    %168 = vector.broadcast %125 : vector<1x1xf32> to vector<56x1xf32>
    %169 = arith.addf %167, %168 : vector<56x1xf32>
    %170 = arith.negf %169 : vector<56x1xf32>
    %171 = math.exp %170 : vector<56x1xf32>
    %cst_63 = arith.constant 1.000000e+00 : f32
    %172 = vector.broadcast %cst_63 : f32 to vector<56x1xf32>
    %173 = arith.addf %172, %171 : vector<56x1xf32>
    %174 = arith.divf %172, %173 : vector<56x1xf32>
    %175 = vector.broadcast %174 : vector<56x1xf32> to vector<56x32xf32>
    %176 = arith.mulf %164, %175 : vector<56x32xf32>
    %177 = vector.broadcast %174 : vector<56x1xf32> to vector<56x32xf32>
    %178 = arith.mulf %177, %166 : vector<56x32xf32>
    %179 = vector.broadcast %122 : vector<1x32xf32> to vector<56x32xf32>
    %180 = arith.addf %178, %179 : vector<56x32xf32>
    %181 = arith.negf %180 : vector<56x32xf32>
    %182 = math.exp %181 : vector<56x32xf32>
    %cst_64 = arith.constant 1.000000e+00 : f32
    %183 = vector.broadcast %cst_64 : f32 to vector<56x32xf32>
    %184 = arith.addf %183, %182 : vector<56x32xf32>
    %185 = arith.divf %183, %184 : vector<56x32xf32>
    %186 = arith.mulf %180, %185 : vector<56x32xf32>
    %cst_65 = arith.constant dense<0.000000e+00> : vector<56x1xf32>
    %187 = tpu.matmul %186, %130, %cst_65 {dimension_numbers = #tpu.dot_dimension_numbers<[1], [0], [0], [1], [0, 0, 1, 1], [], []>} : vector<56x32xf32>, vector<32x1xf32>, vector<56x1xf32> -> vector<56x1xf32>
    %188 = vector.broadcast %187 : vector<56x1xf32> to vector<56x3xf32>
    %189 = arith.mulf %138, %188 : vector<56x3xf32>
    %190 = tpu.concatenate %176, %189 in 1 : vector<56x32xf32>, vector<56x3xf32> -> vector<56x35xf32>
    %cst_66 = arith.constant dense<0.000000e+00> : vector<8x35xf32>
    %191 = tpu.matmul %4, %190, %cst_66 {dimension_numbers = #tpu.dot_dimension_numbers<[1], [0], [0], [1], [0, 0, 1, 1], [], []>} : vector<8x56xf32>, vector<56x35xf32>, vector<8x35xf32> -> vector<8x35xf32>
    %192 = vector.extract_strided_slice %191 {offsets = [0, 0], sizes = [8, 32], strides = [1, 1]} : vector<8x35xf32> to vector<8x32xf32>
    %193 = tpu.concatenate %111, %192 in 1 : vector<8x32xf32>, vector<8x32xf32> -> vector<8x64xf32>
    %cst_67 = arith.constant dense<0.000000e+00> : vector<8x32xf32>
    %194 = tpu.matmul %193, %116, %cst_67 {dimension_numbers = #tpu.dot_dimension_numbers<[1], [0], [0], [1], [0, 0, 1, 1], [], []>} : vector<8x64xf32>, vector<64x32xf32>, vector<8x32xf32> -> vector<8x32xf32>
    %195 = vector.broadcast %123 : vector<1x32xf32> to vector<8x32xf32>
    %196 = arith.addf %194, %195 : vector<8x32xf32>
    %197 = arith.negf %196 : vector<8x32xf32>
    %198 = math.exp %197 : vector<8x32xf32>
    %cst_68 = arith.constant 1.000000e+00 : f32
    %199 = vector.broadcast %cst_68 : f32 to vector<8x32xf32>
    %200 = arith.addf %199, %198 : vector<8x32xf32>
    %201 = arith.divf %199, %200 : vector<8x32xf32>
    %202 = arith.mulf %196, %201 : vector<8x32xf32>
    %cst_69 = arith.constant dense<0.000000e+00> : vector<8x32xf32>
    %203 = tpu.matmul %202, %117, %cst_69 {dimension_numbers = #tpu.dot_dimension_numbers<[1], [0], [0], [1], [0, 0, 1, 1], [], []>} : vector<8x32xf32>, vector<32x32xf32>, vector<8x32xf32> -> vector<8x32xf32>
    %204 = arith.addf %111, %203 : vector<8x32xf32>
    %205 = vector.broadcast %124 : vector<1x32xf32> to vector<8x32xf32>
    %206 = arith.addf %204, %205 : vector<8x32xf32>
    %c0_70 = arith.constant 0 : index
    %c0_71 = arith.constant 0 : index
    %207 = vector.load %arg7[%c0_70, %c0_71] : memref<32x32xf32, #tpu.memory_space<vmem>>, vector<32x32xf32>
    %cst_72 = arith.constant dense<0.000000e+00> : vector<8x32xf32>
    %208 = tpu.matmul %206, %207, %cst_72 {dimension_numbers = #tpu.dot_dimension_numbers<[1], [0], [0], [1], [0, 0, 1, 1], [], []>} : vector<8x32xf32>, vector<32x32xf32>, vector<8x32xf32> -> vector<8x32xf32>
    %c0_73 = arith.constant 0 : index
    %c0_74 = arith.constant 0 : index
    %209 = vector.load %arg8[%c0_73, %c0_74] : memref<1x32xf32, #tpu.memory_space<vmem>>, vector<1x32xf32>
    %210 = vector.broadcast %209 : vector<1x32xf32> to vector<8x32xf32>
    %211 = arith.addf %208, %210 : vector<8x32xf32>
    %cst_75 = arith.constant 0.000000e+00 : f32
    %212 = vector.broadcast %cst_75 : f32 to vector<8x32xf32>
    %213 = arith.maximumf %211, %212 : vector<8x32xf32>
    %c0_76 = arith.constant 0 : index
    %c0_77 = arith.constant 0 : index
    %214 = vector.load %arg9[%c0_76, %c0_77] : memref<32x128xf32, #tpu.memory_space<vmem>>, vector<32x128xf32>
    %cst_78 = arith.constant dense<0.000000e+00> : vector<8x128xf32>
    %215 = tpu.matmul %213, %214, %cst_78 {dimension_numbers = #tpu.dot_dimension_numbers<[1], [0], [0], [1], [0, 0, 1, 1], [], []>} : vector<8x32xf32>, vector<32x128xf32>, vector<8x128xf32> -> vector<8x128xf32>
    %c0_79 = arith.constant 0 : index
    %c0_80 = arith.constant 0 : index
    %216 = vector.load %arg10[%c0_79, %c0_80] : memref<1x128xf32, #tpu.memory_space<vmem>>, vector<1x128xf32>
    %217 = vector.broadcast %216 : vector<1x128xf32> to vector<8x128xf32>
    %218 = arith.addf %215, %217 : vector<8x128xf32>
    %c0_81 = arith.constant 0 : index
    %c0_82 = arith.constant 0 : index
    %219 = vector.load %arg15[%c0_81, %c0_82] : memref<8x128xf32, #tpu.memory_space<vmem>>, vector<8x128xf32>
    tpu.vector_store %arg15[%c0_81, %c0_82], %218 {strides = array<i32>} : memref<8x128xf32, #tpu.memory_space<vmem>>, vector<8x128xf32>,
    return
  }
}

</mosaic_0001>

<llo_original>
// kernel: tpu_custom_call.1
$region0: #{tpu_custom_call.1}
  #allocation0 [shape = 'u32[]', space=smem, size = 0x4, offset = 0x4, fixed_abs, tag = 'smem constant byte address 0x4 - core index']
  #allocation1 [shape = 'u32[144,128]{1,0:T(1,128)}', space=vmem, size = 0x12000, scoped, tag = 'internal scratch']
  %s0 = inlined_call_operand.vmem [shape: f32[8,16], index: 0, kind: input, shape index: {}]
  %s1 = inlined_call_operand.vmem [shape: f32[8,3], index: 1, kind: input, shape index: {}]
  %s2 = inlined_call_operand.vmem [shape: f32[2,56,8], index: 2, kind: input, shape index: {}]
  %s3 = inlined_call_operand.vmem [shape: f32[8,56], index: 3, kind: input, shape index: {}]
  %s4 = inlined_call_operand.vmem [shape: f32[8,1], index: 4, kind: input, shape index: {}]
  %s5 = inlined_call_operand.vmem [shape: f32[16,32], index: 5, kind: input, shape index: {}]
  %s6 = inlined_call_operand.vmem [shape: f32[1,32], index: 6, kind: input, shape index: {}]
  %s7 = inlined_call_operand.vmem [shape: f32[32,32], index: 7, kind: input, shape index: {}]
  %s8 = inlined_call_operand.vmem [shape: f32[1,32], index: 8, kind: input, shape index: {}]
  %s9 = inlined_call_operand.vmem [shape: f32[32,128], index: 9, kind: input, shape index: {}]
  %s10 = inlined_call_operand.vmem [shape: f32[1,128], index: 10, kind: input, shape index: {}]
  %s11 = inlined_call_operand.vmem [shape: f32[2,192,32], index: 11, kind: input, shape index: {}]
  %s12 = inlined_call_operand.vmem [shape: f32[2,32,33], index: 12, kind: input, shape index: {}]
  %s13 = inlined_call_operand.vmem [shape: f32[2,32,1], index: 13, kind: input, shape index: {}]
  %s14 = inlined_call_operand.vmem [shape: f32[2,8,32], index: 14, kind: input, shape index: {}]
  %s15 = inlined_call_operand.hbm [shape: f32[8,128], index: 15, kind: output, shape index: {}]
  %s16 = sld [smem:[#allocation0]]
  $region70: #{tpu_custom_call.1} parent=0
    _
  %s18 = ssub.s32 1, %s16
  %s19 = scalar_select 0, %s18, %s16
  $region1: #{tpu_custom_call.1} parent=0
    #allocation2 [shape = 'u8[4096]{0}', space=vmem, size = 0x1000, scoped, tag = 'output window, operand 0, single buffered']
    #allocation3 [shape = 's32[1]{0}', space=sflag, size = 0x4, scoped, tag = 'scoped memory for tpu_custom_call.1']
    %20 = vsyncpa [#allocation3], 0
    // Predicated region
    $region2: #{tpu_custom_call.1} parent=1 // pred_check
      _
    $region3: #{tpu_custom_call.1} parent=1 // pred_check_branch
      %22 = sbr.rel (0) target = $region5
    $region4: #{tpu_custom_call.1} parent=1 // pred_region
      _
    $region5: #{tpu_custom_call.1} parent=1 // pred_fallthru
      _
    // Predicated region
    $region6: #{tpu_custom_call.1} parent=1 // pred_check
      _
    $region7: #{tpu_custom_call.1} parent=1 // pred_check_branch
      %24 = sbr.rel (0) target = $region9
    $region8: #{tpu_custom_call.1} parent=1 // pred_region
      _
    $region9: #{tpu_custom_call.1} parent=1 // pred_fallthru
      _
    // Predicated region
    $region10: #{tpu_custom_call.1} parent=1 // pred_check
      _
    $region11: #{tpu_custom_call.1} parent=1 // pred_check_branch
      %26 = sbr.rel (0) target = $region13
    $region12: #{tpu_custom_call.1} parent=1 // pred_region
      _
    $region13: #{tpu_custom_call.1} parent=1 // pred_fallthru
      _
    // Predicated region
    $region14: #{tpu_custom_call.1} parent=1 // pred_check
      _
    $region15: #{tpu_custom_call.1} parent=1 // pred_check_branch
      %28 = sbr.rel (0) target = $region17
    $region16: #{tpu_custom_call.1} parent=1 // pred_region
      _
    $region17: #{tpu_custom_call.1} parent=1 // pred_fallthru
      _
    // Predicated region
    $region18: #{tpu_custom_call.1} parent=1 // pred_check
      _
    $region19: #{tpu_custom_call.1} parent=1 // pred_check_branch
      %30 = sbr.rel (0) target = $region21
    $region20: #{tpu_custom_call.1} parent=1 // pred_region
      _
    $region21: #{tpu_custom_call.1} parent=1 // pred_fallthru
      _
    // Predicated region
    $region22: #{tpu_custom_call.1} parent=1 // pred_check
      _
    $region23: #{tpu_custom_call.1} parent=1 // pred_check_branch
      %32 = sbr.rel (0) target = $region25
    $region24: #{tpu_custom_call.1} parent=1 // pred_region
      _
    $region25: #{tpu_custom_call.1} parent=1 // pred_fallthru
      _
    // Predicated region
    $region26: #{tpu_custom_call.1} parent=1 // pred_check
      _
    $region27: #{tpu_custom_call.1} parent=1 // pred_check_branch
      %34 = sbr.rel (0) target = $region29
    $region28: #{tpu_custom_call.1} parent=1 // pred_region
      _
    $region29: #{tpu_custom_call.1} parent=1 // pred_fallthru
      _
    // Predicated region
    $region30: #{tpu_custom_call.1} parent=1 // pred_check
      _
    $region31: #{tpu_custom_call.1} parent=1 // pred_check_branch
      %36 = sbr.rel (0) target = $region33
    $region32: #{tpu_custom_call.1} parent=1 // pred_region
      _
    $region33: #{tpu_custom_call.1} parent=1 // pred_fallthru
      _
    // Predicated region
    $region34: #{tpu_custom_call.1} parent=1 // pred_check
      _
    $region35: #{tpu_custom_call.1} parent=1 // pred_check_branch
      %38 = sbr.rel (0) target = $region37
    $region36: #{tpu_custom_call.1} parent=1 // pred_region
      _
    $region37: #{tpu_custom_call.1} parent=1 // pred_fallthru
      _
    // Predicated region
    $region38: #{tpu_custom_call.1} parent=1 // pred_check
      _
    $region39: #{tpu_custom_call.1} parent=1 // pred_check_branch
      %40 = sbr.rel (0) target = $region41
    $region40: #{tpu_custom_call.1} parent=1 // pred_region
      _
    $region41: #{tpu_custom_call.1} parent=1 // pred_fallthru
      _
    // Predicated region
    $region42: #{tpu_custom_call.1} parent=1 // pred_check
      _
    $region43: #{tpu_custom_call.1} parent=1 // pred_check_branch
      %42 = sbr.rel (0) target = $region45
    $region44: #{tpu_custom_call.1} parent=1 // pred_region
      _
    $region45: #{tpu_custom_call.1} parent=1 // pred_fallthru
      _
    // Predicated region
    $region46: #{tpu_custom_call.1} parent=1 // pred_check
      _
    $region47: #{tpu_custom_call.1} parent=1 // pred_check_branch
      %44 = sbr.rel (0) target = $region49
    $region48: #{tpu_custom_call.1} parent=1 // pred_region
      _
    $region49: #{tpu_custom_call.1} parent=1 // pred_fallthru
      _
    // Predicated region
    $region50: #{tpu_custom_call.1} parent=1 // pred_check
      _
    $region51: #{tpu_custom_call.1} parent=1 // pred_check_branch
      %46 = sbr.rel (0) target = $region53
    $region52: #{tpu_custom_call.1} parent=1 // pred_region
      _
    $region53: #{tpu_custom_call.1} parent=1 // pred_fallthru
      _
    // Predicated region
    $region54: #{tpu_custom_call.1} parent=1 // pred_check
      _
    $region55: #{tpu_custom_call.1} parent=1 // pred_check_branch
      %48 = sbr.rel (0) target = $region57
    $region56: #{tpu_custom_call.1} parent=1 // pred_region
      _
    $region57: #{tpu_custom_call.1} parent=1 // pred_fallthru
      _
    // Predicated region
    $region58: #{tpu_custom_call.1} parent=1 // pred_check
      _
    $region59: #{tpu_custom_call.1} parent=1 // pred_check_branch
      %50 = sbr.rel (0) target = $region61
    $region60: #{tpu_custom_call.1} parent=1 // pred_region
      _
    $region61: #{tpu_custom_call.1} parent=1 // pred_fallthru
      _
    %v51 = vld [vmem:[%s2] sm:$0xff]
    %v52 = vld [vmem:[%s2 + $0x8] sm:$0xff]
    %v53 = vld [vmem:[%s2 + $0x10] sm:$0xff]
    %v54 = vld [vmem:[%s2 + $0x18] sm:$0xff]
    %v55 = vld [vmem:[%s2 + $0x20] sm:$0xff]
    %v56 = vld [vmem:[%s2 + $0x28] sm:$0xff]
    %v57 = vld [vmem:[%s2 + $0x30] sm:$0xff]
    %s58 = scalar_lea.vmem %s2, 56
    %v59 = vld [vmem:[%s58] sm:$0xff]
    %v60 = vld [vmem:[%s58 + $0x8] sm:$0xff]
    %v61 = vld [vmem:[%s58 + $0x10] sm:$0xff]
    %v62 = vld [vmem:[%s58 + $0x18] sm:$0xff]
    %v63 = vld [vmem:[%s58 + $0x20] sm:$0xff]
    %v64 = vld [vmem:[%s58 + $0x28] sm:$0xff]
    %v65 = vld [vmem:[%s58 + $0x30] sm:$0xff]
    %v66 = vld [vmem:[%s3] sm:$0xff]
    %v67 = vld [vmem:[%s4] sm:$0xff]
    %v68 = vld [vmem:[%s0] sm:$0xff]
    %v69 = vld [vmem:[%s5] sm:$0xff]
    %v70 = vld [vmem:[%s5 + $0x8] sm:$0xff]
    %v71 = vld [vmem:[%s6] sm:$0x1]
    %v73 = vlaneseq
    %v74 = vshrl.u32 %v73, 7
    %v75 = vsub.s32 0, %v74
    %v76 = vrot.slane %v71, %v75
    %vm78 = vcmask 130048
    %v80 = vsel %vm78, %v68, 0
    %82 = vmatprep.subr.mxu0 0.0
    %83 = vmatpush1.msra.mxu0 %v69
    %84 = vmatprep.subr.mxu0 0.0
    %85 = vmatpush1.msra.mxu0 %v70
    %86 = vmatprep.subr.mxu0 0.0
    %87 = vmatpush1.msra.mxu0 0.0
    %88 = vmatprep.subr.mxu0 0.0
    %89 = vmatpush1.msra.mxu0 0.0
    %90 = vmatprep.subr.mxu0 0.0
    %91 = vmatpush1.msra.mxu0 0.0
    %92 = vmatprep.subr.mxu0 0.0
    %93 = vmatpush1.msra.mxu0 0.0
    %94 = vmatprep.subr.mxu0 0.0
    %95 = vmatpush1.msra.mxu0 0.0
    %96 = vmatprep.subr.mxu0 0.0
    %97 = vmatpush1.msra.mxu0 0.0
    %98 = vmatprep.subr.mxu0 0.0
    %99 = vmatpush1.msra.mxu0 0.0
    %100 = vmatprep.subr.mxu0 0.0
    %101 = vmatpush1.msra.mxu0 0.0
    %102 = vmatprep.subr.mxu0 0.0
    %103 = vmatpush1.msra.mxu0 0.0
    %104 = vmatprep.subr.mxu0 0.0
    %105 = vmatpush1.msra.mxu0 0.0
    %106 = vmatprep.subr.mxu0 0.0
    %107 = vmatpush1.msra.mxu0 0.0
    %108 = vmatprep.subr.mxu0 0.0
    %109 = vmatpush1.msra.mxu0 0.0
    %110 = vmatprep.subr.mxu0 0.0
    %111 = vmatpush1.msra.mxu0 0.0
    %112 = vmatprep.subr.mxu0 0.0
    %113 = vmatpush1.msra.mxu0 0.0
    %114 = vmatprep.subr.mxu0 0.0
    %115 = vmatpush1.msra.mxu0 0.0
    %116 = vmatprep.subr.mxu0 0.0
    %117 = vmatpush1.msra.mxu0 0.0
    %118 = vmatprep.subr.mxu0 0.0
    %119 = vmatpush1.msra.mxu0 0.0
    %120 = vmatprep.subr.mxu0 0.0
    %121 = vmatpush1.msra.mxu0 0.0
    %122 = vmatprep.subr.mxu0 0.0
    %123 = vmatpush1.msra.mxu0 0.0
    %124 = vmatprep.subr.mxu0 0.0
    %125 = vmatpush1.msra.mxu0 0.0
    %126 = vmatprep.subr.mxu0 0.0
    %127 = vmatpush1.msra.mxu0 0.0
    %128 = vmatprep.subr.mxu0 0.0
    %129 = vmatpush1.msra.mxu0 0.0
    %130 = vmatprep.subr.mxu0 0.0
    %131 = vmatpush1.msra.mxu0 0.0
    %132 = vmatprep.subr.mxu0 0.0
    %133 = vmatpush1.msra.mxu0 0.0
    %134 = vmatprep.subr.mxu0 0.0
    %135 = vmatpush1.msra.mxu0 0.0
    %136 = vmatprep.subr.mxu0 0.0
    %137 = vmatpush1.msra.mxu0 0.0
    %138 = vmatprep.subr.mxu0 0.0
    %139 = vmatpush1.msra.mxu0 0.0
    %140 = vmatprep.subr.mxu0 0.0
    %141 = vmatpush1.msra.mxu0 0.0
    %142 = vmatprep.subr.mxu0 0.0
    %143 = vmatpush1.msra.mxu0 0.0
    %144 = vmatprep.subr.mxu0 0.0
    %145 = vmatpush1.msra.mxu0 0.0
    %146 = vmatprep.mubr.f32.mxu0 0.0
    %147 = vmatmul.mubr.f32.gmra.mrb[0].mxu0 %v80
    %v148 = vpop.f32.mrb[0].mxu0
    %v149 = vadd.f32 %v76, %v148
    %v150 = vpop.f32.mrb[0].mxu0
    %151 = vdwg.mxu0
    %v152 = vld [vmem:[%s1] sm:$0xff]
    %v153 = vld [vmem:[%s11] sm:$0xff]
    %v154 = vld [vmem:[%s11 + $0x8] sm:$0xff]
    %v155 = vld [vmem:[%s11 + $0x10] sm:$0xff]
    %v156 = vld [vmem:[%s11 + $0x18] sm:$0xff]
    %v157 = vld [vmem:[%s11 + $0x20] sm:$0xff]
    %v158 = vld [vmem:[%s11 + $0x28] sm:$0xff]
    %v159 = vld [vmem:[%s11 + $0x30] sm:$0xff]
    %v160 = vld [vmem:[%s11 + $0x38] sm:$0xff]
    %v161 = vld [vmem:[%s11 + $0x40] sm:$0xff]
    %v162 = vld [vmem:[%s11 + $0x48] sm:$0xff]
    %v163 = vld [vmem:[%s11 + $0x50] sm:$0xff]
    %v164 = vld [vmem:[%s11 + $0x58] sm:$0xff]
    %v165 = vld [vmem:[%s11 + $0x60] sm:$0xff]
    %v166 = vld [vmem:[%s11 + $0x68] sm:$0xff]
    %v167 = vld [vmem:[%s11 + $0x70] sm:$0xff]
    %v168 = vld [vmem:[%s11 + $0x78] sm:$0xff]
    %v169 = vld [vmem:[%s11 + $0x80] sm:$0xff]
    %v170 = vld [vmem:[%s11 + $0x88] sm:$0xff]
    %v171 = vld [vmem:[%s11 + $0x90] sm:$0xff]
    %v172 = vld [vmem:[%s11 + $0x98] sm:$0xff]
    %v173 = vld [vmem:[%s11 + $0xa0] sm:$0xff]
    %v174 = vld [vmem:[%s11 + $0xa8] sm:$0xff]
    %v175 = vld [vmem:[%s11 + $0xb0] sm:$0xff]
    %v176 = vld [vmem:[%s11 + $0xb8] sm:$0xff]
    %v177 = vld [vmem:[%s14] sm:$0xff]
    %v178 = vld [vmem:[%s12] sm:$0xff]
    %v179 = vld [vmem:[%s12 + $0x8] sm:$0xff]
    %v180 = vld [vmem:[%s12 + $0x10] sm:$0xff]
    %v181 = vld [vmem:[%s12 + $0x18] sm:$0xff]
    %v182 = vld [vmem:[%s13] sm:$0xff]
    %v183 = vld [vmem:[%s13 + $0x8] sm:$0xff]
    %v184 = vld [vmem:[%s13 + $0x10] sm:$0xff]
    %v185 = vld [vmem:[%s13 + $0x18] sm:$0xff]
    %187 = vrot.lane.b32.xlu0 %v152, 32
    %v188 = vpop.permute.xlu0 %187
    %vm190 = vcmask 261120
    %v191 = vsel %vm190, %v149, %v188
    %vm192 = vcmask 64512
    %v194 = vsel %vm192, %v51, 0
    %v197 = vsel %vm192, %v52, 0
    %v200 = vsel %vm192, %v53, 0
    %v203 = vsel %vm192, %v54, 0
    %v206 = vsel %vm192, %v55, 0
    %v209 = vsel %vm192, %v56, 0
    %v212 = vsel %vm192, %v57, 0
    %214 = vmatprep.subr.mxu0 0.0
    %215 = vmatpush1.msra.mxu0 %v191
    %216 = vmatprep.subr.mxu0 0.0
    %217 = vmatpush1.msra.mxu0 0.0
    %218 = vmatprep.subr.mxu0 0.0
    %219 = vmatpush1.msra.mxu0 0.0
    %220 = vmatprep.subr.mxu0 0.0
    %221 = vmatpush1.msra.mxu0 0.0
    %222 = vmatprep.subr.mxu0 0.0
    %223 = vmatpush1.msra.mxu0 0.0
    %224 = vmatprep.subr.mxu0 0.0
    %225 = vmatpush1.msra.mxu0 0.0
    %226 = vmatprep.subr.mxu0 0.0
    %227 = vmatpush1.msra.mxu0 0.0
    %228 = vmatprep.subr.mxu0 0.0
    %229 = vmatpush1.msra.mxu0 0.0
    %230 = vmatprep.subr.mxu0 0.0
    %231 = vmatpush1.msra.mxu0 0.0
    %232 = vmatprep.subr.mxu0 0.0
    %233 = vmatpush1.msra.mxu0 0.0
    %234 = vmatprep.subr.mxu0 0.0
    %235 = vmatpush1.msra.mxu0 0.0
    %236 = vmatprep.subr.mxu0 0.0
    %237 = vmatpush1.msra.mxu0 0.0
    %238 = vmatprep.subr.mxu0 0.0
    %239 = vmatpush1.msra.mxu0 0.0
    %240 = vmatprep.subr.mxu0 0.0
    %241 = vmatpush1.msra.mxu0 0.0
    %242 = vmatprep.subr.mxu0 0.0
    %243 = vmatpush1.msra.mxu0 0.0
    %244 = vmatprep.subr.mxu0 0.0
    %245 = vmatpush1.msra.mxu0 0.0
    %246 = vmatprep.subr.mxu0 0.0
    %247 = vmatpush1.msra.mxu0 0.0
    %248 = vmatprep.subr.mxu0 0.0
    %249 = vmatpush1.msra.mxu0 0.0
    %250 = vmatprep.subr.mxu0 0.0
    %251 = vmatpush1.msra.mxu0 0.0
    %252 = vmatprep.subr.mxu0 0.0
    %253 = vmatpush1.msra.mxu0 0.0
    %254 = vmatprep.subr.mxu0 0.0
    %255 = vmatpush1.msra.mxu0 0.0
    %256 = vmatprep.subr.mxu0 0.0
    %257 = vmatpush1.msra.mxu0 0.0
    %258 = vmatprep.subr.mxu0 0.0
    %259 = vmatpush1.msra.mxu0 0.0
    %260 = vmatprep.subr.mxu0 0.0
    %261 = vmatpush1.msra.mxu0 0.0
    %262 = vmatprep.subr.mxu0 0.0
    %263 = vmatpush1.msra.mxu0 0.0
    %264 = vmatprep.subr.mxu0 0.0
    %265 = vmatpush1.msra.mxu0 0.0
    %266 = vmatprep.subr.mxu0 0.0
    %267 = vmatpush1.msra.mxu0 0.0
    %268 = vmatprep.subr.mxu0 0.0
    %269 = vmatpush1.msra.mxu0 0.0
    %270 = vmatprep.subr.mxu0 0.0
    %271 = vmatpush1.msra.mxu0 0.0
    %272 = vmatprep.subr.mxu0 0.0
    %273 = vmatpush1.msra.mxu0 0.0
    %274 = vmatprep.subr.mxu0 0.0
    %275 = vmatpush1.msra.mxu0 0.0
    %276 = vmatprep.subr.mxu0 0.0
    %277 = vmatpush1.msra.mxu0 0.0
    %278 = vmatprep.mubr.f32.mxu0 0.0
    %279 = vmatmul.mubr.f32.gmra.mrb[0].mxu0 %v194
    %v280 = vpop.f32.mrb[0].mxu0
    %v281 = vadd.f32 0.0, %v280
    %v282 = vpop.f32.mrb[0].mxu0
    %283 = vmatprep.mubr.f32.mxu0 0.0
    %284 = vmatmul.mubr.f32.gmra.mrb[0].mxu0 %v197
    %v285 = vpop.f32.mrb[0].mxu0
    %v286 = vadd.f32 0.0, %v285
    %v287 = vpop.f32.mrb[0].mxu0
    %288 = vmatprep.mubr.f32.mxu0 0.0
    %289 = vmatmul.mubr.f32.gmra.mrb[0].mxu0 %v200
    %v290 = vpop.f32.mrb[0].mxu0
    %v291 = vadd.f32 0.0, %v290
    %v292 = vpop.f32.mrb[0].mxu0
    %293 = vmatprep.mubr.f32.mxu0 0.0
    %294 = vmatmul.mubr.f32.gmra.mrb[0].mxu0 %v203
    %v295 = vpop.f32.mrb[0].mxu0
    %v296 = vadd.f32 0.0, %v295
    %v297 = vpop.f32.mrb[0].mxu0
    %298 = vmatprep.mubr.f32.mxu0 0.0
    %299 = vmatmul.mubr.f32.gmra.mrb[0].mxu0 %v206
    %v300 = vpop.f32.mrb[0].mxu0
    %v301 = vadd.f32 0.0, %v300
    %v302 = vpop.f32.mrb[0].mxu0
    %303 = vmatprep.mubr.f32.mxu0 0.0
    %304 = vmatmul.mubr.f32.gmra.mrb[0].mxu0 %v209
    %v305 = vpop.f32.mrb[0].mxu0
    %v306 = vadd.f32 0.0, %v305
    %v307 = vpop.f32.mrb[0].mxu0
    %308 = vmatprep.mubr.f32.mxu0 0.0
    %309 = vmatmul.mubr.f32.gmra.mrb[0].mxu0 %v212
    %v310 = vpop.f32.mrb[0].mxu0
    %v311 = vadd.f32 0.0, %v310
    %v312 = vpop.f32.mrb[0].mxu0
    %313 = vdwg.mxu0
    %v315 = vsel %vm192, %v59, 0
    %v318 = vsel %vm192, %v60, 0
    %v321 = vsel %vm192, %v61, 0
    %v324 = vsel %vm192, %v62, 0
    %v327 = vsel %vm192, %v63, 0
    %v330 = vsel %vm192, %v64, 0
    %v333 = vsel %vm192, %v65, 0
    %335 = vmatprep.subr.mxu0 0.0
    %336 = vmatpush1.msra.mxu0 %v191
    %337 = vmatprep.subr.mxu0 0.0
    %338 = vmatpush1.msra.mxu0 0.0
    %339 = vmatprep.subr.mxu0 0.0
    %340 = vmatpush1.msra.mxu0 0.0
    %341 = vmatprep.subr.mxu0 0.0
    %342 = vmatpush1.msra.mxu0 0.0
    %343 = vmatprep.subr.mxu0 0.0
    %344 = vmatpush1.msra.mxu0 0.0
    %345 = vmatprep.subr.mxu0 0.0
    %346 = vmatpush1.msra.mxu0 0.0
    %347 = vmatprep.subr.mxu0 0.0
    %348 = vmatpush1.msra.mxu0 0.0
    %349 = vmatprep.subr.mxu0 0.0
    %350 = vmatpush1.msra.mxu0 0.0
    %351 = vmatprep.subr.mxu0 0.0
    %352 = vmatpush1.msra.mxu0 0.0
    %353 = vmatprep.subr.mxu0 0.0
    %354 = vmatpush1.msra.mxu0 0.0
    %355 = vmatprep.subr.mxu0 0.0
    %356 = vmatpush1.msra.mxu0 0.0
    %357 = vmatprep.subr.mxu0 0.0
    %358 = vmatpush1.msra.mxu0 0.0
    %359 = vmatprep.subr.mxu0 0.0
    %360 = vmatpush1.msra.mxu0 0.0
    %361 = vmatprep.subr.mxu0 0.0
    %362 = vmatpush1.msra.mxu0 0.0
    %363 = vmatprep.subr.mxu0 0.0
    %364 = vmatpush1.msra.mxu0 0.0
    %365 = vmatprep.subr.mxu0 0.0
    %366 = vmatpush1.msra.mxu0 0.0
    %367 = vmatprep.subr.mxu0 0.0
    %368 = vmatpush1.msra.mxu0 0.0
    %369 = vmatprep.subr.mxu0 0.0
    %370 = vmatpush1.msra.mxu0 0.0
    %371 = vmatprep.subr.mxu0 0.0
    %372 = vmatpush1.msra.mxu0 0.0
    %373 = vmatprep.subr.mxu0 0.0
    %374 = vmatpush1.msra.mxu0 0.0
    %375 = vmatprep.subr.mxu0 0.0
    %376 = vmatpush1.msra.mxu0 0.0
    %377 = vmatprep.subr.mxu0 0.0
    %378 = vmatpush1.msra.mxu0 0.0
    %379 = vmatprep.subr.mxu0 0.0
    %380 = vmatpush1.msra.mxu0 0.0
    %381 = vmatprep.subr.mxu0 0.0
    %382 = vmatpush1.msra.mxu0 0.0
    %383 = vmatprep.subr.mxu0 0.0
    %384 = vmatpush1.msra.mxu0 0.0
    %385 = vmatprep.subr.mxu0 0.0
    %386 = vmatpush1.msra.mxu0 0.0
    %387 = vmatprep.subr.mxu0 0.0
    %388 = vmatpush1.msra.mxu0 0.0
    %389 = vmatprep.subr.mxu0 0.0
    %390 = vmatpush1.msra.mxu0 0.0
    %391 = vmatprep.subr.mxu0 0.0
    %392 = vmatpush1.msra.mxu0 0.0
    %393 = vmatprep.subr.mxu0 0.0
    %394 = vmatpush1.msra.mxu0 0.0
    %395 = vmatprep.subr.mxu0 0.0
    %396 = vmatpush1.msra.mxu0 0.0
    %397 = vmatprep.subr.mxu0 0.0
    %398 = vmatpush1.msra.mxu0 0.0
    %399 = vmatprep.mubr.f32.mxu0 0.0
    %400 = vmatmul.mubr.f32.gmra.mrb[0].mxu0 %v315
    %v401 = vpop.f32.mrb[0].mxu0
    %v402 = vadd.f32 0.0, %v401
    %v403 = vpop.f32.mrb[0].mxu0
    %404 = vmatprep.mubr.f32.mxu0 0.0
    %405 = vmatmul.mubr.f32.gmra.mrb[0].mxu0 %v318
    %v406 = vpop.f32.mrb[0].mxu0
    %v407 = vadd.f32 0.0, %v406
    %v408 = vpop.f32.mrb[0].mxu0
    %409 = vmatprep.mubr.f32.mxu0 0.0
    %410 = vmatmul.mubr.f32.gmra.mrb[0].mxu0 %v321
    %v411 = vpop.f32.mrb[0].mxu0
    %v412 = vadd.f32 0.0, %v411
    %v413 = vpop.f32.mrb[0].mxu0
    %414 = vmatprep.mubr.f32.mxu0 0.0
    %415 = vmatmul.mubr.f32.gmra.mrb[0].mxu0 %v324
    %v416 = vpop.f32.mrb[0].mxu0
    %v417 = vadd.f32 0.0, %v416
    %v418 = vpop.f32.mrb[0].mxu0
    %419 = vmatprep.mubr.f32.mxu0 0.0
    %420 = vmatmul.mubr.f32.gmra.mrb[0].mxu0 %v327
    %v421 = vpop.f32.mrb[0].mxu0
    %v422 = vadd.f32 0.0, %v421
    %v423 = vpop.f32.mrb[0].mxu0
    %424 = vmatprep.mubr.f32.mxu0 0.0
    %425 = vmatmul.mubr.f32.gmra.mrb[0].mxu0 %v330
    %v426 = vpop.f32.mrb[0].mxu0
    %v427 = vadd.f32 0.0, %v426
    %v428 = vpop.f32.mrb[0].mxu0
    %429 = vmatprep.mubr.f32.mxu0 0.0
    %430 = vmatmul.mubr.f32.gmra.mrb[0].mxu0 %v333
    %v431 = vpop.f32.mrb[0].mxu0
    %v432 = vadd.f32 0.0, %v431
    %v433 = vpop.f32.mrb[0].mxu0
    %434 = vdwg.mxu0
    %v435 = vsub.f32 %v281, %v402
    %v436 = vsub.f32 %v286, %v407
    %v437 = vsub.f32 %v291, %v412
    %v438 = vsub.f32 %v296, %v417
    %v439 = vsub.f32 %v301, %v422
    %v440 = vsub.f32 %v306, %v427
    %v441 = vsub.f32 %v311, %v432
    %v442 = vmul.f32 %v435, %v435
    %v443 = vmul.f32 %v436, %v436
    %v444 = vmul.f32 %v437, %v437
    %v445 = vmul.f32 %v438, %v438
    %v446 = vmul.f32 %v439, %v439
    %v447 = vmul.f32 %v440, %v440
    %v448 = vmul.f32 %v441, %v441
    %456 = vrot.lane.b32.xlu0 %v442, 96
    %v457 = vpop.permute.xlu0 %456
    %458 = vrot.lane.b32.xlu0 %v443, 96
    %v459 = vpop.permute.xlu0 %458
    %460 = vrot.lane.b32.xlu0 %v444, 96
    %v461 = vpop.permute.xlu0 %460
    %462 = vrot.lane.b32.xlu0 %v445, 96
    %v463 = vpop.permute.xlu0 %462
    %464 = vrot.lane.b32.xlu0 %v446, 96
    %v465 = vpop.permute.xlu0 %464
    %466 = vrot.lane.b32.xlu0 %v447, 96
    %v467 = vpop.permute.xlu0 %466
    %468 = vrot.lane.b32.xlu0 %v448, 96
    %v469 = vpop.permute.xlu0 %468
    %vm477 = vcmask 23552
    %v478 = vsel %vm477, %v457, 0.0
    %479 = vadd.xlane.f32.xlu0 %v478
    %v480 = vpop.xlane.xlu0 %479
    %v481 = vsel %vm477, %v459, 0.0
    %482 = vadd.xlane.f32.xlu0 %v481
    %v483 = vpop.xlane.xlu0 %482
    %v484 = vsel %vm477, %v461, 0.0
    %485 = vadd.xlane.f32.xlu0 %v484
    %v486 = vpop.xlane.xlu0 %485
    %v487 = vsel %vm477, %v463, 0.0
    %488 = vadd.xlane.f32.xlu0 %v487
    %v489 = vpop.xlane.xlu0 %488
    %v490 = vsel %vm477, %v465, 0.0
    %491 = vadd.xlane.f32.xlu0 %v490
    %v492 = vpop.xlane.xlu0 %491
    %v493 = vsel %vm477, %v467, 0.0
    %494 = vadd.xlane.f32.xlu0 %v493
    %v495 = vpop.xlane.xlu0 %494
    %v496 = vsel %vm477, %v469, 0.0
    %497 = vadd.xlane.f32.xlu0 %v496
    %v498 = vpop.xlane.xlu0 %497
    %506 = vrot.lane.b32.xlu0 %v402, 32
    %v507 = vpop.permute.xlu0 %506
    %508 = vrot.lane.b32.xlu0 %v407, 32
    %v509 = vpop.permute.xlu0 %508
    %510 = vrot.lane.b32.xlu0 %v412, 32
    %v511 = vpop.permute.xlu0 %510
    %512 = vrot.lane.b32.xlu0 %v417, 32
    %v513 = vpop.permute.xlu0 %512
    %514 = vrot.lane.b32.xlu0 %v422, 32
    %v515 = vpop.permute.xlu0 %514
    %516 = vrot.lane.b32.xlu0 %v427, 32
    %v517 = vpop.permute.xlu0 %516
    %518 = vrot.lane.b32.xlu0 %v432, 32
    %v519 = vpop.permute.xlu0 %518
    %v527 = vsel %vm190, %v281, %v507
    %v528 = vsel %vm190, %v286, %v509
    %v529 = vsel %vm190, %v291, %v511
    %v530 = vsel %vm190, %v296, %v513
    %v531 = vsel %vm190, %v301, %v515
    %v532 = vsel %vm190, %v306, %v517
    %v533 = vsel %vm190, %v311, %v519
    %v534 = vlaneseq
    %v535 = vshrl.u32 %v534, 7
    %v536 = vsub.s32 6, %v535
    %v537 = vrot.slane %v177, %v536
    %v538 = vmul.f32 %v480, %v537
    %v539 = vmul.f32 %v483, %v537
    %v540 = vmul.f32 %v486, %v537
    %v541 = vmul.f32 %v489, %v537
    %v542 = vmul.f32 %v492, %v537
    %v543 = vmul.f32 %v495, %v537
    %v544 = vmul.f32 %v498, %v537
    %vm545 = vcmask 523264
    %v547 = vsel %vm545, %v527, 0
    %v550 = vsel %vm545, %v528, 0
    %v553 = vsel %vm545, %v529, 0
    %v556 = vsel %vm545, %v530, 0
    %v559 = vsel %vm545, %v531, 0
    %v562 = vsel %vm545, %v532, 0
    %v565 = vsel %vm545, %v533, 0
    %567 = vmatprep.subr.mxu0 0.0
    %568 = vmatpush1.msra.mxu0 %v153
    %569 = vmatprep.subr.mxu0 0.0
    %570 = vmatpush1.msra.mxu0 %v154
    %571 = vmatprep.subr.mxu0 0.0
    %572 = vmatpush1.msra.mxu0 %v155
    %573 = vmatprep.subr.mxu0 0.0
    %574 = vmatpush1.msra.mxu0 %v156
    %575 = vmatprep.subr.mxu0 0.0
    %576 = vmatpush1.msra.mxu0 %v157
    %577 = vmatprep.subr.mxu0 0.0
    %578 = vmatpush1.msra.mxu0 %v158
    %579 = vmatprep.subr.mxu0 0.0
    %580 = vmatpush1.msra.mxu0 %v159
    %581 = vmatprep.subr.mxu0 0.0
    %582 = vmatpush1.msra.mxu0 %v160
    %583 = vmatprep.subr.mxu0 0.0
    %584 = vmatpush1.msra.mxu0 0.0
    %585 = vmatprep.subr.mxu0 0.0
    %586 = vmatpush1.msra.mxu0 0.0
    %587 = vmatprep.subr.mxu0 0.0
    %588 = vmatpush1.msra.mxu0 0.0
    %589 = vmatprep.subr.mxu0 0.0
    %590 = vmatpush1.msra.mxu0 0.0
    %591 = vmatprep.subr.mxu0 0.0
    %592 = vmatpush1.msra.mxu0 0.0
    %593 = vmatprep.subr.mxu0 0.0
    %594 = vmatpush1.msra.mxu0 0.0
    %595 = vmatprep.subr.mxu0 0.0
    %596 = vmatpush1.msra.mxu0 0.0
    %597 = vmatprep.subr.mxu0 0.0
    %598 = vmatpush1.msra.mxu0 0.0
    %599 = vmatprep.subr.mxu0 0.0
    %600 = vmatpush1.msra.mxu0 0.0
    %601 = vmatprep.subr.mxu0 0.0
    %602 = vmatpush1.msra.mxu0 0.0
    %603 = vmatprep.subr.mxu0 0.0
    %604 = vmatpush1.msra.mxu0 0.0
    %605 = vmatprep.subr.mxu0 0.0
    %606 = vmatpush1.msra.mxu0 0.0
    %607 = vmatprep.subr.mxu0 0.0
    %608 = vmatpush1.msra.mxu0 0.0
    %609 = vmatprep.subr.mxu0 0.0
    %610 = vmatpush1.msra.mxu0 0.0
    %611 = vmatprep.subr.mxu0 0.0
    %612 = vmatpush1.msra.mxu0 0.0
    %613 = vmatprep.subr.mxu0 0.0
    %614 = vmatpush1.msra.mxu0 0.0
    %615 = vmatprep.subr.mxu0 0.0
    %616 = vmatpush1.msra.mxu0 0.0
    %617 = vmatprep.subr.mxu0 0.0
    %618 = vmatpush1.msra.mxu0 0.0
    %619 = vmatprep.subr.mxu0 0.0
    %620 = vmatpush1.msra.mxu0 0.0
    %621 = vmatprep.subr.mxu0 0.0
    %622 = vmatpush1.msra.mxu0 0.0
    %623 = vmatprep.subr.mxu0 0.0
    %624 = vmatpush1.msra.mxu0 0.0
    %625 = vmatprep.subr.mxu0 0.0
    %626 = vmatpush1.msra.mxu0 0.0
    %627 = vmatprep.subr.mxu0 0.0
    %628 = vmatpush1.msra.mxu0 0.0
    %629 = vmatprep.subr.mxu0 0.0
    %630 = vmatpush1.msra.mxu0 0.0
    %631 = vmatprep.mubr.f32.mxu0 0.0
    %632 = vmatmul.mubr.f32.gmra.mrb[0].mxu0 %v547
    %v633 = vpop.f32.mrb[0].mxu0
    %v634 = vadd.f32 %v538, %v633
    %v635 = vpop.f32.mrb[0].mxu0
    %636 = vmatprep.mubr.f32.mxu0 0.0
    %637 = vmatmul.mubr.f32.gmra.mrb[0].mxu0 %v550
    %v638 = vpop.f32.mrb[0].mxu0
    %v639 = vadd.f32 %v539, %v638
    %v640 = vpop.f32.mrb[0].mxu0
    %641 = vmatprep.mubr.f32.mxu0 0.0
    %642 = vmatmul.mubr.f32.gmra.mrb[0].mxu0 %v553
    %v643 = vpop.f32.mrb[0].mxu0
    %v644 = vadd.f32 %v540, %v643
    %v645 = vpop.f32.mrb[0].mxu0
    %646 = vmatprep.mubr.f32.mxu0 0.0
    %647 = vmatmul.mubr.f32.gmra.mrb[0].mxu0 %v556
    %v648 = vpop.f32.mrb[0].mxu0
    %v649 = vadd.f32 %v541, %v648
    %v650 = vpop.f32.mrb[0].mxu0
    %651 = vmatprep.mubr.f32.mxu0 0.0
    %652 = vmatmul.mubr.f32.gmra.mrb[0].mxu0 %v559
    %v653 = vpop.f32.mrb[0].mxu0
    %v654 = vadd.f32 %v542, %v653
    %v655 = vpop.f32.mrb[0].mxu0
    %656 = vmatprep.mubr.f32.mxu0 0.0
    %657 = vmatmul.mubr.f32.gmra.mrb[0].mxu0 %v562
    %v658 = vpop.f32.mrb[0].mxu0
    %v659 = vadd.f32 %v543, %v658
    %v660 = vpop.f32.mrb[0].mxu0
    %661 = vmatprep.mubr.f32.mxu0 0.0
    %662 = vmatmul.mubr.f32.gmra.mrb[0].mxu0 %v565
    %v663 = vpop.f32.mrb[0].mxu0
    %v664 = vadd.f32 %v544, %v663
    %v665 = vpop.f32.mrb[0].mxu0
    %666 = vdwg.mxu0
    %v667 = vlaneseq
    %v668 = vshrl.u32 %v667, 7
    %v669 = vsub.s32 0, %v668
    %v670 = vrot.slane %v177, %v669
    %v671 = vadd.f32 %v634, %v670
    %v672 = vadd.f32 %v639, %v670
    %v673 = vadd.f32 %v644, %v670
    %v674 = vadd.f32 %v649, %v670
    %v675 = vadd.f32 %v654, %v670
    %v676 = vadd.f32 %v659, %v670
    %v677 = vadd.f32 %v664, %v670
    %v678 = vxor.u32 %v671, 2147483648
    %v679 = vxor.u32 %v672, 2147483648
    %v680 = vxor.u32 %v673, 2147483648
    %v681 = vxor.u32 %v674, 2147483648
    %v682 = vxor.u32 %v675, 2147483648
    %v683 = vxor.u32 %v676, 2147483648
    %v684 = vxor.u32 %v677, 2147483648
    %v685 = vmul.f32 %v678, 1.442695
    %v686 = vpow.pop %v685
    %v687 = vmul.f32 %v679, 1.442695
    %v688 = vpow.pop %v687
    %v689 = vmul.f32 %v680, 1.442695
    %v690 = vpow.pop %v689
    %v691 = vmul.f32 %v681, 1.442695
    %v692 = vpow.pop %v691
    %v693 = vmul.f32 %v682, 1.442695
    %v694 = vpow.pop %v693
    %v695 = vmul.f32 %v683, 1.442695
    %v696 = vpow.pop %v695
    %v697 = vmul.f32 %v684, 1.442695
    %v698 = vpow.pop %v697
    %v699 = vadd.f32 %v686, 1.0
    %v700 = vadd.f32 %v688, 1.0
    %v701 = vadd.f32 %v690, 1.0
    %v702 = vadd.f32 %v692, 1.0
    %v703 = vadd.f32 %v694, 1.0
    %v704 = vadd.f32 %v696, 1.0
    %v705 = vadd.f32 %v698, 1.0
    %v706 = vrcp.pop %v699
    %v707 = vmul.f32 1.0, %v706
    %v708 = vrcp.pop %v700
    %v709 = vmul.f32 1.0, %v708
    %v710 = vrcp.pop %v701
    %v711 = vmul.f32 1.0, %v710
    %v712 = vrcp.pop %v702
    %v713 = vmul.f32 1.0, %v712
    %v714 = vrcp.pop %v703
    %v715 = vmul.f32 1.0, %v714
    %v716 = vrcp.pop %v704
    %v717 = vmul.f32 1.0, %v716
    %v718 = vrcp.pop %v705
    %v719 = vmul.f32 1.0, %v718
    %v720 = vmul.f32 %v671, %v707
    %v721 = vmul.f32 %v672, %v709
    %v722 = vmul.f32 %v673, %v711
    %v723 = vmul.f32 %v674, %v713
    %v724 = vmul.f32 %v675, %v715
    %v725 = vmul.f32 %v676, %v717
    %v726 = vmul.f32 %v677, %v719
    %v727 = vlaneseq
    %v728 = vshrl.u32 %v727, 7
    %v729 = vsub.s32 1, %v728
    %v730 = vrot.slane %v177, %v729
    %v732 = vsel %vm190, %v720, 0
    %v735 = vsel %vm190, %v721, 0
    %v738 = vsel %vm190, %v722, 0
    %v741 = vsel %vm190, %v723, 0
    %v744 = vsel %vm190, %v724, 0
    %v747 = vsel %vm190, %v725, 0
    %v750 = vsel %vm190, %v726, 0
    %752 = vmatprep.subr.mxu0 0.0
    %753 = vmatpush1.msra.mxu0 %v161
    %754 = vmatprep.subr.mxu0 0.0
    %755 = vmatpush1.msra.mxu0 %v162
    %756 = vmatprep.subr.mxu0 0.0
    %757 = vmatpush1.msra.mxu0 %v163
    %758 = vmatprep.subr.mxu0 0.0
    %759 = vmatpush1.msra.mxu0 %v164
    %760 = vmatprep.subr.mxu0 0.0
    %761 = vmatpush1.msra.mxu0 0.0
    %762 = vmatprep.subr.mxu0 0.0
    %763 = vmatpush1.msra.mxu0 0.0
    %764 = vmatprep.subr.mxu0 0.0
    %765 = vmatpush1.msra.mxu0 0.0
    %766 = vmatprep.subr.mxu0 0.0
    %767 = vmatpush1.msra.mxu0 0.0
    %768 = vmatprep.subr.mxu0 0.0
    %769 = vmatpush1.msra.mxu0 0.0
    %770 = vmatprep.subr.mxu0 0.0
    %771 = vmatpush1.msra.mxu0 0.0
    %772 = vmatprep.subr.mxu0 0.0
    %773 = vmatpush1.msra.mxu0 0.0
    %774 = vmatprep.subr.mxu0 0.0
    %775 = vmatpush1.msra.mxu0 0.0
    %776 = vmatprep.subr.mxu0 0.0
    %777 = vmatpush1.msra.mxu0 0.0
    %778 = vmatprep.subr.mxu0 0.0
    %779 = vmatpush1.msra.mxu0 0.0
    %780 = vmatprep.subr.mxu0 0.0
    %781 = vmatpush1.msra.mxu0 0.0
    %782 = vmatprep.subr.mxu0 0.0
    %783 = vmatpush1.msra.mxu0 0.0
    %784 = vmatprep.subr.mxu0 0.0
    %785 = vmatpush1.msra.mxu0 0.0
    %786 = vmatprep.subr.mxu0 0.0
    %787 = vmatpush1.msra.mxu0 0.0
    %788 = vmatprep.subr.mxu0 0.0
    %789 = vmatpush1.msra.mxu0 0.0
    %790 = vmatprep.subr.mxu0 0.0
    %791 = vmatpush1.msra.mxu0 0.0
    %792 = vmatprep.subr.mxu0 0.0
    %793 = vmatpush1.msra.mxu0 0.0
    %794 = vmatprep.subr.mxu0 0.0
    %795 = vmatpush1.msra.mxu0 0.0
    %796 = vmatprep.subr.mxu0 0.0
    %797 = vmatpush1.msra.mxu0 0.0
    %798 = vmatprep.subr.mxu0 0.0
    %799 = vmatpush1.msra.mxu0 0.0
    %800 = vmatprep.subr.mxu0 0.0
    %801 = vmatpush1.msra.mxu0 0.0
    %802 = vmatprep.subr.mxu0 0.0
    %803 = vmatpush1.msra.mxu0 0.0
    %804 = vmatprep.subr.mxu0 0.0
    %805 = vmatpush1.msra.mxu0 0.0
    %806 = vmatprep.subr.mxu0 0.0
    %807 = vmatpush1.msra.mxu0 0.0
    %808 = vmatprep.subr.mxu0 0.0
    %809 = vmatpush1.msra.mxu0 0.0
    %810 = vmatprep.subr.mxu0 0.0
    %811 = vmatpush1.msra.mxu0 0.0
    %812 = vmatprep.subr.mxu0 0.0
    %813 = vmatpush1.msra.mxu0 0.0
    %814 = vmatprep.subr.mxu0 0.0
    %815 = vmatpush1.msra.mxu0 0.0
    %816 = vmatprep.mubr.f32.mxu0 0.0
    %817 = vmatmul.mubr.f32.gmra.mrb[0].mxu0 %v732
    %v818 = vpop.f32.mrb[0].mxu0
    %v819 = vadd.f32 %v730, %v818
    %v820 = vpop.f32.mrb[0].mxu0
    %821 = vmatprep.mubr.f32.mxu0 0.0
    %822 = vmatmul.mubr.f32.gmra.mrb[0].mxu0 %v735
    %v823 = vpop.f32.mrb[0].mxu0
    %v824 = vadd.f32 %v730, %v823
    %v825 = vpop.f32.mrb[0].mxu0
    %826 = vmatprep.mubr.f32.mxu0 0.0
    %827 = vmatmul.mubr.f32.gmra.mrb[0].mxu0 %v738
    %v828 = vpop.f32.mrb[0].mxu0
    %v829 = vadd.f32 %v730, %v828
    %v830 = vpop.f32.mrb[0].mxu0
    %831 = vmatprep.mubr.f32.mxu0 0.0
    %832 = vmatmul.mubr.f32.gmra.mrb[0].mxu0 %v741
    %v833 = vpop.f32.mrb[0].mxu0
    %v834 = vadd.f32 %v730, %v833
    %v835 = vpop.f32.mrb[0].mxu0
    %836 = vmatprep.mubr.f32.mxu0 0.0
    %837 = vmatmul.mubr.f32.gmra.mrb[0].mxu0 %v744
    %v838 = vpop.f32.mrb[0].mxu0
    %v839 = vadd.f32 %v730, %v838
    %v840 = vpop.f32.mrb[0].mxu0
    %841 = vmatprep.mubr.f32.mxu0 0.0
    %842 = vmatmul.mubr.f32.gmra.mrb[0].mxu0 %v747
    %v843 = vpop.f32.mrb[0].mxu0
    %v844 = vadd.f32 %v730, %v843
    %v845 = vpop.f32.mrb[0].mxu0
    %846 = vmatprep.mubr.f32.mxu0 0.0
    %847 = vmatmul.mubr.f32.gmra.mrb[0].mxu0 %v750
    %v848 = vpop.f32.mrb[0].mxu0
    %v849 = vadd.f32 %v730, %v848
    %v850 = vpop.f32.mrb[0].mxu0
    %851 = vdwg.mxu0
    %v852 = vxor.u32 %v819, 2147483648
    %v853 = vxor.u32 %v824, 2147483648
    %v854 = vxor.u32 %v829, 2147483648
    %v855 = vxor.u32 %v834, 2147483648
    %v856 = vxor.u32 %v839, 2147483648
    %v857 = vxor.u32 %v844, 2147483648
    %v858 = vxor.u32 %v849, 2147483648
    %v859 = vmul.f32 %v852, 1.442695
    %v860 = vpow.pop %v859
    %v861 = vmul.f32 %v853, 1.442695
    %v862 = vpow.pop %v861
    %v863 = vmul.f32 %v854, 1.442695
    %v864 = vpow.pop %v863
    %v865 = vmul.f32 %v855, 1.442695
    %v866 = vpow.pop %v865
    %v867 = vmul.f32 %v856, 1.442695
    %v868 = vpow.pop %v867
    %v869 = vmul.f32 %v857, 1.442695
    %v870 = vpow.pop %v869
    %v871 = vmul.f32 %v858, 1.442695
    %v872 = vpow.pop %v871
    %v873 = vadd.f32 %v860, 1.0
    %v874 = vadd.f32 %v862, 1.0
    %v875 = vadd.f32 %v864, 1.0
    %v876 = vadd.f32 %v866, 1.0
    %v877 = vadd.f32 %v868, 1.0
    %v878 = vadd.f32 %v870, 1.0
    %v879 = vadd.f32 %v872, 1.0
    %v880 = vrcp.pop %v873
    %v881 = vmul.f32 1.0, %v880
    %v882 = vrcp.pop %v874
    %v883 = vmul.f32 1.0, %v882
    %v884 = vrcp.pop %v875
    %v885 = vmul.f32 1.0, %v884
    %v886 = vrcp.pop %v876
    %v887 = vmul.f32 1.0, %v886
    %v888 = vrcp.pop %v877
    %v889 = vmul.f32 1.0, %v888
    %v890 = vrcp.pop %v878
    %v891 = vmul.f32 1.0, %v890
    %v892 = vrcp.pop %v879
    %v893 = vmul.f32 1.0, %v892
    %v894 = vmul.f32 %v819, %v881
    %v895 = vmul.f32 %v824, %v883
    %v896 = vmul.f32 %v829, %v885
    %v897 = vmul.f32 %v834, %v887
    %v898 = vmul.f32 %v839, %v889
    %v899 = vmul.f32 %v844, %v891
    %v900 = vmul.f32 %v849, %v893
    %v902 = vsel %vm190, %v894, 0
    %v905 = vsel %vm190, %v895, 0
    %v908 = vsel %vm190, %v896, 0
    %v911 = vsel %vm190, %v897, 0
    %v914 = vsel %vm190, %v898, 0
    %v917 = vsel %vm190, %v899, 0
    %v920 = vsel %vm190, %v900, 0
    %922 = vmatprep.subr.mxu0 0.0
    %923 = vmatpush1.msra.mxu0 %v178
    %924 = vmatprep.subr.mxu0 0.0
    %925 = vmatpush1.msra.mxu0 %v179
    %926 = vmatprep.subr.mxu0 0.0
    %927 = vmatpush1.msra.mxu0 %v180
    %928 = vmatprep.subr.mxu0 0.0
    %929 = vmatpush1.msra.mxu0 %v181
    %930 = vmatprep.subr.mxu0 0.0
    %931 = vmatpush1.msra.mxu0 0.0
    %932 = vmatprep.subr.mxu0 0.0
    %933 = vmatpush1.msra.mxu0 0.0
    %934 = vmatprep.subr.mxu0 0.0
    %935 = vmatpush1.msra.mxu0 0.0
    %936 = vmatprep.subr.mxu0 0.0
    %937 = vmatpush1.msra.mxu0 0.0
    %938 = vmatprep.subr.mxu0 0.0
    %939 = vmatpush1.msra.mxu0 0.0
    %940 = vmatprep.subr.mxu0 0.0
    %941 = vmatpush1.msra.mxu0 0.0
    %942 = vmatprep.subr.mxu0 0.0
    %943 = vmatpush1.msra.mxu0 0.0
    %944 = vmatprep.subr.mxu0 0.0
    %945 = vmatpush1.msra.mxu0 0.0
    %946 = vmatprep.subr.mxu0 0.0
    %947 = vmatpush1.msra.mxu0 0.0
    %948 = vmatprep.subr.mxu0 0.0
    %949 = vmatpush1.msra.mxu0 0.0
    %950 = vmatprep.subr.mxu0 0.0
    %951 = vmatpush1.msra.mxu0 0.0
    %952 = vmatprep.subr.mxu0 0.0
    %953 = vmatpush1.msra.mxu0 0.0
    %954 = vmatprep.subr.mxu0 0.0
    %955 = vmatpush1.msra.mxu0 0.0
    %956 = vmatprep.subr.mxu0 0.0
    %957 = vmatpush1.msra.mxu0 0.0
    %958 = vmatprep.subr.mxu0 0.0
    %959 = vmatpush1.msra.mxu0 0.0
    %960 = vmatprep.subr.mxu0 0.0
    %961 = vmatpush1.msra.mxu0 0.0
    %962 = vmatprep.subr.mxu0 0.0
    %963 = vmatpush1.msra.mxu0 0.0
    %964 = vmatprep.subr.mxu0 0.0
    %965 = vmatpush1.msra.mxu0 0.0
    %966 = vmatprep.subr.mxu0 0.0
    %967 = vmatpush1.msra.mxu0 0.0
    %968 = vmatprep.subr.mxu0 0.0
    %969 = vmatpush1.msra.mxu0 0.0
    %970 = vmatprep.subr.mxu0 0.0
    %971 = vmatpush1.msra.mxu0 0.0
    %972 = vmatprep.subr.mxu0 0.0
    %973 = vmatpush1.msra.mxu0 0.0
    %974 = vmatprep.subr.mxu0 0.0
    %975 = vmatpush1.msra.mxu0 0.0
    %976 = vmatprep.subr.mxu0 0.0
    %977 = vmatpush1.msra.mxu0 0.0
    %978 = vmatprep.subr.mxu0 0.0
    %979 = vmatpush1.msra.mxu0 0.0
    %980 = vmatprep.subr.mxu0 0.0
    %981 = vmatpush1.msra.mxu0 0.0
    %982 = vmatprep.subr.mxu0 0.0
    %983 = vmatpush1.msra.mxu0 0.0
    %984 = vmatprep.subr.mxu0 0.0
    %985 = vmatpush1.msra.mxu0 0.0
    %986 = vmatprep.mubr.f32.mxu0 0.0
    %987 = vmatmul.mubr.f32.gmra.mrb[0].mxu0 %v902
    %v988 = vpop.f32.mrb[0].mxu0
    %v989 = vadd.f32 0.0, %v988
    %v990 = vpop.f32.mrb[0].mxu0
    %991 = vmatprep.mubr.f32.mxu0 0.0
    %992 = vmatmul.mubr.f32.gmra.mrb[0].mxu0 %v905
    %v993 = vpop.f32.mrb[0].mxu0
    %v994 = vadd.f32 0.0, %v993
    %v995 = vpop.f32.mrb[0].mxu0
    %996 = vmatprep.mubr.f32.mxu0 0.0
    %997 = vmatmul.mubr.f32.gmra.mrb[0].mxu0 %v908
    %v998 = vpop.f32.mrb[0].mxu0
    %v999 = vadd.f32 0.0, %v998
    %v1000 = vpop.f32.mrb[0].mxu0
    %1001 = vmatprep.mubr.f32.mxu0 0.0
    %1002 = vmatmul.mubr.f32.gmra.mrb[0].mxu0 %v911
    %v1003 = vpop.f32.mrb[0].mxu0
    %v1004 = vadd.f32 0.0, %v1003
    %v1005 = vpop.f32.mrb[0].mxu0
    %1006 = vmatprep.mubr.f32.mxu0 0.0
    %1007 = vmatmul.mubr.f32.gmra.mrb[0].mxu0 %v914
    %v1008 = vpop.f32.mrb[0].mxu0
    %v1009 = vadd.f32 0.0, %v1008
    %v1010 = vpop.f32.mrb[0].mxu0
    %1011 = vmatprep.mubr.f32.mxu0 0.0
    %1012 = vmatmul.mubr.f32.gmra.mrb[0].mxu0 %v917
    %v1013 = vpop.f32.mrb[0].mxu0
    %v1014 = vadd.f32 0.0, %v1013
    %v1015 = vpop.f32.mrb[0].mxu0
    %1016 = vmatprep.mubr.f32.mxu0 0.0
    %1017 = vmatmul.mubr.f32.gmra.mrb[0].mxu0 %v920
    %v1018 = vpop.f32.mrb[0].mxu0
    %v1019 = vadd.f32 0.0, %v1018
    %v1020 = vpop.f32.mrb[0].mxu0
    %1021 = vdwg.mxu0
    %v1022 = vlaneseq
    %v1023 = vshrl.u32 %v1022, 7
    %v1024 = vsub.s32 5, %v1023
    %v1025 = vrot.slane %v177, %v1024
    %1027 = vrot.lane.b32.xlu0 %v1025, 32
    %v1028 = vpop.permute.xlu0 %1027
    %v1030 = vadd.f32 %v989, %v1028
    %v1031 = vadd.f32 %v994, %v1028
    %v1032 = vadd.f32 %v999, %v1028
    %v1033 = vadd.f32 %v1004, %v1028
    %v1034 = vadd.f32 %v1009, %v1028
    %v1035 = vadd.f32 %v1014, %v1028
    %v1036 = vadd.f32 %v1019, %v1028
    %v1037 = vxor.u32 %v1030, 2147483648
    %v1038 = vxor.u32 %v1031, 2147483648
    %v1039 = vxor.u32 %v1032, 2147483648
    %v1040 = vxor.u32 %v1033, 2147483648
    %v1041 = vxor.u32 %v1034, 2147483648
    %v1042 = vxor.u32 %v1035, 2147483648
    %v1043 = vxor.u32 %v1036, 2147483648
    %v1044 = vmul.f32 %v1037, 1.442695
    %v1045 = vpow.pop %v1044
    %v1046 = vmul.f32 %v1038, 1.442695
    %v1047 = vpow.pop %v1046
    %v1048 = vmul.f32 %v1039, 1.442695
    %v1049 = vpow.pop %v1048
    %v1050 = vmul.f32 %v1040, 1.442695
    %v1051 = vpow.pop %v1050
    %v1052 = vmul.f32 %v1041, 1.442695
    %v1053 = vpow.pop %v1052
    %v1054 = vmul.f32 %v1042, 1.442695
    %v1055 = vpow.pop %v1054
    %v1056 = vmul.f32 %v1043, 1.442695
    %v1057 = vpow.pop %v1056
    %v1058 = vadd.f32 %v1045, 1.0
    %v1059 = vadd.f32 %v1047, 1.0
    %v1060 = vadd.f32 %v1049, 1.0
    %v1061 = vadd.f32 %v1051, 1.0
    %v1062 = vadd.f32 %v1053, 1.0
    %v1063 = vadd.f32 %v1055, 1.0
    %v1064 = vadd.f32 %v1057, 1.0
    %v1065 = vrcp.pop %v1058
    %v1066 = vmul.f32 1.0, %v1065
    %v1067 = vrcp.pop %v1059
    %v1068 = vmul.f32 1.0, %v1067
    %v1069 = vrcp.pop %v1060
    %v1070 = vmul.f32 1.0, %v1069
    %v1071 = vrcp.pop %v1061
    %v1072 = vmul.f32 1.0, %v1071
    %v1073 = vrcp.pop %v1062
    %v1074 = vmul.f32 1.0, %v1073
    %v1075 = vrcp.pop %v1063
    %v1076 = vmul.f32 1.0, %v1075
    %v1077 = vrcp.pop %v1064
    %v1078 = vmul.f32 1.0, %v1077
    %1080 = vset.pattern.permute.xlu0 32
    %1081 = vperm.xlu0 %1080, %v1066
    %v1082 = vpop.permute.xlu0 %1081
    %1085 = vset.pattern.permute.xlu0 32
    %1086 = vperm.xlu0 %1085, %v1068
    %v1087 = vpop.permute.xlu0 %1086
    %1090 = vset.pattern.permute.xlu0 32
    %1091 = vperm.xlu0 %1090, %v1070
    %v1092 = vpop.permute.xlu0 %1091
    %1095 = vset.pattern.permute.xlu0 32
    %1096 = vperm.xlu0 %1095, %v1072
    %v1097 = vpop.permute.xlu0 %1096
    %1100 = vset.pattern.permute.xlu0 32
    %1101 = vperm.xlu0 %1100, %v1074
    %v1102 = vpop.permute.xlu0 %1101
    %1105 = vset.pattern.permute.xlu0 32
    %1106 = vperm.xlu0 %1105, %v1076
    %v1107 = vpop.permute.xlu0 %1106
    %1110 = vset.pattern.permute.xlu0 32
    %1111 = vperm.xlu0 %1110, %v1078
    %v1112 = vpop.permute.xlu0 %1111
    %v1114 = vmul.f32 %v894, %v1082
    %v1115 = vmul.f32 %v895, %v1087
    %v1116 = vmul.f32 %v896, %v1092
    %v1117 = vmul.f32 %v897, %v1097
    %v1118 = vmul.f32 %v898, %v1102
    %v1119 = vmul.f32 %v899, %v1107
    %v1120 = vmul.f32 %v900, %v1112
    %v1121 = vmul.f32 %v1082, %v989
    %v1122 = vmul.f32 %v1087, %v994
    %v1123 = vmul.f32 %v1092, %v999
    %v1124 = vmul.f32 %v1097, %v1004
    %v1125 = vmul.f32 %v1102, %v1009
    %v1126 = vmul.f32 %v1107, %v1014
    %v1127 = vmul.f32 %v1112, %v1019
    %v1128 = vlaneseq
    %v1129 = vshrl.u32 %v1128, 7
    %v1130 = vsub.s32 2, %v1129
    %v1131 = vrot.slane %v177, %v1130
    %v1132 = vadd.f32 %v1121, %v1131
    %v1133 = vadd.f32 %v1122, %v1131
    %v1134 = vadd.f32 %v1123, %v1131
    %v1135 = vadd.f32 %v1124, %v1131
    %v1136 = vadd.f32 %v1125, %v1131
    %v1137 = vadd.f32 %v1126, %v1131
    %v1138 = vadd.f32 %v1127, %v1131
    %v1139 = vxor.u32 %v1132, 2147483648
    %v1140 = vxor.u32 %v1133, 2147483648
    %v1141 = vxor.u32 %v1134, 2147483648
    %v1142 = vxor.u32 %v1135, 2147483648
    %v1143 = vxor.u32 %v1136, 2147483648
    %v1144 = vxor.u32 %v1137, 2147483648
    %v1145 = vxor.u32 %v1138, 2147483648
    %v1146 = vmul.f32 %v1139, 1.442695
    %v1147 = vpow.pop %v1146
    %v1148 = vmul.f32 %v1140, 1.442695
    %v1149 = vpow.pop %v1148
    %v1150 = vmul.f32 %v1141, 1.442695
    %v1151 = vpow.pop %v1150
    %v1152 = vmul.f32 %v1142, 1.442695
    %v1153 = vpow.pop %v1152
    %v1154 = vmul.f32 %v1143, 1.442695
    %v1155 = vpow.pop %v1154
    %v1156 = vmul.f32 %v1144, 1.442695
    %v1157 = vpow.pop %v1156
    %v1158 = vmul.f32 %v1145, 1.442695
    %v1159 = vpow.pop %v1158
    %v1160 = vadd.f32 %v1147, 1.0
    %v1161 = vadd.f32 %v1149, 1.0
    %v1162 = vadd.f32 %v1151, 1.0
    %v1163 = vadd.f32 %v1153, 1.0
    %v1164 = vadd.f32 %v1155, 1.0
    %v1165 = vadd.f32 %v1157, 1.0
    %v1166 = vadd.f32 %v1159, 1.0
    %v1167 = vrcp.pop %v1160
    %v1168 = vmul.f32 1.0, %v1167
    %v1169 = vrcp.pop %v1161
    %v1170 = vmul.f32 1.0, %v1169
    %v1171 = vrcp.pop %v1162
    %v1172 = vmul.f32 1.0, %v1171
    %v1173 = vrcp.pop %v1163
    %v1174 = vmul.f32 1.0, %v1173
    %v1175 = vrcp.pop %v1164
    %v1176 = vmul.f32 1.0, %v1175
    %v1177 = vrcp.pop %v1165
    %v1178 = vmul.f32 1.0, %v1177
    %v1179 = vrcp.pop %v1166
    %v1180 = vmul.f32 1.0, %v1179
    %v1181 = vmul.f32 %v1132, %v1168
    %v1182 = vmul.f32 %v1133, %v1170
    %v1183 = vmul.f32 %v1134, %v1172
    %v1184 = vmul.f32 %v1135, %v1174
    %v1185 = vmul.f32 %v1136, %v1176
    %v1186 = vmul.f32 %v1137, %v1178
    %v1187 = vmul.f32 %v1138, %v1180
    %v1189 = vsel %vm190, %v1181, 0
    %v1192 = vsel %vm190, %v1182, 0
    %v1195 = vsel %vm190, %v1183, 0
    %v1198 = vsel %vm190, %v1184, 0
    %v1201 = vsel %vm190, %v1185, 0
    %v1204 = vsel %vm190, %v1186, 0
    %v1207 = vsel %vm190, %v1187, 0
    %1209 = vmatprep.subr.mxu0 0.0
    %1210 = vmatpush1.msra.mxu0 %v182
    %1211 = vmatprep.subr.mxu0 0.0
    %1212 = vmatpush1.msra.mxu0 %v183
    %1213 = vmatprep.subr.mxu0 0.0
    %1214 = vmatpush1.msra.mxu0 %v184
    %1215 = vmatprep.subr.mxu0 0.0
    %1216 = vmatpush1.msra.mxu0 %v185
    %1217 = vmatprep.subr.mxu0 0.0
    %1218 = vmatpush1.msra.mxu0 0.0
    %1219 = vmatprep.subr.mxu0 0.0
    %1220 = vmatpush1.msra.mxu0 0.0
    %1221 = vmatprep.subr.mxu0 0.0
    %1222 = vmatpush1.msra.mxu0 0.0
    %1223 = vmatprep.subr.mxu0 0.0
    %1224 = vmatpush1.msra.mxu0 0.0
    %1225 = vmatprep.subr.mxu0 0.0
    %1226 = vmatpush1.msra.mxu0 0.0
    %1227 = vmatprep.subr.mxu0 0.0
    %1228 = vmatpush1.msra.mxu0 0.0
    %1229 = vmatprep.subr.mxu0 0.0
    %1230 = vmatpush1.msra.mxu0 0.0
    %1231 = vmatprep.subr.mxu0 0.0
    %1232 = vmatpush1.msra.mxu0 0.0
    %1233 = vmatprep.subr.mxu0 0.0
    %1234 = vmatpush1.msra.mxu0 0.0
    %1235 = vmatprep.subr.mxu0 0.0
    %1236 = vmatpush1.msra.mxu0 0.0
    %1237 = vmatprep.subr.mxu0 0.0
    %1238 = vmatpush1.msra.mxu0 0.0
    %1239 = vmatprep.subr.mxu0 0.0
    %1240 = vmatpush1.msra.mxu0 0.0
    %1241 = vmatprep.subr.mxu0 0.0
    %1242 = vmatpush1.msra.mxu0 0.0
    %1243 = vmatprep.subr.mxu0 0.0
    %1244 = vmatpush1.msra.mxu0 0.0
    %1245 = vmatprep.subr.mxu0 0.0
    %1246 = vmatpush1.msra.mxu0 0.0
    %1247 = vmatprep.subr.mxu0 0.0
    %1248 = vmatpush1.msra.mxu0 0.0
    %1249 = vmatprep.subr.mxu0 0.0
    %1250 = vmatpush1.msra.mxu0 0.0
    %1251 = vmatprep.subr.mxu0 0.0
    %1252 = vmatpush1.msra.mxu0 0.0
    %1253 = vmatprep.subr.mxu0 0.0
    %1254 = vmatpush1.msra.mxu0 0.0
    %1255 = vmatprep.subr.mxu0 0.0
    %1256 = vmatpush1.msra.mxu0 0.0
    %1257 = vmatprep.subr.mxu0 0.0
    %1258 = vmatpush1.msra.mxu0 0.0
    %1259 = vmatprep.subr.mxu0 0.0
    %1260 = vmatpush1.msra.mxu0 0.0
    %1261 = vmatprep.subr.mxu0 0.0
    %1262 = vmatpush1.msra.mxu0 0.0
    %1263 = vmatprep.subr.mxu0 0.0
    %1264 = vmatpush1.msra.mxu0 0.0
    %1265 = vmatprep.subr.mxu0 0.0
    %1266 = vmatpush1.msra.mxu0 0.0
    %1267 = vmatprep.subr.mxu0 0.0
    %1268 = vmatpush1.msra.mxu0 0.0
    %1269 = vmatprep.subr.mxu0 0.0
    %1270 = vmatpush1.msra.mxu0 0.0
    %1271 = vmatprep.subr.mxu0 0.0
    %1272 = vmatpush1.msra.mxu0 0.0
    %1273 = vmatprep.mubr.f32.mxu0 0.0
    %1274 = vmatmul.mubr.f32.gmra.mrb[0].mxu0 %v1189
    %v1275 = vpop.f32.mrb[0].mxu0
    %v1276 = vadd.f32 0.0, %v1275
    %v1277 = vpop.f32.mrb[0].mxu0
    %1278 = vmatprep.mubr.f32.mxu0 0.0
    %1279 = vmatmul.mubr.f32.gmra.mrb[0].mxu0 %v1192
    %v1280 = vpop.f32.mrb[0].mxu0
    %v1281 = vadd.f32 0.0, %v1280
    %v1282 = vpop.f32.mrb[0].mxu0
    %1283 = vmatprep.mubr.f32.mxu0 0.0
    %1284 = vmatmul.mubr.f32.gmra.mrb[0].mxu0 %v1195
    %v1285 = vpop.f32.mrb[0].mxu0
    %v1286 = vadd.f32 0.0, %v1285
    %v1287 = vpop.f32.mrb[0].mxu0
    %1288 = vmatprep.mubr.f32.mxu0 0.0
    %1289 = vmatmul.mubr.f32.gmra.mrb[0].mxu0 %v1198
    %v1290 = vpop.f32.mrb[0].mxu0
    %v1291 = vadd.f32 0.0, %v1290
    %v1292 = vpop.f32.mrb[0].mxu0
    %1293 = vmatprep.mubr.f32.mxu0 0.0
    %1294 = vmatmul.mubr.f32.gmra.mrb[0].mxu0 %v1201
    %v1295 = vpop.f32.mrb[0].mxu0
    %v1296 = vadd.f32 0.0, %v1295
    %v1297 = vpop.f32.mrb[0].mxu0
    %1298 = vmatprep.mubr.f32.mxu0 0.0
    %1299 = vmatmul.mubr.f32.gmra.mrb[0].mxu0 %v1204
    %v1300 = vpop.f32.mrb[0].mxu0
    %v1301 = vadd.f32 0.0, %v1300
    %v1302 = vpop.f32.mrb[0].mxu0
    %1303 = vmatprep.mubr.f32.mxu0 0.0
    %1304 = vmatmul.mubr.f32.gmra.mrb[0].mxu0 %v1207
    %v1305 = vpop.f32.mrb[0].mxu0
    %v1306 = vadd.f32 0.0, %v1305
    %v1307 = vpop.f32.mrb[0].mxu0
    %1308 = vdwg.mxu0
    %1310 = vset.pattern.permute.xlu0 0
    %1311 = vperm.xlu0 %1310, %v1276
    %v1312 = vpop.permute.xlu0 %1311
    %1315 = vset.pattern.permute.xlu0 0
    %1316 = vperm.xlu0 %1315, %v1281
    %v1317 = vpop.permute.xlu0 %1316
    %1320 = vset.pattern.permute.xlu0 0
    %1321 = vperm.xlu0 %1320, %v1286
    %v1322 = vpop.permute.xlu0 %1321
    %1325 = vset.pattern.permute.xlu0 0
    %1326 = vperm.xlu0 %1325, %v1291
    %v1327 = vpop.permute.xlu0 %1326
    %1330 = vset.pattern.permute.xlu0 0
    %1331 = vperm.xlu0 %1330, %v1296
    %v1332 = vpop.permute.xlu0 %1331
    %1335 = vset.pattern.permute.xlu0 0
    %1336 = vperm.xlu0 %1335, %v1301
    %v1337 = vpop.permute.xlu0 %1336
    %1340 = vset.pattern.permute.xlu0 0
    %1341 = vperm.xlu0 %1340, %v1306
    %v1342 = vpop.permute.xlu0 %1341
    %v1344 = vmul.f32 %v435, %v1312
    %v1345 = vmul.f32 %v436, %v1317
    %v1346 = vmul.f32 %v437, %v1322
    %v1347 = vmul.f32 %v438, %v1327
    %v1348 = vmul.f32 %v439, %v1332
    %v1349 = vmul.f32 %v440, %v1337
    %v1350 = vmul.f32 %v441, %v1342
    %v1351 = vsel %vm190, %v1114, %v1344
    %v1352 = vsel %vm190, %v1115, %v1345
    %v1353 = vsel %vm190, %v1116, %v1346
    %v1354 = vsel %vm190, %v1117, %v1347
    %v1355 = vsel %vm190, %v1118, %v1348
    %v1356 = vsel %vm190, %v1119, %v1349
    %v1357 = vsel %vm190, %v1120, %v1350
    %vm1358 = vcmask 457728
    %v1360 = vsel %vm1358, %v66, 0
    %1362 = vmatprep.subr.mxu0 0.0
    %1363 = vmatpush1.msra.mxu0 %v1351
    %1364 = vmatprep.subr.mxu0 0.0
    %1365 = vmatpush1.msra.mxu0 %v1352
    %1366 = vmatprep.subr.mxu0 0.0
    %1367 = vmatpush1.msra.mxu0 %v1353
    %1368 = vmatprep.subr.mxu0 0.0
    %1369 = vmatpush1.msra.mxu0 %v1354
    %1370 = vmatprep.subr.mxu0 0.0
    %1371 = vmatpush1.msra.mxu0 %v1355
    %1372 = vmatprep.subr.mxu0 0.0
    %1373 = vmatpush1.msra.mxu0 %v1356
    %1374 = vmatprep.subr.mxu0 0.0
    %1375 = vmatpush1.msra.mxu0 %v1357
    %1376 = vmatprep.subr.mxu0 0.0
    %1377 = vmatpush1.msra.mxu0 0.0
    %1378 = vmatprep.subr.mxu0 0.0
    %1379 = vmatpush1.msra.mxu0 0.0
    %1380 = vmatprep.subr.mxu0 0.0
    %1381 = vmatpush1.msra.mxu0 0.0
    %1382 = vmatprep.subr.mxu0 0.0
    %1383 = vmatpush1.msra.mxu0 0.0
    %1384 = vmatprep.subr.mxu0 0.0
    %1385 = vmatpush1.msra.mxu0 0.0
    %1386 = vmatprep.subr.mxu0 0.0
    %1387 = vmatpush1.msra.mxu0 0.0
    %1388 = vmatprep.subr.mxu0 0.0
    %1389 = vmatpush1.msra.mxu0 0.0
    %1390 = vmatprep.subr.mxu0 0.0
    %1391 = vmatpush1.msra.mxu0 0.0
    %1392 = vmatprep.subr.mxu0 0.0
    %1393 = vmatpush1.msra.mxu0 0.0
    %1394 = vmatprep.subr.mxu0 0.0
    %1395 = vmatpush1.msra.mxu0 0.0
    %1396 = vmatprep.subr.mxu0 0.0
    %1397 = vmatpush1.msra.mxu0 0.0
    %1398 = vmatprep.subr.mxu0 0.0
    %1399 = vmatpush1.msra.mxu0 0.0
    %1400 = vmatprep.subr.mxu0 0.0
    %1401 = vmatpush1.msra.mxu0 0.0
    %1402 = vmatprep.subr.mxu0 0.0
    %1403 = vmatpush1.msra.mxu0 0.0
    %1404 = vmatprep.subr.mxu0 0.0
    %1405 = vmatpush1.msra.mxu0 0.0
    %1406 = vmatprep.subr.mxu0 0.0
    %1407 = vmatpush1.msra.mxu0 0.0
    %1408 = vmatprep.subr.mxu0 0.0
    %1409 = vmatpush1.msra.mxu0 0.0
    %1410 = vmatprep.subr.mxu0 0.0
    %1411 = vmatpush1.msra.mxu0 0.0
    %1412 = vmatprep.subr.mxu0 0.0
    %1413 = vmatpush1.msra.mxu0 0.0
    %1414 = vmatprep.subr.mxu0 0.0
    %1415 = vmatpush1.msra.mxu0 0.0
    %1416 = vmatprep.subr.mxu0 0.0
    %1417 = vmatpush1.msra.mxu0 0.0
    %1418 = vmatprep.subr.mxu0 0.0
    %1419 = vmatpush1.msra.mxu0 0.0
    %1420 = vmatprep.subr.mxu0 0.0
    %1421 = vmatpush1.msra.mxu0 0.0
    %1422 = vmatprep.subr.mxu0 0.0
    %1423 = vmatpush1.msra.mxu0 0.0
    %1424 = vmatprep.subr.mxu0 0.0
    %1425 = vmatpush1.msra.mxu0 0.0
    %1426 = vmatprep.mubr.f32.mxu0 0.0
    %1427 = vmatmul.mubr.f32.gmra.mrb[0].mxu0 %v1360
    %v1428 = vpop.f32.mrb[0].mxu0
    %v1429 = vadd.f32 0.0, %v1428
    %v1430 = vpop.f32.mrb[0].mxu0
    %1431 = vdwg.mxu0
    %1433 = vset.pattern.permute.xlu0 0
    %1434 = vperm.xlu0 %1433, %v67
    %v1435 = vpop.permute.xlu0 %1434
    %v1437 = vmul.f32 %v1429, %v1435
    %1439 = vrot.lane.b32.xlu0 %v1437, 96
    %v1440 = vpop.permute.xlu0 %1439
    %v1442 = vadd.f32 %v152, %v1440
    %1444 = vrot.lane.b32.xlu0 %v1429, 32
    %v1445 = vpop.permute.xlu0 %1444
    %v1447 = vsel %vm190, %v149, %v1445
    %v1448 = vlaneseq
    %v1449 = vshrl.u32 %v1448, 7
    %v1450 = vsub.s32 3, %v1449
    %v1451 = vrot.slane %v177, %v1450
    %v1453 = vsel %vm545, %v1447, 0
    %1455 = vmatprep.subr.mxu0 0.0
    %1456 = vmatpush1.msra.mxu0 %v165
    %1457 = vmatprep.subr.mxu0 0.0
    %1458 = vmatpush1.msra.mxu0 %v166
    %1459 = vmatprep.subr.mxu0 0.0
    %1460 = vmatpush1.msra.mxu0 %v167
    %1461 = vmatprep.subr.mxu0 0.0
    %1462 = vmatpush1.msra.mxu0 %v168
    %1463 = vmatprep.subr.mxu0 0.0
    %1464 = vmatpush1.msra.mxu0 %v169
    %1465 = vmatprep.subr.mxu0 0.0
    %1466 = vmatpush1.msra.mxu0 %v170
    %1467 = vmatprep.subr.mxu0 0.0
    %1468 = vmatpush1.msra.mxu0 %v171
    %1469 = vmatprep.subr.mxu0 0.0
    %1470 = vmatpush1.msra.mxu0 %v172
    %1471 = vmatprep.subr.mxu0 0.0
    %1472 = vmatpush1.msra.mxu0 0.0
    %1473 = vmatprep.subr.mxu0 0.0
    %1474 = vmatpush1.msra.mxu0 0.0
    %1475 = vmatprep.subr.mxu0 0.0
    %1476 = vmatpush1.msra.mxu0 0.0
    %1477 = vmatprep.subr.mxu0 0.0
    %1478 = vmatpush1.msra.mxu0 0.0
    %1479 = vmatprep.subr.mxu0 0.0
    %1480 = vmatpush1.msra.mxu0 0.0
    %1481 = vmatprep.subr.mxu0 0.0
    %1482 = vmatpush1.msra.mxu0 0.0
    %1483 = vmatprep.subr.mxu0 0.0
    %1484 = vmatpush1.msra.mxu0 0.0
    %1485 = vmatprep.subr.mxu0 0.0
    %1486 = vmatpush1.msra.mxu0 0.0
    %1487 = vmatprep.subr.mxu0 0.0
    %1488 = vmatpush1.msra.mxu0 0.0
    %1489 = vmatprep.subr.mxu0 0.0
    %1490 = vmatpush1.msra.mxu0 0.0
    %1491 = vmatprep.subr.mxu0 0.0
    %1492 = vmatpush1.msra.mxu0 0.0
    %1493 = vmatprep.subr.mxu0 0.0
    %1494 = vmatpush1.msra.mxu0 0.0
    %1495 = vmatprep.subr.mxu0 0.0
    %1496 = vmatpush1.msra.mxu0 0.0
    %1497 = vmatprep.subr.mxu0 0.0
    %1498 = vmatpush1.msra.mxu0 0.0
    %1499 = vmatprep.subr.mxu0 0.0
    %1500 = vmatpush1.msra.mxu0 0.0
    %1501 = vmatprep.subr.mxu0 0.0
    %1502 = vmatpush1.msra.mxu0 0.0
    %1503 = vmatprep.subr.mxu0 0.0
    %1504 = vmatpush1.msra.mxu0 0.0
    %1505 = vmatprep.subr.mxu0 0.0
    %1506 = vmatpush1.msra.mxu0 0.0
    %1507 = vmatprep.subr.mxu0 0.0
    %1508 = vmatpush1.msra.mxu0 0.0
    %1509 = vmatprep.subr.mxu0 0.0
    %1510 = vmatpush1.msra.mxu0 0.0
    %1511 = vmatprep.subr.mxu0 0.0
    %1512 = vmatpush1.msra.mxu0 0.0
    %1513 = vmatprep.subr.mxu0 0.0
    %1514 = vmatpush1.msra.mxu0 0.0
    %1515 = vmatprep.subr.mxu0 0.0
    %1516 = vmatpush1.msra.mxu0 0.0
    %1517 = vmatprep.subr.mxu0 0.0
    %1518 = vmatpush1.msra.mxu0 0.0
    %1519 = vmatprep.mubr.f32.mxu0 0.0
    %1520 = vmatmul.mubr.f32.gmra.mrb[0].mxu0 %v1453
    %v1521 = vpop.f32.mrb[0].mxu0
    %v1522 = vadd.f32 %v1451, %v1521
    %v1523 = vpop.f32.mrb[0].mxu0
    %1524 = vdwg.mxu0
    %v1525 = vxor.u32 %v1522, 2147483648
    %v1526 = vmul.f32 %v1525, 1.442695
    %v1527 = vpow.pop %v1526
    %v1528 = vadd.f32 %v1527, 1.0
    %v1529 = vrcp.pop %v1528
    %v1530 = vmul.f32 1.0, %v1529
    %v1531 = vmul.f32 %v1522, %v1530
    %v1533 = vsel %vm190, %v1531, 0
    %1535 = vmatprep.subr.mxu0 0.0
    %1536 = vmatpush1.msra.mxu0 %v173
    %1537 = vmatprep.subr.mxu0 0.0
    %1538 = vmatpush1.msra.mxu0 %v174
    %1539 = vmatprep.subr.mxu0 0.0
    %1540 = vmatpush1.msra.mxu0 %v175
    %1541 = vmatprep.subr.mxu0 0.0
    %1542 = vmatpush1.msra.mxu0 %v176
    %1543 = vmatprep.subr.mxu0 0.0
    %1544 = vmatpush1.msra.mxu0 0.0
    %1545 = vmatprep.subr.mxu0 0.0
    %1546 = vmatpush1.msra.mxu0 0.0
    %1547 = vmatprep.subr.mxu0 0.0
    %1548 = vmatpush1.msra.mxu0 0.0
    %1549 = vmatprep.subr.mxu0 0.0
    %1550 = vmatpush1.msra.mxu0 0.0
    %1551 = vmatprep.subr.mxu0 0.0
    %1552 = vmatpush1.msra.mxu0 0.0
    %1553 = vmatprep.subr.mxu0 0.0
    %1554 = vmatpush1.msra.mxu0 0.0
    %1555 = vmatprep.subr.mxu0 0.0
    %1556 = vmatpush1.msra.mxu0 0.0
    %1557 = vmatprep.subr.mxu0 0.0
    %1558 = vmatpush1.msra.mxu0 0.0
    %1559 = vmatprep.subr.mxu0 0.0
    %1560 = vmatpush1.msra.mxu0 0.0
    %1561 = vmatprep.subr.mxu0 0.0
    %1562 = vmatpush1.msra.mxu0 0.0
    %1563 = vmatprep.subr.mxu0 0.0
    %1564 = vmatpush1.msra.mxu0 0.0
    %1565 = vmatprep.subr.mxu0 0.0
    %1566 = vmatpush1.msra.mxu0 0.0
    %1567 = vmatprep.subr.mxu0 0.0
    %1568 = vmatpush1.msra.mxu0 0.0
    %1569 = vmatprep.subr.mxu0 0.0
    %1570 = vmatpush1.msra.mxu0 0.0
    %1571 = vmatprep.subr.mxu0 0.0
    %1572 = vmatpush1.msra.mxu0 0.0
    %1573 = vmatprep.subr.mxu0 0.0
    %1574 = vmatpush1.msra.mxu0 0.0
    %1575 = vmatprep.subr.mxu0 0.0
    %1576 = vmatpush1.msra.mxu0 0.0
    %1577 = vmatprep.subr.mxu0 0.0
    %1578 = vmatpush1.msra.mxu0 0.0
    %1579 = vmatprep.subr.mxu0 0.0
    %1580 = vmatpush1.msra.mxu0 0.0
    %1581 = vmatprep.subr.mxu0 0.0
    %1582 = vmatpush1.msra.mxu0 0.0
    %1583 = vmatprep.subr.mxu0 0.0
    %1584 = vmatpush1.msra.mxu0 0.0
    %1585 = vmatprep.subr.mxu0 0.0
    %1586 = vmatpush1.msra.mxu0 0.0
    %1587 = vmatprep.subr.mxu0 0.0
    %1588 = vmatpush1.msra.mxu0 0.0
    %1589 = vmatprep.subr.mxu0 0.0
    %1590 = vmatpush1.msra.mxu0 0.0
    %1591 = vmatprep.subr.mxu0 0.0
    %1592 = vmatpush1.msra.mxu0 0.0
    %1593 = vmatprep.subr.mxu0 0.0
    %1594 = vmatpush1.msra.mxu0 0.0
    %1595 = vmatprep.subr.mxu0 0.0
    %1596 = vmatpush1.msra.mxu0 0.0
    %1597 = vmatprep.subr.mxu0 0.0
    %1598 = vmatpush1.msra.mxu0 0.0
    %1599 = vmatprep.mubr.f32.mxu0 0.0
    %1600 = vmatmul.mubr.f32.gmra.mrb[0].mxu0 %v1533
    %v1601 = vpop.f32.mrb[0].mxu0
    %v1602 = vadd.f32 0.0, %v1601
    %v1603 = vpop.f32.mrb[0].mxu0
    %1604 = vdwg.mxu0
    %v1605 = vadd.f32 %v149, %v1602
    %v1606 = vlaneseq
    %v1607 = vshrl.u32 %v1606, 7
    %v1608 = vsub.s32 4, %v1607
    %v1609 = vrot.slane %v177, %v1608
    %v1610 = vadd.f32 %v1605, %v1609
    %s1611 = scalar_lea.vmem %s11, 192
    %v1612 = vld [vmem:[%s1611] sm:$0xff]
    %v1613 = vld [vmem:[%s1611 + $0x8] sm:$0xff]
    %v1614 = vld [vmem:[%s1611 + $0x10] sm:$0xff]
    %v1615 = vld [vmem:[%s1611 + $0x18] sm:$0xff]
    %v1616 = vld [vmem:[%s1611 + $0x20] sm:$0xff]
    %v1617 = vld [vmem:[%s1611 + $0x28] sm:$0xff]
    %v1618 = vld [vmem:[%s1611 + $0x30] sm:$0xff]
    %v1619 = vld [vmem:[%s1611 + $0x38] sm:$0xff]
    %v1620 = vld [vmem:[%s1611 + $0x40] sm:$0xff]
    %v1621 = vld [vmem:[%s1611 + $0x48] sm:$0xff]
    %v1622 = vld [vmem:[%s1611 + $0x50] sm:$0xff]
    %v1623 = vld [vmem:[%s1611 + $0x58] sm:$0xff]
    %v1624 = vld [vmem:[%s1611 + $0x60] sm:$0xff]
    %v1625 = vld [vmem:[%s1611 + $0x68] sm:$0xff]
    %v1626 = vld [vmem:[%s1611 + $0x70] sm:$0xff]
    %v1627 = vld [vmem:[%s1611 + $0x78] sm:$0xff]
    %v1628 = vld [vmem:[%s1611 + $0x80] sm:$0xff]
    %v1629 = vld [vmem:[%s1611 + $0x88] sm:$0xff]
    %v1630 = vld [vmem:[%s1611 + $0x90] sm:$0xff]
    %v1631 = vld [vmem:[%s1611 + $0x98] sm:$0xff]
    %v1632 = vld [vmem:[%s1611 + $0xa0] sm:$0xff]
    %v1633 = vld [vmem:[%s1611 + $0xa8] sm:$0xff]
    %v1634 = vld [vmem:[%s1611 + $0xb0] sm:$0xff]
    %v1635 = vld [vmem:[%s1611 + $0xb8] sm:$0xff]
    %s1636 = scalar_lea.vmem %s14, 8
    %v1637 = vld [vmem:[%s1636] sm:$0xff]
    %s1638 = scalar_lea.vmem %s12, 32
    %v1639 = vld [vmem:[%s1638] sm:$0xff]
    %v1640 = vld [vmem:[%s1638 + $0x8] sm:$0xff]
    %v1641 = vld [vmem:[%s1638 + $0x10] sm:$0xff]
    %v1642 = vld [vmem:[%s1638 + $0x18] sm:$0xff]
    %s1643 = scalar_lea.vmem %s13, 32
    %v1644 = vld [vmem:[%s1643] sm:$0xff]
    %v1645 = vld [vmem:[%s1643 + $0x8] sm:$0xff]
    %v1646 = vld [vmem:[%s1643 + $0x10] sm:$0xff]
    %v1647 = vld [vmem:[%s1643 + $0x18] sm:$0xff]
    %1649 = vrot.lane.b32.xlu0 %v1442, 32
    %v1650 = vpop.permute.xlu0 %1649
    %v1652 = vsel %vm190, %v1610, %v1650
    %1653 = vmatprep.subr.mxu0 0.0
    %1654 = vmatpush1.msra.mxu0 %v1652
    %1655 = vmatprep.subr.mxu0 0.0
    %1656 = vmatpush1.msra.mxu0 0.0
    %1657 = vmatprep.subr.mxu0 0.0
    %1658 = vmatpush1.msra.mxu0 0.0
    %1659 = vmatprep.subr.mxu0 0.0
    %1660 = vmatpush1.msra.mxu0 0.0
    %1661 = vmatprep.subr.mxu0 0.0
    %1662 = vmatpush1.msra.mxu0 0.0
    %1663 = vmatprep.subr.mxu0 0.0
    %1664 = vmatpush1.msra.mxu0 0.0
    %1665 = vmatprep.subr.mxu0 0.0
    %1666 = vmatpush1.msra.mxu0 0.0
    %1667 = vmatprep.subr.mxu0 0.0
    %1668 = vmatpush1.msra.mxu0 0.0
    %1669 = vmatprep.subr.mxu0 0.0
    %1670 = vmatpush1.msra.mxu0 0.0
    %1671 = vmatprep.subr.mxu0 0.0
    %1672 = vmatpush1.msra.mxu0 0.0
    %1673 = vmatprep.subr.mxu0 0.0
    %1674 = vmatpush1.msra.mxu0 0.0
    %1675 = vmatprep.subr.mxu0 0.0
    %1676 = vmatpush1.msra.mxu0 0.0
    %1677 = vmatprep.subr.mxu0 0.0
    %1678 = vmatpush1.msra.mxu0 0.0
    %1679 = vmatprep.subr.mxu0 0.0
    %1680 = vmatpush1.msra.mxu0 0.0
    %1681 = vmatprep.subr.mxu0 0.0
    %1682 = vmatpush1.msra.mxu0 0.0
    %1683 = vmatprep.subr.mxu0 0.0
    %1684 = vmatpush1.msra.mxu0 0.0
    %1685 = vmatprep.subr.mxu0 0.0
    %1686 = vmatpush1.msra.mxu0 0.0
    %1687 = vmatprep.subr.mxu0 0.0
    %1688 = vmatpush1.msra.mxu0 0.0
    %1689 = vmatprep.subr.mxu0 0.0
    %1690 = vmatpush1.msra.mxu0 0.0
    %1691 = vmatprep.subr.mxu0 0.0
    %1692 = vmatpush1.msra.mxu0 0.0
    %1693 = vmatprep.subr.mxu0 0.0
    %1694 = vmatpush1.msra.mxu0 0.0
    %1695 = vmatprep.subr.mxu0 0.0
    %1696 = vmatpush1.msra.mxu0 0.0
    %1697 = vmatprep.subr.mxu0 0.0
    %1698 = vmatpush1.msra.mxu0 0.0
    %1699 = vmatprep.subr.mxu0 0.0
    %1700 = vmatpush1.msra.mxu0 0.0
    %1701 = vmatprep.subr.mxu0 0.0
    %1702 = vmatpush1.msra.mxu0 0.0
    %1703 = vmatprep.subr.mxu0 0.0
    %1704 = vmatpush1.msra.mxu0 0.0
    %1705 = vmatprep.subr.mxu0 0.0
    %1706 = vmatpush1.msra.mxu0 0.0
    %1707 = vmatprep.subr.mxu0 0.0
    %1708 = vmatpush1.msra.mxu0 0.0
    %1709 = vmatprep.subr.mxu0 0.0
    %1710 = vmatpush1.msra.mxu0 0.0
    %1711 = vmatprep.subr.mxu0 0.0
    %1712 = vmatpush1.msra.mxu0 0.0
    %1713 = vmatprep.subr.mxu0 0.0
    %1714 = vmatpush1.msra.mxu0 0.0
    %1715 = vmatprep.subr.mxu0 0.0
    %1716 = vmatpush1.msra.mxu0 0.0
    %1717 = vmatprep.mubr.f32.mxu0 0.0
    %1718 = vmatmul.mubr.f32.gmra.mrb[0].mxu0 %v194
    %v1719 = vpop.f32.mrb[0].mxu0
    %v1720 = vadd.f32 0.0, %v1719
    %v1721 = vpop.f32.mrb[0].mxu0
    %1722 = vmatprep.mubr.f32.mxu0 0.0
    %1723 = vmatmul.mubr.f32.gmra.mrb[0].mxu0 %v197
    %v1724 = vpop.f32.mrb[0].mxu0
    %v1725 = vadd.f32 0.0, %v1724
    %v1726 = vpop.f32.mrb[0].mxu0
    %1727 = vmatprep.mubr.f32.mxu0 0.0
    %1728 = vmatmul.mubr.f32.gmra.mrb[0].mxu0 %v200
    %v1729 = vpop.f32.mrb[0].mxu0
    %v1730 = vadd.f32 0.0, %v1729
    %v1731 = vpop.f32.mrb[0].mxu0
    %1732 = vmatprep.mubr.f32.mxu0 0.0
    %1733 = vmatmul.mubr.f32.gmra.mrb[0].mxu0 %v203
    %v1734 = vpop.f32.mrb[0].mxu0
    %v1735 = vadd.f32 0.0, %v1734
    %v1736 = vpop.f32.mrb[0].mxu0
    %1737 = vmatprep.mubr.f32.mxu0 0.0
    %1738 = vmatmul.mubr.f32.gmra.mrb[0].mxu0 %v206
    %v1739 = vpop.f32.mrb[0].mxu0
    %v1740 = vadd.f32 0.0, %v1739
    %v1741 = vpop.f32.mrb[0].mxu0
    %1742 = vmatprep.mubr.f32.mxu0 0.0
    %1743 = vmatmul.mubr.f32.gmra.mrb[0].mxu0 %v209
    %v1744 = vpop.f32.mrb[0].mxu0
    %v1745 = vadd.f32 0.0, %v1744
    %v1746 = vpop.f32.mrb[0].mxu0
    %1747 = vmatprep.mubr.f32.mxu0 0.0
    %1748 = vmatmul.mubr.f32.gmra.mrb[0].mxu0 %v212
    %v1749 = vpop.f32.mrb[0].mxu0
    %v1750 = vadd.f32 0.0, %v1749
    %v1751 = vpop.f32.mrb[0].mxu0
    %1752 = vdwg.mxu0
    %1753 = vmatprep.subr.mxu0 0.0
    %1754 = vmatpush1.msra.mxu0 %v1652
    %1755 = vmatprep.subr.mxu0 0.0
    %1756 = vmatpush1.msra.mxu0 0.0
    %1757 = vmatprep.subr.mxu0 0.0
    %1758 = vmatpush1.msra.mxu0 0.0
    %1759 = vmatprep.subr.mxu0 0.0
    %1760 = vmatpush1.msra.mxu0 0.0
    %1761 = vmatprep.subr.mxu0 0.0
    %1762 = vmatpush1.msra.mxu0 0.0
    %1763 = vmatprep.subr.mxu0 0.0
    %1764 = vmatpush1.msra.mxu0 0.0
    %1765 = vmatprep.subr.mxu0 0.0
    %1766 = vmatpush1.msra.mxu0 0.0
    %1767 = vmatprep.subr.mxu0 0.0
    %1768 = vmatpush1.msra.mxu0 0.0
    %1769 = vmatprep.subr.mxu0 0.0
    %1770 = vmatpush1.msra.mxu0 0.0
    %1771 = vmatprep.subr.mxu0 0.0
    %1772 = vmatpush1.msra.mxu0 0.0
    %1773 = vmatprep.subr.mxu0 0.0
    %1774 = vmatpush1.msra.mxu0 0.0
    %1775 = vmatprep.subr.mxu0 0.0
    %1776 = vmatpush1.msra.mxu0 0.0
    %1777 = vmatprep.subr.mxu0 0.0
    %1778 = vmatpush1.msra.mxu0 0.0
    %1779 = vmatprep.subr.mxu0 0.0
    %1780 = vmatpush1.msra.mxu0 0.0
    %1781 = vmatprep.subr.mxu0 0.0
    %1782 = vmatpush1.msra.mxu0 0.0
    %1783 = vmatprep.subr.mxu0 0.0
    %1784 = vmatpush1.msra.mxu0 0.0
    %1785 = vmatprep.subr.mxu0 0.0
    %1786 = vmatpush1.msra.mxu0 0.0
    %1787 = vmatprep.subr.mxu0 0.0
    %1788 = vmatpush1.msra.mxu0 0.0
    %1789 = vmatprep.subr.mxu0 0.0
    %1790 = vmatpush1.msra.mxu0 0.0
    %1791 = vmatprep.subr.mxu0 0.0
    %1792 = vmatpush1.msra.mxu0 0.0
    %1793 = vmatprep.subr.mxu0 0.0
    %1794 = vmatpush1.msra.mxu0 0.0
    %1795 = vmatprep.subr.mxu0 0.0
    %1796 = vmatpush1.msra.mxu0 0.0
    %1797 = vmatprep.subr.mxu0 0.0
    %1798 = vmatpush1.msra.mxu0 0.0
    %1799 = vmatprep.subr.mxu0 0.0
    %1800 = vmatpush1.msra.mxu0 0.0
    %1801 = vmatprep.subr.mxu0 0.0
    %1802 = vmatpush1.msra.mxu0 0.0
    %1803 = vmatprep.subr.mxu0 0.0
    %1804 = vmatpush1.msra.mxu0 0.0
    %1805 = vmatprep.subr.mxu0 0.0
    %1806 = vmatpush1.msra.mxu0 0.0
    %1807 = vmatprep.subr.mxu0 0.0
    %1808 = vmatpush1.msra.mxu0 0.0
    %1809 = vmatprep.subr.mxu0 0.0
    %1810 = vmatpush1.msra.mxu0 0.0
    %1811 = vmatprep.subr.mxu0 0.0
    %1812 = vmatpush1.msra.mxu0 0.0
    %1813 = vmatprep.subr.mxu0 0.0
    %1814 = vmatpush1.msra.mxu0 0.0
    %1815 = vmatprep.subr.mxu0 0.0
    %1816 = vmatpush1.msra.mxu0 0.0
    %1817 = vmatprep.mubr.f32.mxu0 0.0
    %1818 = vmatmul.mubr.f32.gmra.mrb[0].mxu0 %v315
    %v1819 = vpop.f32.mrb[0].mxu0
    %v1820 = vadd.f32 0.0, %v1819
    %v1821 = vpop.f32.mrb[0].mxu0
    %1822 = vmatprep.mubr.f32.mxu0 0.0
    %1823 = vmatmul.mubr.f32.gmra.mrb[0].mxu0 %v318
    %v1824 = vpop.f32.mrb[0].mxu0
    %v1825 = vadd.f32 0.0, %v1824
    %v1826 = vpop.f32.mrb[0].mxu0
    %1827 = vmatprep.mubr.f32.mxu0 0.0
    %1828 = vmatmul.mubr.f32.gmra.mrb[0].mxu0 %v321
    %v1829 = vpop.f32.mrb[0].mxu0
    %v1830 = vadd.f32 0.0, %v1829
    %v1831 = vpop.f32.mrb[0].mxu0
    %1832 = vmatprep.mubr.f32.mxu0 0.0
    %1833 = vmatmul.mubr.f32.gmra.mrb[0].mxu0 %v324
    %v1834 = vpop.f32.mrb[0].mxu0
    %v1835 = vadd.f32 0.0, %v1834
    %v1836 = vpop.f32.mrb[0].mxu0
    %1837 = vmatprep.mubr.f32.mxu0 0.0
    %1838 = vmatmul.mubr.f32.gmra.mrb[0].mxu0 %v327
    %v1839 = vpop.f32.mrb[0].mxu0
    %v1840 = vadd.f32 0.0, %v1839
    %v1841 = vpop.f32.mrb[0].mxu0
    %1842 = vmatprep.mubr.f32.mxu0 0.0
    %1843 = vmatmul.mubr.f32.gmra.mrb[0].mxu0 %v330
    %v1844 = vpop.f32.mrb[0].mxu0
    %v1845 = vadd.f32 0.0, %v1844
    %v1846 = vpop.f32.mrb[0].mxu0
    %1847 = vmatprep.mubr.f32.mxu0 0.0
    %1848 = vmatmul.mubr.f32.gmra.mrb[0].mxu0 %v333
    %v1849 = vpop.f32.mrb[0].mxu0
    %v1850 = vadd.f32 0.0, %v1849
    %v1851 = vpop.f32.mrb[0].mxu0
    %1852 = vdwg.mxu0
    %v1853 = vsub.f32 %v1720, %v1820
    %v1854 = vsub.f32 %v1725, %v1825
    %v1855 = vsub.f32 %v1730, %v1830
    %v1856 = vsub.f32 %v1735, %v1835
    %v1857 = vsub.f32 %v1740, %v1840
    %v1858 = vsub.f32 %v1745, %v1845
    %v1859 = vsub.f32 %v1750, %v1850
    %v1860 = vmul.f32 %v1853, %v1853
    %v1861 = vmul.f32 %v1854, %v1854
    %v1862 = vmul.f32 %v1855, %v1855
    %v1863 = vmul.f32 %v1856, %v1856
    %v1864 = vmul.f32 %v1857, %v1857
    %v1865 = vmul.f32 %v1858, %v1858
    %v1866 = vmul.f32 %v1859, %v1859
    %1874 = vrot.lane.b32.xlu0 %v1860, 96
    %v1875 = vpop.permute.xlu0 %1874
    %1876 = vrot.lane.b32.xlu0 %v1861, 96
    %v1877 = vpop.permute.xlu0 %1876
    %1878 = vrot.lane.b32.xlu0 %v1862, 96
    %v1879 = vpop.permute.xlu0 %1878
    %1880 = vrot.lane.b32.xlu0 %v1863, 96
    %v1881 = vpop.permute.xlu0 %1880
    %1882 = vrot.lane.b32.xlu0 %v1864, 96
    %v1883 = vpop.permute.xlu0 %1882
    %1884 = vrot.lane.b32.xlu0 %v1865, 96
    %v1885 = vpop.permute.xlu0 %1884
    %1886 = vrot.lane.b32.xlu0 %v1866, 96
    %v1887 = vpop.permute.xlu0 %1886
    %v1895 = vsel %vm477, %v1875, 0.0
    %1896 = vadd.xlane.f32.xlu0 %v1895
    %v1897 = vpop.xlane.xlu0 %1896
    %v1898 = vsel %vm477, %v1877, 0.0
    %1899 = vadd.xlane.f32.xlu0 %v1898
    %v1900 = vpop.xlane.xlu0 %1899
    %v1901 = vsel %vm477, %v1879, 0.0
    %1902 = vadd.xlane.f32.xlu0 %v1901
    %v1903 = vpop.xlane.xlu0 %1902
    %v1904 = vsel %vm477, %v1881, 0.0
    %1905 = vadd.xlane.f32.xlu0 %v1904
    %v1906 = vpop.xlane.xlu0 %1905
    %v1907 = vsel %vm477, %v1883, 0.0
    %1908 = vadd.xlane.f32.xlu0 %v1907
    %v1909 = vpop.xlane.xlu0 %1908
    %v1910 = vsel %vm477, %v1885, 0.0
    %1911 = vadd.xlane.f32.xlu0 %v1910
    %v1912 = vpop.xlane.xlu0 %1911
    %v1913 = vsel %vm477, %v1887, 0.0
    %1914 = vadd.xlane.f32.xlu0 %v1913
    %v1915 = vpop.xlane.xlu0 %1914
    %1923 = vrot.lane.b32.xlu0 %v1820, 32
    %v1924 = vpop.permute.xlu0 %1923
    %1925 = vrot.lane.b32.xlu0 %v1825, 32
    %v1926 = vpop.permute.xlu0 %1925
    %1927 = vrot.lane.b32.xlu0 %v1830, 32
    %v1928 = vpop.permute.xlu0 %1927
    %1929 = vrot.lane.b32.xlu0 %v1835, 32
    %v1930 = vpop.permute.xlu0 %1929
    %1931 = vrot.lane.b32.xlu0 %v1840, 32
    %v1932 = vpop.permute.xlu0 %1931
    %1933 = vrot.lane.b32.xlu0 %v1845, 32
    %v1934 = vpop.permute.xlu0 %1933
    %1935 = vrot.lane.b32.xlu0 %v1850, 32
    %v1936 = vpop.permute.xlu0 %1935
    %v1944 = vsel %vm190, %v1720, %v1924
    %v1945 = vsel %vm190, %v1725, %v1926
    %v1946 = vsel %vm190, %v1730, %v1928
    %v1947 = vsel %vm190, %v1735, %v1930
    %v1948 = vsel %vm190, %v1740, %v1932
    %v1949 = vsel %vm190, %v1745, %v1934
    %v1950 = vsel %vm190, %v1750, %v1936
    %v1951 = vlaneseq
    %v1952 = vshrl.u32 %v1951, 7
    %v1953 = vsub.s32 6, %v1952
    %v1954 = vrot.slane %v1637, %v1953
    %v1955 = vmul.f32 %v1897, %v1954
    %v1956 = vmul.f32 %v1900, %v1954
    %v1957 = vmul.f32 %v1903, %v1954
    %v1958 = vmul.f32 %v1906, %v1954
    %v1959 = vmul.f32 %v1909, %v1954
    %v1960 = vmul.f32 %v1912, %v1954
    %v1961 = vmul.f32 %v1915, %v1954
    %v1963 = vsel %vm545, %v1944, 0
    %v1966 = vsel %vm545, %v1945, 0
    %v1969 = vsel %vm545, %v1946, 0
    %v1972 = vsel %vm545, %v1947, 0
    %v1975 = vsel %vm545, %v1948, 0
    %v1978 = vsel %vm545, %v1949, 0
    %v1981 = vsel %vm545, %v1950, 0
    %1983 = vmatprep.subr.mxu0 0.0
    %1984 = vmatpush1.msra.mxu0 %v1612
    %1985 = vmatprep.subr.mxu0 0.0
    %1986 = vmatpush1.msra.mxu0 %v1613
    %1987 = vmatprep.subr.mxu0 0.0
    %1988 = vmatpush1.msra.mxu0 %v1614
    %1989 = vmatprep.subr.mxu0 0.0
    %1990 = vmatpush1.msra.mxu0 %v1615
    %1991 = vmatprep.subr.mxu0 0.0
    %1992 = vmatpush1.msra.mxu0 %v1616
    %1993 = vmatprep.subr.mxu0 0.0
    %1994 = vmatpush1.msra.mxu0 %v1617
    %1995 = vmatprep.subr.mxu0 0.0
    %1996 = vmatpush1.msra.mxu0 %v1618
    %1997 = vmatprep.subr.mxu0 0.0
    %1998 = vmatpush1.msra.mxu0 %v1619
    %1999 = vmatprep.subr.mxu0 0.0
    %2000 = vmatpush1.msra.mxu0 0.0
    %2001 = vmatprep.subr.mxu0 0.0
    %2002 = vmatpush1.msra.mxu0 0.0
    %2003 = vmatprep.subr.mxu0 0.0
    %2004 = vmatpush1.msra.mxu0 0.0
    %2005 = vmatprep.subr.mxu0 0.0
    %2006 = vmatpush1.msra.mxu0 0.0
    %2007 = vmatprep.subr.mxu0 0.0
    %2008 = vmatpush1.msra.mxu0 0.0
    %2009 = vmatprep.subr.mxu0 0.0
    %2010 = vmatpush1.msra.mxu0 0.0
    %2011 = vmatprep.subr.mxu0 0.0
    %2012 = vmatpush1.msra.mxu0 0.0
    %2013 = vmatprep.subr.mxu0 0.0
    %2014 = vmatpush1.msra.mxu0 0.0
    %2015 = vmatprep.subr.mxu0 0.0
    %2016 = vmatpush1.msra.mxu0 0.0
    %2017 = vmatprep.subr.mxu0 0.0
    %2018 = vmatpush1.msra.mxu0 0.0
    %2019 = vmatprep.subr.mxu0 0.0
    %2020 = vmatpush1.msra.mxu0 0.0
    %2021 = vmatprep.subr.mxu0 0.0
    %2022 = vmatpush1.msra.mxu0 0.0
    %2023 = vmatprep.subr.mxu0 0.0
    %2024 = vmatpush1.msra.mxu0 0.0
    %2025 = vmatprep.subr.mxu0 0.0
    %2026 = vmatpush1.msra.mxu0 0.0
    %2027 = vmatprep.subr.mxu0 0.0
    %2028 = vmatpush1.msra.mxu0 0.0
    %2029 = vmatprep.subr.mxu0 0.0
    %2030 = vmatpush1.msra.mxu0 0.0
    %2031 = vmatprep.subr.mxu0 0.0
    %2032 = vmatpush1.msra.mxu0 0.0
    %2033 = vmatprep.subr.mxu0 0.0
    %2034 = vmatpush1.msra.mxu0 0.0
    %2035 = vmatprep.subr.mxu0 0.0
    %2036 = vmatpush1.msra.mxu0 0.0
    %2037 = vmatprep.subr.mxu0 0.0
    %2038 = vmatpush1.msra.mxu0 0.0
    %2039 = vmatprep.subr.mxu0 0.0
    %2040 = vmatpush1.msra.mxu0 0.0
    %2041 = vmatprep.subr.mxu0 0.0
    %2042 = vmatpush1.msra.mxu0 0.0
    %2043 = vmatprep.subr.mxu0 0.0
    %2044 = vmatpush1.msra.mxu0 0.0
    %2045 = vmatprep.subr.mxu0 0.0
    %2046 = vmatpush1.msra.mxu0 0.0
    %2047 = vmatprep.mubr.f32.mxu0 0.0
    %2048 = vmatmul.mubr.f32.gmra.mrb[0].mxu0 %v1963
    %v2049 = vpop.f32.mrb[0].mxu0
    %v2050 = vadd.f32 %v1955, %v2049
    %v2051 = vpop.f32.mrb[0].mxu0
    %2052 = vmatprep.mubr.f32.mxu0 0.0
    %2053 = vmatmul.mubr.f32.gmra.mrb[0].mxu0 %v1966
    %v2054 = vpop.f32.mrb[0].mxu0
    %v2055 = vadd.f32 %v1956, %v2054
    %v2056 = vpop.f32.mrb[0].mxu0
    %2057 = vmatprep.mubr.f32.mxu0 0.0
    %2058 = vmatmul.mubr.f32.gmra.mrb[0].mxu0 %v1969
    %v2059 = vpop.f32.mrb[0].mxu0
    %v2060 = vadd.f32 %v1957, %v2059
    %v2061 = vpop.f32.mrb[0].mxu0
    %2062 = vmatprep.mubr.f32.mxu0 0.0
    %2063 = vmatmul.mubr.f32.gmra.mrb[0].mxu0 %v1972
    %v2064 = vpop.f32.mrb[0].mxu0
    %v2065 = vadd.f32 %v1958, %v2064
    %v2066 = vpop.f32.mrb[0].mxu0
    %2067 = vmatprep.mubr.f32.mxu0 0.0
    %2068 = vmatmul.mubr.f32.gmra.mrb[0].mxu0 %v1975
    %v2069 = vpop.f32.mrb[0].mxu0
    %v2070 = vadd.f32 %v1959, %v2069
    %v2071 = vpop.f32.mrb[0].mxu0
    %2072 = vmatprep.mubr.f32.mxu0 0.0
    %2073 = vmatmul.mubr.f32.gmra.mrb[0].mxu0 %v1978
    %v2074 = vpop.f32.mrb[0].mxu0
    %v2075 = vadd.f32 %v1960, %v2074
    %v2076 = vpop.f32.mrb[0].mxu0
    %2077 = vmatprep.mubr.f32.mxu0 0.0
    %2078 = vmatmul.mubr.f32.gmra.mrb[0].mxu0 %v1981
    %v2079 = vpop.f32.mrb[0].mxu0
    %v2080 = vadd.f32 %v1961, %v2079
    %v2081 = vpop.f32.mrb[0].mxu0
    %2082 = vdwg.mxu0
    %v2083 = vlaneseq
    %v2084 = vshrl.u32 %v2083, 7
    %v2085 = vsub.s32 0, %v2084
    %v2086 = vrot.slane %v1637, %v2085
    %v2087 = vadd.f32 %v2050, %v2086
    %v2088 = vadd.f32 %v2055, %v2086
    %v2089 = vadd.f32 %v2060, %v2086
    %v2090 = vadd.f32 %v2065, %v2086
    %v2091 = vadd.f32 %v2070, %v2086
    %v2092 = vadd.f32 %v2075, %v2086
    %v2093 = vadd.f32 %v2080, %v2086
    %v2094 = vxor.u32 %v2087, 2147483648
    %v2095 = vxor.u32 %v2088, 2147483648
    %v2096 = vxor.u32 %v2089, 2147483648
    %v2097 = vxor.u32 %v2090, 2147483648
    %v2098 = vxor.u32 %v2091, 2147483648
    %v2099 = vxor.u32 %v2092, 2147483648
    %v2100 = vxor.u32 %v2093, 2147483648
    %v2101 = vmul.f32 %v2094, 1.442695
    %v2102 = vpow.pop %v2101
    %v2103 = vmul.f32 %v2095, 1.442695
    %v2104 = vpow.pop %v2103
    %v2105 = vmul.f32 %v2096, 1.442695
    %v2106 = vpow.pop %v2105
    %v2107 = vmul.f32 %v2097, 1.442695
    %v2108 = vpow.pop %v2107
    %v2109 = vmul.f32 %v2098, 1.442695
    %v2110 = vpow.pop %v2109
    %v2111 = vmul.f32 %v2099, 1.442695
    %v2112 = vpow.pop %v2111
    %v2113 = vmul.f32 %v2100, 1.442695
    %v2114 = vpow.pop %v2113
    %v2115 = vadd.f32 %v2102, 1.0
    %v2116 = vadd.f32 %v2104, 1.0
    %v2117 = vadd.f32 %v2106, 1.0
    %v2118 = vadd.f32 %v2108, 1.0
    %v2119 = vadd.f32 %v2110, 1.0
    %v2120 = vadd.f32 %v2112, 1.0
    %v2121 = vadd.f32 %v2114, 1.0
    %v2122 = vrcp.pop %v2115
    %v2123 = vmul.f32 1.0, %v2122
    %v2124 = vrcp.pop %v2116
    %v2125 = vmul.f32 1.0, %v2124
    %v2126 = vrcp.pop %v2117
    %v2127 = vmul.f32 1.0, %v2126
    %v2128 = vrcp.pop %v2118
    %v2129 = vmul.f32 1.0, %v2128
    %v2130 = vrcp.pop %v2119
    %v2131 = vmul.f32 1.0, %v2130
    %v2132 = vrcp.pop %v2120
    %v2133 = vmul.f32 1.0, %v2132
    %v2134 = vrcp.pop %v2121
    %v2135 = vmul.f32 1.0, %v2134
    %v2136 = vmul.f32 %v2087, %v2123
    %v2137 = vmul.f32 %v2088, %v2125
    %v2138 = vmul.f32 %v2089, %v2127
    %v2139 = vmul.f32 %v2090, %v2129
    %v2140 = vmul.f32 %v2091, %v2131
    %v2141 = vmul.f32 %v2092, %v2133
    %v2142 = vmul.f32 %v2093, %v2135
    %v2143 = vlaneseq
    %v2144 = vshrl.u32 %v2143, 7
    %v2145 = vsub.s32 1, %v2144
    %v2146 = vrot.slane %v1637, %v2145
    %v2148 = vsel %vm190, %v2136, 0
    %v2151 = vsel %vm190, %v2137, 0
    %v2154 = vsel %vm190, %v2138, 0
    %v2157 = vsel %vm190, %v2139, 0
    %v2160 = vsel %vm190, %v2140, 0
    %v2163 = vsel %vm190, %v2141, 0
    %v2166 = vsel %vm190, %v2142, 0
    %2168 = vmatprep.subr.mxu0 0.0
    %2169 = vmatpush1.msra.mxu0 %v1620
    %2170 = vmatprep.subr.mxu0 0.0
    %2171 = vmatpush1.msra.mxu0 %v1621
    %2172 = vmatprep.subr.mxu0 0.0
    %2173 = vmatpush1.msra.mxu0 %v1622
    %2174 = vmatprep.subr.mxu0 0.0
    %2175 = vmatpush1.msra.mxu0 %v1623
    %2176 = vmatprep.subr.mxu0 0.0
    %2177 = vmatpush1.msra.mxu0 0.0
    %2178 = vmatprep.subr.mxu0 0.0
    %2179 = vmatpush1.msra.mxu0 0.0
    %2180 = vmatprep.subr.mxu0 0.0
    %2181 = vmatpush1.msra.mxu0 0.0
    %2182 = vmatprep.subr.mxu0 0.0
    %2183 = vmatpush1.msra.mxu0 0.0
    %2184 = vmatprep.subr.mxu0 0.0
    %2185 = vmatpush1.msra.mxu0 0.0
    %2186 = vmatprep.subr.mxu0 0.0
    %2187 = vmatpush1.msra.mxu0 0.0
    %2188 = vmatprep.subr.mxu0 0.0
    %2189 = vmatpush1.msra.mxu0 0.0
    %2190 = vmatprep.subr.mxu0 0.0
    %2191 = vmatpush1.msra.mxu0 0.0
    %2192 = vmatprep.subr.mxu0 0.0
    %2193 = vmatpush1.msra.mxu0 0.0
    %2194 = vmatprep.subr.mxu0 0.0
    %2195 = vmatpush1.msra.mxu0 0.0
    %2196 = vmatprep.subr.mxu0 0.0
    %2197 = vmatpush1.msra.mxu0 0.0
    %2198 = vmatprep.subr.mxu0 0.0
    %2199 = vmatpush1.msra.mxu0 0.0
    %2200 = vmatprep.subr.mxu0 0.0
    %2201 = vmatpush1.msra.mxu0 0.0
    %2202 = vmatprep.subr.mxu0 0.0
    %2203 = vmatpush1.msra.mxu0 0.0
    %2204 = vmatprep.subr.mxu0 0.0
    %2205 = vmatpush1.msra.mxu0 0.0
    %2206 = vmatprep.subr.mxu0 0.0
    %2207 = vmatpush1.msra.mxu0 0.0
    %2208 = vmatprep.subr.mxu0 0.0
    %2209 = vmatpush1.msra.mxu0 0.0
    %2210 = vmatprep.subr.mxu0 0.0
    %2211 = vmatpush1.msra.mxu0 0.0
    %2212 = vmatprep.subr.mxu0 0.0
    %2213 = vmatpush1.msra.mxu0 0.0
    %2214 = vmatprep.subr.mxu0 0.0
    %2215 = vmatpush1.msra.mxu0 0.0
    %2216 = vmatprep.subr.mxu0 0.0
    %2217 = vmatpush1.msra.mxu0 0.0
    %2218 = vmatprep.subr.mxu0 0.0
    %2219 = vmatpush1.msra.mxu0 0.0
    %2220 = vmatprep.subr.mxu0 0.0
    %2221 = vmatpush1.msra.mxu0 0.0
    %2222 = vmatprep.subr.mxu0 0.0
    %2223 = vmatpush1.msra.mxu0 0.0
    %2224 = vmatprep.subr.mxu0 0.0
    %2225 = vmatpush1.msra.mxu0 0.0
    %2226 = vmatprep.subr.mxu0 0.0
    %2227 = vmatpush1.msra.mxu0 0.0
    %2228 = vmatprep.subr.mxu0 0.0
    %2229 = vmatpush1.msra.mxu0 0.0
    %2230 = vmatprep.subr.mxu0 0.0
    %2231 = vmatpush1.msra.mxu0 0.0
    %2232 = vmatprep.mubr.f32.mxu0 0.0
    %2233 = vmatmul.mubr.f32.gmra.mrb[0].mxu0 %v2148
    %v2234 = vpop.f32.mrb[0].mxu0
    %v2235 = vadd.f32 %v2146, %v2234
    %v2236 = vpop.f32.mrb[0].mxu0
    %2237 = vmatprep.mubr.f32.mxu0 0.0
    %2238 = vmatmul.mubr.f32.gmra.mrb[0].mxu0 %v2151
    %v2239 = vpop.f32.mrb[0].mxu0
    %v2240 = vadd.f32 %v2146, %v2239
    %v2241 = vpop.f32.mrb[0].mxu0
    %2242 = vmatprep.mubr.f32.mxu0 0.0
    %2243 = vmatmul.mubr.f32.gmra.mrb[0].mxu0 %v2154
    %v2244 = vpop.f32.mrb[0].mxu0
    %v2245 = vadd.f32 %v2146, %v2244
    %v2246 = vpop.f32.mrb[0].mxu0
    %2247 = vmatprep.mubr.f32.mxu0 0.0
    %2248 = vmatmul.mubr.f32.gmra.mrb[0].mxu0 %v2157
    %v2249 = vpop.f32.mrb[0].mxu0
    %v2250 = vadd.f32 %v2146, %v2249
    %v2251 = vpop.f32.mrb[0].mxu0
    %2252 = vmatprep.mubr.f32.mxu0 0.0
    %2253 = vmatmul.mubr.f32.gmra.mrb[0].mxu0 %v2160
    %v2254 = vpop.f32.mrb[0].mxu0
    %v2255 = vadd.f32 %v2146, %v2254
    %v2256 = vpop.f32.mrb[0].mxu0
    %2257 = vmatprep.mubr.f32.mxu0 0.0
    %2258 = vmatmul.mubr.f32.gmra.mrb[0].mxu0 %v2163
    %v2259 = vpop.f32.mrb[0].mxu0
    %v2260 = vadd.f32 %v2146, %v2259
    %v2261 = vpop.f32.mrb[0].mxu0
    %2262 = vmatprep.mubr.f32.mxu0 0.0
    %2263 = vmatmul.mubr.f32.gmra.mrb[0].mxu0 %v2166
    %v2264 = vpop.f32.mrb[0].mxu0
    %v2265 = vadd.f32 %v2146, %v2264
    %v2266 = vpop.f32.mrb[0].mxu0
    %2267 = vdwg.mxu0
    %v2268 = vxor.u32 %v2235, 2147483648
    %v2269 = vxor.u32 %v2240, 2147483648
    %v2270 = vxor.u32 %v2245, 2147483648
    %v2271 = vxor.u32 %v2250, 2147483648
    %v2272 = vxor.u32 %v2255, 2147483648
    %v2273 = vxor.u32 %v2260, 2147483648
    %v2274 = vxor.u32 %v2265, 2147483648
    %v2275 = vmul.f32 %v2268, 1.442695
    %v2276 = vpow.pop %v2275
    %v2277 = vmul.f32 %v2269, 1.442695
    %v2278 = vpow.pop %v2277
    %v2279 = vmul.f32 %v2270, 1.442695
    %v2280 = vpow.pop %v2279
    %v2281 = vmul.f32 %v2271, 1.442695
    %v2282 = vpow.pop %v2281
    %v2283 = vmul.f32 %v2272, 1.442695
    %v2284 = vpow.pop %v2283
    %v2285 = vmul.f32 %v2273, 1.442695
    %v2286 = vpow.pop %v2285
    %v2287 = vmul.f32 %v2274, 1.442695
    %v2288 = vpow.pop %v2287
    %v2289 = vadd.f32 %v2276, 1.0
    %v2290 = vadd.f32 %v2278, 1.0
    %v2291 = vadd.f32 %v2280, 1.0
    %v2292 = vadd.f32 %v2282, 1.0
    %v2293 = vadd.f32 %v2284, 1.0
    %v2294 = vadd.f32 %v2286, 1.0
    %v2295 = vadd.f32 %v2288, 1.0
    %v2296 = vrcp.pop %v2289
    %v2297 = vmul.f32 1.0, %v2296
    %v2298 = vrcp.pop %v2290
    %v2299 = vmul.f32 1.0, %v2298
    %v2300 = vrcp.pop %v2291
    %v2301 = vmul.f32 1.0, %v2300
    %v2302 = vrcp.pop %v2292
    %v2303 = vmul.f32 1.0, %v2302
    %v2304 = vrcp.pop %v2293
    %v2305 = vmul.f32 1.0, %v2304
    %v2306 = vrcp.pop %v2294
    %v2307 = vmul.f32 1.0, %v2306
    %v2308 = vrcp.pop %v2295
    %v2309 = vmul.f32 1.0, %v2308
    %v2310 = vmul.f32 %v2235, %v2297
    %v2311 = vmul.f32 %v2240, %v2299
    %v2312 = vmul.f32 %v2245, %v2301
    %v2313 = vmul.f32 %v2250, %v2303
    %v2314 = vmul.f32 %v2255, %v2305
    %v2315 = vmul.f32 %v2260, %v2307
    %v2316 = vmul.f32 %v2265, %v2309
    %v2318 = vsel %vm190, %v2310, 0
    %v2321 = vsel %vm190, %v2311, 0
    %v2324 = vsel %vm190, %v2312, 0
    %v2327 = vsel %vm190, %v2313, 0
    %v2330 = vsel %vm190, %v2314, 0
    %v2333 = vsel %vm190, %v2315, 0
    %v2336 = vsel %vm190, %v2316, 0
    %2338 = vmatprep.subr.mxu0 0.0
    %2339 = vmatpush1.msra.mxu0 %v1639
    %2340 = vmatprep.subr.mxu0 0.0
    %2341 = vmatpush1.msra.mxu0 %v1640
    %2342 = vmatprep.subr.mxu0 0.0
    %2343 = vmatpush1.msra.mxu0 %v1641
    %2344 = vmatprep.subr.mxu0 0.0
    %2345 = vmatpush1.msra.mxu0 %v1642
    %2346 = vmatprep.subr.mxu0 0.0
    %2347 = vmatpush1.msra.mxu0 0.0
    %2348 = vmatprep.subr.mxu0 0.0
    %2349 = vmatpush1.msra.mxu0 0.0
    %2350 = vmatprep.subr.mxu0 0.0
    %2351 = vmatpush1.msra.mxu0 0.0
    %2352 = vmatprep.subr.mxu0 0.0
    %2353 = vmatpush1.msra.mxu0 0.0
    %2354 = vmatprep.subr.mxu0 0.0
    %2355 = vmatpush1.msra.mxu0 0.0
    %2356 = vmatprep.subr.mxu0 0.0
    %2357 = vmatpush1.msra.mxu0 0.0
    %2358 = vmatprep.subr.mxu0 0.0
    %2359 = vmatpush1.msra.mxu0 0.0
    %2360 = vmatprep.subr.mxu0 0.0
    %2361 = vmatpush1.msra.mxu0 0.0
    %2362 = vmatprep.subr.mxu0 0.0
    %2363 = vmatpush1.msra.mxu0 0.0
    %2364 = vmatprep.subr.mxu0 0.0
    %2365 = vmatpush1.msra.mxu0 0.0
    %2366 = vmatprep.subr.mxu0 0.0
    %2367 = vmatpush1.msra.mxu0 0.0
    %2368 = vmatprep.subr.mxu0 0.0
    %2369 = vmatpush1.msra.mxu0 0.0
    %2370 = vmatprep.subr.mxu0 0.0
    %2371 = vmatpush1.msra.mxu0 0.0
    %2372 = vmatprep.subr.mxu0 0.0
    %2373 = vmatpush1.msra.mxu0 0.0
    %2374 = vmatprep.subr.mxu0 0.0
    %2375 = vmatpush1.msra.mxu0 0.0
    %2376 = vmatprep.subr.mxu0 0.0
    %2377 = vmatpush1.msra.mxu0 0.0
    %2378 = vmatprep.subr.mxu0 0.0
    %2379 = vmatpush1.msra.mxu0 0.0
    %2380 = vmatprep.subr.mxu0 0.0
    %2381 = vmatpush1.msra.mxu0 0.0
    %2382 = vmatprep.subr.mxu0 0.0
    %2383 = vmatpush1.msra.mxu0 0.0
    %2384 = vmatprep.subr.mxu0 0.0
    %2385 = vmatpush1.msra.mxu0 0.0
    %2386 = vmatprep.subr.mxu0 0.0
    %2387 = vmatpush1.msra.mxu0 0.0
    %2388 = vmatprep.subr.mxu0 0.0
    %2389 = vmatpush1.msra.mxu0 0.0
    %2390 = vmatprep.subr.mxu0 0.0
    %2391 = vmatpush1.msra.mxu0 0.0
    %2392 = vmatprep.subr.mxu0 0.0
    %2393 = vmatpush1.msra.mxu0 0.0
    %2394 = vmatprep.subr.mxu0 0.0
    %2395 = vmatpush1.msra.mxu0 0.0
    %2396 = vmatprep.subr.mxu0 0.0
    %2397 = vmatpush1.msra.mxu0 0.0
    %2398 = vmatprep.subr.mxu0 0.0
    %2399 = vmatpush1.msra.mxu0 0.0
    %2400 = vmatprep.subr.mxu0 0.0
    %2401 = vmatpush1.msra.mxu0 0.0
    %2402 = vmatprep.mubr.f32.mxu0 0.0
    %2403 = vmatmul.mubr.f32.gmra.mrb[0].mxu0 %v2318
    %v2404 = vpop.f32.mrb[0].mxu0
    %v2405 = vadd.f32 0.0, %v2404
    %v2406 = vpop.f32.mrb[0].mxu0
    %2407 = vmatprep.mubr.f32.mxu0 0.0
    %2408 = vmatmul.mubr.f32.gmra.mrb[0].mxu0 %v2321
    %v2409 = vpop.f32.mrb[0].mxu0
    %v2410 = vadd.f32 0.0, %v2409
    %v2411 = vpop.f32.mrb[0].mxu0
    %2412 = vmatprep.mubr.f32.mxu0 0.0
    %2413 = vmatmul.mubr.f32.gmra.mrb[0].mxu0 %v2324
    %v2414 = vpop.f32.mrb[0].mxu0
    %v2415 = vadd.f32 0.0, %v2414
    %v2416 = vpop.f32.mrb[0].mxu0
    %2417 = vmatprep.mubr.f32.mxu0 0.0
    %2418 = vmatmul.mubr.f32.gmra.mrb[0].mxu0 %v2327
    %v2419 = vpop.f32.mrb[0].mxu0
    %v2420 = vadd.f32 0.0, %v2419
    %v2421 = vpop.f32.mrb[0].mxu0
    %2422 = vmatprep.mubr.f32.mxu0 0.0
    %2423 = vmatmul.mubr.f32.gmra.mrb[0].mxu0 %v2330
    %v2424 = vpop.f32.mrb[0].mxu0
    %v2425 = vadd.f32 0.0, %v2424
    %v2426 = vpop.f32.mrb[0].mxu0
    %2427 = vmatprep.mubr.f32.mxu0 0.0
    %2428 = vmatmul.mubr.f32.gmra.mrb[0].mxu0 %v2333
    %v2429 = vpop.f32.mrb[0].mxu0
    %v2430 = vadd.f32 0.0, %v2429
    %v2431 = vpop.f32.mrb[0].mxu0
    %2432 = vmatprep.mubr.f32.mxu0 0.0
    %2433 = vmatmul.mubr.f32.gmra.mrb[0].mxu0 %v2336
    %v2434 = vpop.f32.mrb[0].mxu0
    %v2435 = vadd.f32 0.0, %v2434
    %v2436 = vpop.f32.mrb[0].mxu0
    %2437 = vdwg.mxu0
    %v2438 = vlaneseq
    %v2439 = vshrl.u32 %v2438, 7
    %v2440 = vsub.s32 5, %v2439
    %v2441 = vrot.slane %v1637, %v2440
    %2443 = vrot.lane.b32.xlu0 %v2441, 32
    %v2444 = vpop.permute.xlu0 %2443
    %v2446 = vadd.f32 %v2405, %v2444
    %v2447 = vadd.f32 %v2410, %v2444
    %v2448 = vadd.f32 %v2415, %v2444
    %v2449 = vadd.f32 %v2420, %v2444
    %v2450 = vadd.f32 %v2425, %v2444
    %v2451 = vadd.f32 %v2430, %v2444
    %v2452 = vadd.f32 %v2435, %v2444
    %v2453 = vxor.u32 %v2446, 2147483648
    %v2454 = vxor.u32 %v2447, 2147483648
    %v2455 = vxor.u32 %v2448, 2147483648
    %v2456 = vxor.u32 %v2449, 2147483648
    %v2457 = vxor.u32 %v2450, 2147483648
    %v2458 = vxor.u32 %v2451, 2147483648
    %v2459 = vxor.u32 %v2452, 2147483648
    %v2460 = vmul.f32 %v2453, 1.442695
    %v2461 = vpow.pop %v2460
    %v2462 = vmul.f32 %v2454, 1.442695
    %v2463 = vpow.pop %v2462
    %v2464 = vmul.f32 %v2455, 1.442695
    %v2465 = vpow.pop %v2464
    %v2466 = vmul.f32 %v2456, 1.442695
    %v2467 = vpow.pop %v2466
    %v2468 = vmul.f32 %v2457, 1.442695
    %v2469 = vpow.pop %v2468
    %v2470 = vmul.f32 %v2458, 1.442695
    %v2471 = vpow.pop %v2470
    %v2472 = vmul.f32 %v2459, 1.442695
    %v2473 = vpow.pop %v2472
    %v2474 = vadd.f32 %v2461, 1.0
    %v2475 = vadd.f32 %v2463, 1.0
    %v2476 = vadd.f32 %v2465, 1.0
    %v2477 = vadd.f32 %v2467, 1.0
    %v2478 = vadd.f32 %v2469, 1.0
    %v2479 = vadd.f32 %v2471, 1.0
    %v2480 = vadd.f32 %v2473, 1.0
    %v2481 = vrcp.pop %v2474
    %v2482 = vmul.f32 1.0, %v2481
    %v2483 = vrcp.pop %v2475
    %v2484 = vmul.f32 1.0, %v2483
    %v2485 = vrcp.pop %v2476
    %v2486 = vmul.f32 1.0, %v2485
    %v2487 = vrcp.pop %v2477
    %v2488 = vmul.f32 1.0, %v2487
    %v2489 = vrcp.pop %v2478
    %v2490 = vmul.f32 1.0, %v2489
    %v2491 = vrcp.pop %v2479
    %v2492 = vmul.f32 1.0, %v2491
    %v2493 = vrcp.pop %v2480
    %v2494 = vmul.f32 1.0, %v2493
    %2496 = vset.pattern.permute.xlu0 32
    %2497 = vperm.xlu0 %2496, %v2482
    %v2498 = vpop.permute.xlu0 %2497
    %2501 = vset.pattern.permute.xlu0 32
    %2502 = vperm.xlu0 %2501, %v2484
    %v2503 = vpop.permute.xlu0 %2502
    %2506 = vset.pattern.permute.xlu0 32
    %2507 = vperm.xlu0 %2506, %v2486
    %v2508 = vpop.permute.xlu0 %2507
    %2511 = vset.pattern.permute.xlu0 32
    %2512 = vperm.xlu0 %2511, %v2488
    %v2513 = vpop.permute.xlu0 %2512
    %2516 = vset.pattern.permute.xlu0 32
    %2517 = vperm.xlu0 %2516, %v2490
    %v2518 = vpop.permute.xlu0 %2517
    %2521 = vset.pattern.permute.xlu0 32
    %2522 = vperm.xlu0 %2521, %v2492
    %v2523 = vpop.permute.xlu0 %2522
    %2526 = vset.pattern.permute.xlu0 32
    %2527 = vperm.xlu0 %2526, %v2494
    %v2528 = vpop.permute.xlu0 %2527
    %v2530 = vmul.f32 %v2310, %v2498
    %v2531 = vmul.f32 %v2311, %v2503
    %v2532 = vmul.f32 %v2312, %v2508
    %v2533 = vmul.f32 %v2313, %v2513
    %v2534 = vmul.f32 %v2314, %v2518
    %v2535 = vmul.f32 %v2315, %v2523
    %v2536 = vmul.f32 %v2316, %v2528
    %v2537 = vmul.f32 %v2498, %v2405
    %v2538 = vmul.f32 %v2503, %v2410
    %v2539 = vmul.f32 %v2508, %v2415
    %v2540 = vmul.f32 %v2513, %v2420
    %v2541 = vmul.f32 %v2518, %v2425
    %v2542 = vmul.f32 %v2523, %v2430
    %v2543 = vmul.f32 %v2528, %v2435
    %v2544 = vlaneseq
    %v2545 = vshrl.u32 %v2544, 7
    %v2546 = vsub.s32 2, %v2545
    %v2547 = vrot.slane %v1637, %v2546
    %v2548 = vadd.f32 %v2537, %v2547
    %v2549 = vadd.f32 %v2538, %v2547
    %v2550 = vadd.f32 %v2539, %v2547
    %v2551 = vadd.f32 %v2540, %v2547
    %v2552 = vadd.f32 %v2541, %v2547
    %v2553 = vadd.f32 %v2542, %v2547
    %v2554 = vadd.f32 %v2543, %v2547
    %v2555 = vxor.u32 %v2548, 2147483648
    %v2556 = vxor.u32 %v2549, 2147483648
    %v2557 = vxor.u32 %v2550, 2147483648
    %v2558 = vxor.u32 %v2551, 2147483648
    %v2559 = vxor.u32 %v2552, 2147483648
    %v2560 = vxor.u32 %v2553, 2147483648
    %v2561 = vxor.u32 %v2554, 2147483648
    %v2562 = vmul.f32 %v2555, 1.442695
    %v2563 = vpow.pop %v2562
    %v2564 = vmul.f32 %v2556, 1.442695
    %v2565 = vpow.pop %v2564
    %v2566 = vmul.f32 %v2557, 1.442695
    %v2567 = vpow.pop %v2566
    %v2568 = vmul.f32 %v2558, 1.442695
    %v2569 = vpow.pop %v2568
    %v2570 = vmul.f32 %v2559, 1.442695
    %v2571 = vpow.pop %v2570
    %v2572 = vmul.f32 %v2560, 1.442695
    %v2573 = vpow.pop %v2572
    %v2574 = vmul.f32 %v2561, 1.442695
    %v2575 = vpow.pop %v2574
    %v2576 = vadd.f32 %v2563, 1.0
    %v2577 = vadd.f32 %v2565, 1.0
    %v2578 = vadd.f32 %v2567, 1.0
    %v2579 = vadd.f32 %v2569, 1.0
    %v2580 = vadd.f32 %v2571, 1.0
    %v2581 = vadd.f32 %v2573, 1.0
    %v2582 = vadd.f32 %v2575, 1.0
    %v2583 = vrcp.pop %v2576
    %v2584 = vmul.f32 1.0, %v2583
    %v2585 = vrcp.pop %v2577
    %v2586 = vmul.f32 1.0, %v2585
    %v2587 = vrcp.pop %v2578
    %v2588 = vmul.f32 1.0, %v2587
    %v2589 = vrcp.pop %v2579
    %v2590 = vmul.f32 1.0, %v2589
    %v2591 = vrcp.pop %v2580
    %v2592 = vmul.f32 1.0, %v2591
    %v2593 = vrcp.pop %v2581
    %v2594 = vmul.f32 1.0, %v2593
    %v2595 = vrcp.pop %v2582
    %v2596 = vmul.f32 1.0, %v2595
    %v2597 = vmul.f32 %v2548, %v2584
    %v2598 = vmul.f32 %v2549, %v2586
    %v2599 = vmul.f32 %v2550, %v2588
    %v2600 = vmul.f32 %v2551, %v2590
    %v2601 = vmul.f32 %v2552, %v2592
    %v2602 = vmul.f32 %v2553, %v2594
    %v2603 = vmul.f32 %v2554, %v2596
    %v2605 = vsel %vm190, %v2597, 0
    %v2608 = vsel %vm190, %v2598, 0
    %v2611 = vsel %vm190, %v2599, 0
    %v2614 = vsel %vm190, %v2600, 0
    %v2617 = vsel %vm190, %v2601, 0
    %v2620 = vsel %vm190, %v2602, 0
    %v2623 = vsel %vm190, %v2603, 0
    %2625 = vmatprep.subr.mxu0 0.0
    %2626 = vmatpush1.msra.mxu0 %v1644
    %2627 = vmatprep.subr.mxu0 0.0
    %2628 = vmatpush1.msra.mxu0 %v1645
    %2629 = vmatprep.subr.mxu0 0.0
    %2630 = vmatpush1.msra.mxu0 %v1646
    %2631 = vmatprep.subr.mxu0 0.0
    %2632 = vmatpush1.msra.mxu0 %v1647
    %2633 = vmatprep.subr.mxu0 0.0
    %2634 = vmatpush1.msra.mxu0 0.0
    %2635 = vmatprep.subr.mxu0 0.0
    %2636 = vmatpush1.msra.mxu0 0.0
    %2637 = vmatprep.subr.mxu0 0.0
    %2638 = vmatpush1.msra.mxu0 0.0
    %2639 = vmatprep.subr.mxu0 0.0
    %2640 = vmatpush1.msra.mxu0 0.0
    %2641 = vmatprep.subr.mxu0 0.0
    %2642 = vmatpush1.msra.mxu0 0.0
    %2643 = vmatprep.subr.mxu0 0.0
    %2644 = vmatpush1.msra.mxu0 0.0
    %2645 = vmatprep.subr.mxu0 0.0
    %2646 = vmatpush1.msra.mxu0 0.0
    %2647 = vmatprep.subr.mxu0 0.0
    %2648 = vmatpush1.msra.mxu0 0.0
    %2649 = vmatprep.subr.mxu0 0.0
    %2650 = vmatpush1.msra.mxu0 0.0
    %2651 = vmatprep.subr.mxu0 0.0
    %2652 = vmatpush1.msra.mxu0 0.0
    %2653 = vmatprep.subr.mxu0 0.0
    %2654 = vmatpush1.msra.mxu0 0.0
    %2655 = vmatprep.subr.mxu0 0.0
    %2656 = vmatpush1.msra.mxu0 0.0
    %2657 = vmatprep.subr.mxu0 0.0
    %2658 = vmatpush1.msra.mxu0 0.0
    %2659 = vmatprep.subr.mxu0 0.0
    %2660 = vmatpush1.msra.mxu0 0.0
    %2661 = vmatprep.subr.mxu0 0.0
    %2662 = vmatpush1.msra.mxu0 0.0
    %2663 = vmatprep.subr.mxu0 0.0
    %2664 = vmatpush1.msra.mxu0 0.0
    %2665 = vmatprep.subr.mxu0 0.0
    %2666 = vmatpush1.msra.mxu0 0.0
    %2667 = vmatprep.subr.mxu0 0.0
    %2668 = vmatpush1.msra.mxu0 0.0
    %2669 = vmatprep.subr.mxu0 0.0
    %2670 = vmatpush1.msra.mxu0 0.0
    %2671 = vmatprep.subr.mxu0 0.0
    %2672 = vmatpush1.msra.mxu0 0.0
    %2673 = vmatprep.subr.mxu0 0.0
    %2674 = vmatpush1.msra.mxu0 0.0
    %2675 = vmatprep.subr.mxu0 0.0
    %2676 = vmatpush1.msra.mxu0 0.0
    %2677 = vmatprep.subr.mxu0 0.0
    %2678 = vmatpush1.msra.mxu0 0.0
    %2679 = vmatprep.subr.mxu0 0.0
    %2680 = vmatpush1.msra.mxu0 0.0
    %2681 = vmatprep.subr.mxu0 0.0
    %2682 = vmatpush1.msra.mxu0 0.0
    %2683 = vmatprep.subr.mxu0 0.0
    %2684 = vmatpush1.msra.mxu0 0.0
    %2685 = vmatprep.subr.mxu0 0.0
    %2686 = vmatpush1.msra.mxu0 0.0
    %2687 = vmatprep.subr.mxu0 0.0
    %2688 = vmatpush1.msra.mxu0 0.0
    %2689 = vmatprep.mubr.f32.mxu0 0.0
    %2690 = vmatmul.mubr.f32.gmra.mrb[0].mxu0 %v2605
    %v2691 = vpop.f32.mrb[0].mxu0
    %v2692 = vadd.f32 0.0, %v2691
    %v2693 = vpop.f32.mrb[0].mxu0
    %2694 = vmatprep.mubr.f32.mxu0 0.0
    %2695 = vmatmul.mubr.f32.gmra.mrb[0].mxu0 %v2608
    %v2696 = vpop.f32.mrb[0].mxu0
    %v2697 = vadd.f32 0.0, %v2696
    %v2698 = vpop.f32.mrb[0].mxu0
    %2699 = vmatprep.mubr.f32.mxu0 0.0
    %2700 = vmatmul.mubr.f32.gmra.mrb[0].mxu0 %v2611
    %v2701 = vpop.f32.mrb[0].mxu0
    %v2702 = vadd.f32 0.0, %v2701
    %v2703 = vpop.f32.mrb[0].mxu0
    %2704 = vmatprep.mubr.f32.mxu0 0.0
    %2705 = vmatmul.mubr.f32.gmra.mrb[0].mxu0 %v2614
    %v2706 = vpop.f32.mrb[0].mxu0
    %v2707 = vadd.f32 0.0, %v2706
    %v2708 = vpop.f32.mrb[0].mxu0
    %2709 = vmatprep.mubr.f32.mxu0 0.0
    %2710 = vmatmul.mubr.f32.gmra.mrb[0].mxu0 %v2617
    %v2711 = vpop.f32.mrb[0].mxu0
    %v2712 = vadd.f32 0.0, %v2711
    %v2713 = vpop.f32.mrb[0].mxu0
    %2714 = vmatprep.mubr.f32.mxu0 0.0
    %2715 = vmatmul.mubr.f32.gmra.mrb[0].mxu0 %v2620
    %v2716 = vpop.f32.mrb[0].mxu0
    %v2717 = vadd.f32 0.0, %v2716
    %v2718 = vpop.f32.mrb[0].mxu0
    %2719 = vmatprep.mubr.f32.mxu0 0.0
    %2720 = vmatmul.mubr.f32.gmra.mrb[0].mxu0 %v2623
    %v2721 = vpop.f32.mrb[0].mxu0
    %v2722 = vadd.f32 0.0, %v2721
    %v2723 = vpop.f32.mrb[0].mxu0
    %2724 = vdwg.mxu0
    %2726 = vset.pattern.permute.xlu0 0
    %2727 = vperm.xlu0 %2726, %v2692
    %v2728 = vpop.permute.xlu0 %2727
    %2731 = vset.pattern.permute.xlu0 0
    %2732 = vperm.xlu0 %2731, %v2697
    %v2733 = vpop.permute.xlu0 %2732
    %2736 = vset.pattern.permute.xlu0 0
    %2737 = vperm.xlu0 %2736, %v2702
    %v2738 = vpop.permute.xlu0 %2737
    %2741 = vset.pattern.permute.xlu0 0
    %2742 = vperm.xlu0 %2741, %v2707
    %v2743 = vpop.permute.xlu0 %2742
    %2746 = vset.pattern.permute.xlu0 0
    %2747 = vperm.xlu0 %2746, %v2712
    %v2748 = vpop.permute.xlu0 %2747
    %2751 = vset.pattern.permute.xlu0 0
    %2752 = vperm.xlu0 %2751, %v2717
    %v2753 = vpop.permute.xlu0 %2752
    %2756 = vset.pattern.permute.xlu0 0
    %2757 = vperm.xlu0 %2756, %v2722
    %v2758 = vpop.permute.xlu0 %2757
    %v2760 = vmul.f32 %v1853, %v2728
    %v2761 = vmul.f32 %v1854, %v2733
    %v2762 = vmul.f32 %v1855, %v2738
    %v2763 = vmul.f32 %v1856, %v2743
    %v2764 = vmul.f32 %v1857, %v2748
    %v2765 = vmul.f32 %v1858, %v2753
    %v2766 = vmul.f32 %v1859, %v2758
    %v2767 = vsel %vm190, %v2530, %v2760
    %v2768 = vsel %vm190, %v2531, %v2761
    %v2769 = vsel %vm190, %v2532, %v2762
    %v2770 = vsel %vm190, %v2533, %v2763
    %v2771 = vsel %vm190, %v2534, %v2764
    %v2772 = vsel %vm190, %v2535, %v2765
    %v2773 = vsel %vm190, %v2536, %v2766
    %2774 = vmatprep.subr.mxu0 0.0
    %2775 = vmatpush1.msra.mxu0 %v2767
    %2776 = vmatprep.subr.mxu0 0.0
    %2777 = vmatpush1.msra.mxu0 %v2768
    %2778 = vmatprep.subr.mxu0 0.0
    %2779 = vmatpush1.msra.mxu0 %v2769
    %2780 = vmatprep.subr.mxu0 0.0
    %2781 = vmatpush1.msra.mxu0 %v2770
    %2782 = vmatprep.subr.mxu0 0.0
    %2783 = vmatpush1.msra.mxu0 %v2771
    %2784 = vmatprep.subr.mxu0 0.0
    %2785 = vmatpush1.msra.mxu0 %v2772
    %2786 = vmatprep.subr.mxu0 0.0
    %2787 = vmatpush1.msra.mxu0 %v2773
    %2788 = vmatprep.subr.mxu0 0.0
    %2789 = vmatpush1.msra.mxu0 0.0
    %2790 = vmatprep.subr.mxu0 0.0
    %2791 = vmatpush1.msra.mxu0 0.0
    %2792 = vmatprep.subr.mxu0 0.0
    %2793 = vmatpush1.msra.mxu0 0.0
    %2794 = vmatprep.subr.mxu0 0.0
    %2795 = vmatpush1.msra.mxu0 0.0
    %2796 = vmatprep.subr.mxu0 0.0
    %2797 = vmatpush1.msra.mxu0 0.0
    %2798 = vmatprep.subr.mxu0 0.0
    %2799 = vmatpush1.msra.mxu0 0.0
    %2800 = vmatprep.subr.mxu0 0.0
    %2801 = vmatpush1.msra.mxu0 0.0
    %2802 = vmatprep.subr.mxu0 0.0
    %2803 = vmatpush1.msra.mxu0 0.0
    %2804 = vmatprep.subr.mxu0 0.0
    %2805 = vmatpush1.msra.mxu0 0.0
    %2806 = vmatprep.subr.mxu0 0.0
    %2807 = vmatpush1.msra.mxu0 0.0
    %2808 = vmatprep.subr.mxu0 0.0
    %2809 = vmatpush1.msra.mxu0 0.0
    %2810 = vmatprep.subr.mxu0 0.0
    %2811 = vmatpush1.msra.mxu0 0.0
    %2812 = vmatprep.subr.mxu0 0.0
    %2813 = vmatpush1.msra.mxu0 0.0
    %2814 = vmatprep.subr.mxu0 0.0
    %2815 = vmatpush1.msra.mxu0 0.0
    %2816 = vmatprep.subr.mxu0 0.0
    %2817 = vmatpush1.msra.mxu0 0.0
    %2818 = vmatprep.subr.mxu0 0.0
    %2819 = vmatpush1.msra.mxu0 0.0
    %2820 = vmatprep.subr.mxu0 0.0
    %2821 = vmatpush1.msra.mxu0 0.0
    %2822 = vmatprep.subr.mxu0 0.0
    %2823 = vmatpush1.msra.mxu0 0.0
    %2824 = vmatprep.subr.mxu0 0.0
    %2825 = vmatpush1.msra.mxu0 0.0
    %2826 = vmatprep.subr.mxu0 0.0
    %2827 = vmatpush1.msra.mxu0 0.0
    %2828 = vmatprep.subr.mxu0 0.0
    %2829 = vmatpush1.msra.mxu0 0.0
    %2830 = vmatprep.subr.mxu0 0.0
    %2831 = vmatpush1.msra.mxu0 0.0
    %2832 = vmatprep.subr.mxu0 0.0
    %2833 = vmatpush1.msra.mxu0 0.0
    %2834 = vmatprep.subr.mxu0 0.0
    %2835 = vmatpush1.msra.mxu0 0.0
    %2836 = vmatprep.subr.mxu0 0.0
    %2837 = vmatpush1.msra.mxu0 0.0
    %2838 = vmatprep.mubr.f32.mxu0 0.0
    %2839 = vmatmul.mubr.f32.gmra.mrb[0].mxu0 %v1360
    %v2840 = vpop.f32.mrb[0].mxu0
    %v2841 = vadd.f32 0.0, %v2840
    %v2842 = vpop.f32.mrb[0].mxu0
    %2843 = vdwg.mxu0
    %2845 = vrot.lane.b32.xlu0 %v2841, 32
    %v2846 = vpop.permute.xlu0 %2845
    %v2848 = vsel %vm190, %v1610, %v2846
    %v2849 = vlaneseq
    %v2850 = vshrl.u32 %v2849, 7
    %v2851 = vsub.s32 3, %v2850
    %v2852 = vrot.slane %v1637, %v2851
    %v2854 = vsel %vm545, %v2848, 0
    %2856 = vmatprep.subr.mxu0 0.0
    %2857 = vmatpush1.msra.mxu0 %v1624
    %2858 = vmatprep.subr.mxu0 0.0
    %2859 = vmatpush1.msra.mxu0 %v1625
    %2860 = vmatprep.subr.mxu0 0.0
    %2861 = vmatpush1.msra.mxu0 %v1626
    %2862 = vmatprep.subr.mxu0 0.0
    %2863 = vmatpush1.msra.mxu0 %v1627
    %2864 = vmatprep.subr.mxu0 0.0
    %2865 = vmatpush1.msra.mxu0 %v1628
    %2866 = vmatprep.subr.mxu0 0.0
    %2867 = vmatpush1.msra.mxu0 %v1629
    %2868 = vmatprep.subr.mxu0 0.0
    %2869 = vmatpush1.msra.mxu0 %v1630
    %2870 = vmatprep.subr.mxu0 0.0
    %2871 = vmatpush1.msra.mxu0 %v1631
    %2872 = vmatprep.subr.mxu0 0.0
    %2873 = vmatpush1.msra.mxu0 0.0
    %2874 = vmatprep.subr.mxu0 0.0
    %2875 = vmatpush1.msra.mxu0 0.0
    %2876 = vmatprep.subr.mxu0 0.0
    %2877 = vmatpush1.msra.mxu0 0.0
    %2878 = vmatprep.subr.mxu0 0.0
    %2879 = vmatpush1.msra.mxu0 0.0
    %2880 = vmatprep.subr.mxu0 0.0
    %2881 = vmatpush1.msra.mxu0 0.0
    %2882 = vmatprep.subr.mxu0 0.0
    %2883 = vmatpush1.msra.mxu0 0.0
    %2884 = vmatprep.subr.mxu0 0.0
    %2885 = vmatpush1.msra.mxu0 0.0
    %2886 = vmatprep.subr.mxu0 0.0
    %2887 = vmatpush1.msra.mxu0 0.0
    %2888 = vmatprep.subr.mxu0 0.0
    %2889 = vmatpush1.msra.mxu0 0.0
    %2890 = vmatprep.subr.mxu0 0.0
    %2891 = vmatpush1.msra.mxu0 0.0
    %2892 = vmatprep.subr.mxu0 0.0
    %2893 = vmatpush1.msra.mxu0 0.0
    %2894 = vmatprep.subr.mxu0 0.0
    %2895 = vmatpush1.msra.mxu0 0.0
    %2896 = vmatprep.subr.mxu0 0.0
    %2897 = vmatpush1.msra.mxu0 0.0
    %2898 = vmatprep.subr.mxu0 0.0
    %2899 = vmatpush1.msra.mxu0 0.0
    %2900 = vmatprep.subr.mxu0 0.0
    %2901 = vmatpush1.msra.mxu0 0.0
    %2902 = vmatprep.subr.mxu0 0.0
    %2903 = vmatpush1.msra.mxu0 0.0
    %2904 = vmatprep.subr.mxu0 0.0
    %2905 = vmatpush1.msra.mxu0 0.0
    %2906 = vmatprep.subr.mxu0 0.0
    %2907 = vmatpush1.msra.mxu0 0.0
    %2908 = vmatprep.subr.mxu0 0.0
    %2909 = vmatpush1.msra.mxu0 0.0
    %2910 = vmatprep.subr.mxu0 0.0
    %2911 = vmatpush1.msra.mxu0 0.0
    %2912 = vmatprep.subr.mxu0 0.0
    %2913 = vmatpush1.msra.mxu0 0.0
    %2914 = vmatprep.subr.mxu0 0.0
    %2915 = vmatpush1.msra.mxu0 0.0
    %2916 = vmatprep.subr.mxu0 0.0
    %2917 = vmatpush1.msra.mxu0 0.0
    %2918 = vmatprep.subr.mxu0 0.0
    %2919 = vmatpush1.msra.mxu0 0.0
    %2920 = vmatprep.mubr.f32.mxu0 0.0
    %2921 = vmatmul.mubr.f32.gmra.mrb[0].mxu0 %v2854
    %v2922 = vpop.f32.mrb[0].mxu0
    %v2923 = vadd.f32 %v2852, %v2922
    %v2924 = vpop.f32.mrb[0].mxu0
    %2925 = vdwg.mxu0
    %v2926 = vxor.u32 %v2923, 2147483648
    %v2927 = vmul.f32 %v2926, 1.442695
    %v2928 = vpow.pop %v2927
    %v2929 = vadd.f32 %v2928, 1.0
    %v2930 = vrcp.pop %v2929
    %v2931 = vmul.f32 1.0, %v2930
    %v2932 = vmul.f32 %v2923, %v2931
    %v2934 = vsel %vm190, %v2932, 0
    %2936 = vmatprep.subr.mxu0 0.0
    %2937 = vmatpush1.msra.mxu0 %v1632
    %2938 = vmatprep.subr.mxu0 0.0
    %2939 = vmatpush1.msra.mxu0 %v1633
    %2940 = vmatprep.subr.mxu0 0.0
    %2941 = vmatpush1.msra.mxu0 %v1634
    %2942 = vmatprep.subr.mxu0 0.0
    %2943 = vmatpush1.msra.mxu0 %v1635
    %2944 = vmatprep.subr.mxu0 0.0
    %2945 = vmatpush1.msra.mxu0 0.0
    %2946 = vmatprep.subr.mxu0 0.0
    %2947 = vmatpush1.msra.mxu0 0.0
    %2948 = vmatprep.subr.mxu0 0.0
    %2949 = vmatpush1.msra.mxu0 0.0
    %2950 = vmatprep.subr.mxu0 0.0
    %2951 = vmatpush1.msra.mxu0 0.0
    %2952 = vmatprep.subr.mxu0 0.0
    %2953 = vmatpush1.msra.mxu0 0.0
    %2954 = vmatprep.subr.mxu0 0.0
    %2955 = vmatpush1.msra.mxu0 0.0
    %2956 = vmatprep.subr.mxu0 0.0
    %2957 = vmatpush1.msra.mxu0 0.0
    %2958 = vmatprep.subr.mxu0 0.0
    %2959 = vmatpush1.msra.mxu0 0.0
    %2960 = vmatprep.subr.mxu0 0.0
    %2961 = vmatpush1.msra.mxu0 0.0
    %2962 = vmatprep.subr.mxu0 0.0
    %2963 = vmatpush1.msra.mxu0 0.0
    %2964 = vmatprep.subr.mxu0 0.0
    %2965 = vmatpush1.msra.mxu0 0.0
    %2966 = vmatprep.subr.mxu0 0.0
    %2967 = vmatpush1.msra.mxu0 0.0
    %2968 = vmatprep.subr.mxu0 0.0
    %2969 = vmatpush1.msra.mxu0 0.0
    %2970 = vmatprep.subr.mxu0 0.0
    %2971 = vmatpush1.msra.mxu0 0.0
    %2972 = vmatprep.subr.mxu0 0.0
    %2973 = vmatpush1.msra.mxu0 0.0
    %2974 = vmatprep.subr.mxu0 0.0
    %2975 = vmatpush1.msra.mxu0 0.0
    %2976 = vmatprep.subr.mxu0 0.0
    %2977 = vmatpush1.msra.mxu0 0.0
    %2978 = vmatprep.subr.mxu0 0.0
    %2979 = vmatpush1.msra.mxu0 0.0
    %2980 = vmatprep.subr.mxu0 0.0
    %2981 = vmatpush1.msra.mxu0 0.0
    %2982 = vmatprep.subr.mxu0 0.0
    %2983 = vmatpush1.msra.mxu0 0.0
    %2984 = vmatprep.subr.mxu0 0.0
    %2985 = vmatpush1.msra.mxu0 0.0
    %2986 = vmatprep.subr.mxu0 0.0
    %2987 = vmatpush1.msra.mxu0 0.0
    %2988 = vmatprep.subr.mxu0 0.0
    %2989 = vmatpush1.msra.mxu0 0.0
    %2990 = vmatprep.subr.mxu0 0.0
    %2991 = vmatpush1.msra.mxu0 0.0
    %2992 = vmatprep.subr.mxu0 0.0
    %2993 = vmatpush1.msra.mxu0 0.0
    %2994 = vmatprep.subr.mxu0 0.0
    %2995 = vmatpush1.msra.mxu0 0.0
    %2996 = vmatprep.subr.mxu0 0.0
    %2997 = vmatpush1.msra.mxu0 0.0
    %2998 = vmatprep.subr.mxu0 0.0
    %2999 = vmatpush1.msra.mxu0 0.0
    %3000 = vmatprep.mubr.f32.mxu0 0.0
    %3001 = vmatmul.mubr.f32.gmra.mrb[0].mxu0 %v2934
    %v3002 = vpop.f32.mrb[0].mxu0
    %v3003 = vadd.f32 0.0, %v3002
    %v3004 = vpop.f32.mrb[0].mxu0
    %3005 = vdwg.mxu0
    %v3006 = vadd.f32 %v1610, %v3003
    %v3007 = vlaneseq
    %v3008 = vshrl.u32 %v3007, 7
    %v3009 = vsub.s32 4, %v3008
    %v3010 = vrot.slane %v1637, %v3009
    %v3011 = vadd.f32 %v3006, %v3010
    %v3012 = vld [vmem:[%s7] sm:$0xff]
    %v3013 = vld [vmem:[%s7 + $0x8] sm:$0xff]
    %v3014 = vld [vmem:[%s7 + $0x10] sm:$0xff]
    %v3015 = vld [vmem:[%s7 + $0x18] sm:$0xff]
    %v3016 = vld [vmem:[%s8] sm:$0x1]
    %v3018 = vlaneseq
    %v3019 = vshrl.u32 %v3018, 7
    %v3020 = vsub.s32 0, %v3019
    %v3021 = vrot.slane %v3016, %v3020
    %v3024 = vsel %vm190, %v3011, 0
    %3026 = vmatprep.subr.mxu0 0.0
    %3027 = vmatpush1.msra.mxu0 %v3012
    %3028 = vmatprep.subr.mxu0 0.0
    %3029 = vmatpush1.msra.mxu0 %v3013
    %3030 = vmatprep.subr.mxu0 0.0
    %3031 = vmatpush1.msra.mxu0 %v3014
    %3032 = vmatprep.subr.mxu0 0.0
    %3033 = vmatpush1.msra.mxu0 %v3015
    %3034 = vmatprep.subr.mxu0 0.0
    %3035 = vmatpush1.msra.mxu0 0.0
    %3036 = vmatprep.subr.mxu0 0.0
    %3037 = vmatpush1.msra.mxu0 0.0
    %3038 = vmatprep.subr.mxu0 0.0
    %3039 = vmatpush1.msra.mxu0 0.0
    %3040 = vmatprep.subr.mxu0 0.0
    %3041 = vmatpush1.msra.mxu0 0.0
    %3042 = vmatprep.subr.mxu0 0.0
    %3043 = vmatpush1.msra.mxu0 0.0
    %3044 = vmatprep.subr.mxu0 0.0
    %3045 = vmatpush1.msra.mxu0 0.0
    %3046 = vmatprep.subr.mxu0 0.0
    %3047 = vmatpush1.msra.mxu0 0.0
    %3048 = vmatprep.subr.mxu0 0.0
    %3049 = vmatpush1.msra.mxu0 0.0
    %3050 = vmatprep.subr.mxu0 0.0
    %3051 = vmatpush1.msra.mxu0 0.0
    %3052 = vmatprep.subr.mxu0 0.0
    %3053 = vmatpush1.msra.mxu0 0.0
    %3054 = vmatprep.subr.mxu0 0.0
    %3055 = vmatpush1.msra.mxu0 0.0
    %3056 = vmatprep.subr.mxu0 0.0
    %3057 = vmatpush1.msra.mxu0 0.0
    %3058 = vmatprep.subr.mxu0 0.0
    %3059 = vmatpush1.msra.mxu0 0.0
    %3060 = vmatprep.subr.mxu0 0.0
    %3061 = vmatpush1.msra.mxu0 0.0
    %3062 = vmatprep.subr.mxu0 0.0
    %3063 = vmatpush1.msra.mxu0 0.0
    %3064 = vmatprep.subr.mxu0 0.0
    %3065 = vmatpush1.msra.mxu0 0.0
    %3066 = vmatprep.subr.mxu0 0.0
    %3067 = vmatpush1.msra.mxu0 0.0
    %3068 = vmatprep.subr.mxu0 0.0
    %3069 = vmatpush1.msra.mxu0 0.0
    %3070 = vmatprep.subr.mxu0 0.0
    %3071 = vmatpush1.msra.mxu0 0.0
    %3072 = vmatprep.subr.mxu0 0.0
    %3073 = vmatpush1.msra.mxu0 0.0
    %3074 = vmatprep.subr.mxu0 0.0
    %3075 = vmatpush1.msra.mxu0 0.0
    %3076 = vmatprep.subr.mxu0 0.0
    %3077 = vmatpush1.msra.mxu0 0.0
    %3078 = vmatprep.subr.mxu0 0.0
    %3079 = vmatpush1.msra.mxu0 0.0
    %3080 = vmatprep.subr.mxu0 0.0
    %3081 = vmatpush1.msra.mxu0 0.0
    %3082 = vmatprep.subr.mxu0 0.0
    %3083 = vmatpush1.msra.mxu0 0.0
    %3084 = vmatprep.subr.mxu0 0.0
    %3085 = vmatpush1.msra.mxu0 0.0
    %3086 = vmatprep.subr.mxu0 0.0
    %3087 = vmatpush1.msra.mxu0 0.0
    %3088 = vmatprep.subr.mxu0 0.0
    %3089 = vmatpush1.msra.mxu0 0.0
    %3090 = vmatprep.mubr.f32.mxu0 0.0
    %3091 = vmatmul.mubr.f32.gmra.mrb[0].mxu0 %v3024
    %v3092 = vpop.f32.mrb[0].mxu0
    %v3093 = vadd.f32 %v3021, %v3092
    %v3094 = vpop.f32.mrb[0].mxu0
    %3095 = vdwg.mxu0
    %v3096 = vmax.f32 %v3093, 0.0
    %v3097 = vld [vmem:[%s9] sm:$0xff]
    %v3098 = vld [vmem:[%s9 + $0x8] sm:$0xff]
    %v3099 = vld [vmem:[%s9 + $0x10] sm:$0xff]
    %v3100 = vld [vmem:[%s9 + $0x18] sm:$0xff]
    %v3101 = vld [vmem:[%s10] sm:$0x1]
    %v3103 = vlaneseq
    %v3104 = vshrl.u32 %v3103, 7
    %v3105 = vsub.s32 0, %v3104
    %v3106 = vrot.slane %v3101, %v3105
    %v3109 = vsel %vm190, %v3096, 0
    %3111 = vmatprep.subr.mxu0 0.0
    %3112 = vmatpush1.msra.mxu0 %v3097
    %3113 = vmatprep.subr.mxu0 0.0
    %3114 = vmatpush1.msra.mxu0 %v3098
    %3115 = vmatprep.subr.mxu0 0.0
    %3116 = vmatpush1.msra.mxu0 %v3099
    %3117 = vmatprep.subr.mxu0 0.0
    %3118 = vmatpush1.msra.mxu0 %v3100
    %3119 = vmatprep.subr.mxu0 0.0
    %3120 = vmatpush1.msra.mxu0 0.0
    %3121 = vmatprep.subr.mxu0 0.0
    %3122 = vmatpush1.msra.mxu0 0.0
    %3123 = vmatprep.subr.mxu0 0.0
    %3124 = vmatpush1.msra.mxu0 0.0
    %3125 = vmatprep.subr.mxu0 0.0
    %3126 = vmatpush1.msra.mxu0 0.0
    %3127 = vmatprep.subr.mxu0 0.0
    %3128 = vmatpush1.msra.mxu0 0.0
    %3129 = vmatprep.subr.mxu0 0.0
    %3130 = vmatpush1.msra.mxu0 0.0
    %3131 = vmatprep.subr.mxu0 0.0
    %3132 = vmatpush1.msra.mxu0 0.0
    %3133 = vmatprep.subr.mxu0 0.0
    %3134 = vmatpush1.msra.mxu0 0.0
    %3135 = vmatprep.subr.mxu0 0.0
    %3136 = vmatpush1.msra.mxu0 0.0
    %3137 = vmatprep.subr.mxu0 0.0
    %3138 = vmatpush1.msra.mxu0 0.0
    %3139 = vmatprep.subr.mxu0 0.0
    %3140 = vmatpush1.msra.mxu0 0.0
    %3141 = vmatprep.subr.mxu0 0.0
    %3142 = vmatpush1.msra.mxu0 0.0
    %3143 = vmatprep.subr.mxu0 0.0
    %3144 = vmatpush1.msra.mxu0 0.0
    %3145 = vmatprep.subr.mxu0 0.0
    %3146 = vmatpush1.msra.mxu0 0.0
    %3147 = vmatprep.subr.mxu0 0.0
    %3148 = vmatpush1.msra.mxu0 0.0
    %3149 = vmatprep.subr.mxu0 0.0
    %3150 = vmatpush1.msra.mxu0 0.0
    %3151 = vmatprep.subr.mxu0 0.0
    %3152 = vmatpush1.msra.mxu0 0.0
    %3153 = vmatprep.subr.mxu0 0.0
    %3154 = vmatpush1.msra.mxu0 0.0
    %3155 = vmatprep.subr.mxu0 0.0
    %3156 = vmatpush1.msra.mxu0 0.0
    %3157 = vmatprep.subr.mxu0 0.0
    %3158 = vmatpush1.msra.mxu0 0.0
    %3159 = vmatprep.subr.mxu0 0.0
    %3160 = vmatpush1.msra.mxu0 0.0
    %3161 = vmatprep.subr.mxu0 0.0
    %3162 = vmatpush1.msra.mxu0 0.0
    %3163 = vmatprep.subr.mxu0 0.0
    %3164 = vmatpush1.msra.mxu0 0.0
    %3165 = vmatprep.subr.mxu0 0.0
    %3166 = vmatpush1.msra.mxu0 0.0
    %3167 = vmatprep.subr.mxu0 0.0
    %3168 = vmatpush1.msra.mxu0 0.0
    %3169 = vmatprep.subr.mxu0 0.0
    %3170 = vmatpush1.msra.mxu0 0.0
    %3171 = vmatprep.subr.mxu0 0.0
    %3172 = vmatpush1.msra.mxu0 0.0
    %3173 = vmatprep.subr.mxu0 0.0
    %3174 = vmatpush1.msra.mxu0 0.0
    %3175 = vmatprep.mubr.f32.mxu0 0.0
    %3176 = vmatmul.mubr.f32.gmra.mrb[0].mxu0 %v3109
    %v3177 = vpop.f32.mrb[0].mxu0
    %v3178 = vadd.f32 %v3106, %v3177
    %v3179 = vpop.f32.mrb[0].mxu0
    %3180 = vdwg.mxu0
    %3181 = vst [vmem:[#allocation2] sm:$0xff] %v3178
    // Predicated region
    $region62: #{tpu_custom_call.1} parent=1 // pred_check
      _
    $region63: #{tpu_custom_call.1} parent=1 // pred_check_branch
      %3183 = sbr.rel (0) target = $region65
    $region64: #{tpu_custom_call.1} parent=1 // pred_region
      %s3185 = ssub.s32 128, 128
      %3186 = vsyncadd [#allocation3], %s3185
      %s3188 = sshll.u32 [#allocation2], 4
      %s3189 = int_to_ptr.vmem [resolvable:$true] %s3188
      %3191 = dma.vmem_to_hbm [thread:$0]  %s3189, 128, %s15, [#allocation3]
    $region65: #{tpu_custom_call.1} parent=1 // pred_fallthru
      _
    // Predicated region
    $region66: #{tpu_custom_call.1} parent=1 // pred_check
      _
    $region67: #{tpu_custom_call.1} parent=1 // pred_check_branch
      %3193 = sbr.rel (0) target = $region69
    $region68: #{tpu_custom_call.1} parent=1 // pred_region
      %3194 = dma.done [#allocation3], 128
    $region69: #{tpu_custom_call.1} parent=1 // pred_fallthru
      _
    %3195 = vsyncpa [#allocation3], 1

</llo_original>
